<compile_context>
chip_gen: v5e
topology: v5e:2x2
jax: 0.10.0
libtpu: 0.0.40
codegen_flags: <defaults>
</compile_context>

<pallas_src>
import functools

import jax
import jax.numpy as jnp
from jax.experimental import pallas as pl
from jax.experimental.pallas import tpu as pltpu

LANE = 128
_VMEM_LIMIT_BYTES = 32 * 1024 * 1024   # <= default scoped limit on v6e/v7x, safe on v5e


def _round_up(x, m):
    return (x + m - 1) // m * m


# ------------------- Stage 1: fused lat(1x1) + polyphase deconv -------------

def _lat_deconv_kernel(c_ref, patch_ref, wl_ref, wd_ref, b_ref, o_ref):
    # out = (patch @ w_dec) + (c @ w_lat) + bias      (BN scales pre-folded)
    acc = jnp.dot(patch_ref[0], wd_ref[0], preferred_element_type=jnp.float32)
    acc = acc + jnp.dot(c_ref[0], wl_ref[...], preferred_element_type=jnp.float32)
    o_ref[0] = (acc + b_ref[...]).astype(o_ref.dtype)


def lat_plus_deconv(c_ph, patches, w_lat, w_dec, bias, tm):
    """c_ph: (4, Mp, C1) bf16; patches: (4, Mp, 4*C2) bf16; w_lat: (C1, Fp) bf16;
    w_dec: (4, 4*C2, Fp) bf16; bias: (1, Fp) f32  ->  (4, Mp, Fp) bf16."""
    nph, Mp, C1 = c_ph.shape
    Kd = patches.shape[-1]
    Fp = w_lat.shape[-1]
    nrows = Mp // tm
    return pl.pallas_call(
        _lat_deconv_kernel,
        out_shape=jax.ShapeDtypeStruct((nph, Mp, Fp), jnp.bfloat16),
        grid_spec=pltpu.PrefetchScalarGridSpec(
            num_scalar_prefetch=0,
            grid=(nph, nrows),
            in_specs=[
                pl.BlockSpec((1, tm, C1), lambda ph, i: (ph, i, 0)),
                pl.BlockSpec((1, tm, Kd), lambda ph, i: (ph, i, 0)),
                pl.BlockSpec((C1, Fp), lambda ph, i: (0, 0)),
                pl.BlockSpec((1, Kd, Fp), lambda ph, i: (ph, 0, 0)),
                pl.BlockSpec((1, Fp), lambda ph, i: (0, 0)),
            ],
            out_specs=pl.BlockSpec((1, tm, Fp), lambda ph, i: (ph, i, 0)),
        ),
        compiler_params=pltpu.CompilerParams(
            dimension_semantics=("parallel", "parallel"),
            vmem_limit_bytes=_VMEM_LIMIT_BYTES),
    )(c_ph, patches, w_lat, w_dec, bias)


# ------------------- Stage 2: 3x3 conv + BN + ReLU (in-kernel taps) ---------

def _conv3x3_relu_kernel(x_ref, w_ref, b_ref, o_ref):
    # x_ref: (1, H+2, W+2, Fp) bf16 ; w_ref: (9, Fp, Fp) bf16 ; b_ref: (1, Fp) f32
    _, H, W, Fp = o_ref.shape
    acc = jnp.zeros((H * W, Fp), jnp.float32)
    for kh in range(3):
        for kw in range(3):
            xs = x_ref[0, kh:kh + H, kw:kw + W, :].reshape(H * W, Fp)
            acc = acc + jnp.dot(xs, w_ref[kh * 3 + kw],
                                preferred_element_type=jnp.float32)
    y = jnp.maximum(acc + b_ref[...], 0.0)
    o_ref[0] = y.reshape(H, W, Fp).astype(o_ref.dtype)


def conv3x3_bn_relu(x_pad, w_taps, bias):
    """x_pad: (N, H+2, W+2, Fp) bf16; w_taps: (9, Fp, Fp) bf16; bias: (1, Fp) f32."""
    N, Hp2, Wp2, Fp = x_pad.shape
    H, W = Hp2 - 2, Wp2 - 2
    return pl.pallas_call(
        _conv3x3_relu_kernel,
        out_shape=jax.ShapeDtypeStruct((N, H, W, Fp), jnp.float32),
        grid_spec=pltpu.PrefetchScalarGridSpec(
            num_scalar_prefetch=0,
            grid=(N,),
            in_specs=[
                pl.BlockSpec((1, Hp2, Wp2, Fp), lambda n: (n, 0, 0, 0)),
                pl.BlockSpec((9, Fp, Fp), lambda n: (0, 0, 0)),
                pl.BlockSpec((1, Fp), lambda n: (0, 0)),
            ],
            out_specs=pl.BlockSpec((1, H, W, Fp), lambda n: (n, 0, 0, 0)),
        ),
        compiler_params=pltpu.CompilerParams(
            dimension_semantics=("parallel",),
            vmem_limit_bytes=_VMEM_LIMIT_BYTES),
    )(x_pad, w_taps, bias)


# ------------------------------- JAX glue -----------------------------------

def _bn_fold(gamma, beta, mean, var, eps=1e-5):
    scale = gamma / jnp.sqrt(var + eps)
    bias = beta - mean * scale
    return scale, bias


def init_params(key, c1, c2, f):
    ks = jax.random.split(key, 6)

    def bn(k):
        k1, k2, k3, k4 = jax.random.split(k, 4)
        gamma = 1.0 + 0.1 * jax.random.normal(k1, (f,), jnp.float32)
        beta = 0.1 * jax.random.normal(k2, (f,), jnp.float32)
        mean = 0.1 * jax.random.normal(k3, (f,), jnp.float32)
        var = jnp.abs(1.0 + 0.1 * jax.random.normal(k4, (f,), jnp.float32))
        return _bn_fold(gamma, beta, mean, var)

    return {
        "w_lat": 0.1 * jax.random.normal(ks[0], (f, c1, 1, 1), jnp.float32),
        "bn_lat": bn(ks[1]),
        "w_deconv": 0.1 * jax.random.normal(ks[2], (c2, f, 4, 4), jnp.float32),
        "bn_deconv": bn(ks[3]),
        "w_conv": 0.1 * jax.random.normal(ks[4], (f, f, 3, 3), jnp.float32),
        "bn_conv": bn(ks[5]),
    }


def deconv_top_down(params, c_nchw, p_nchw):
    N, C1, H, W = c_nchw.shape
    _, C2, Hp, Wp = p_nchw.shape
    F = params["w_lat"].shape[0]
    assert H == 2 * Hp and W == 2 * Wp
    Fp = _round_up(F, LANE)
    Mp = N * Hp * Wp

    c = jnp.transpose(c_nchw, (0, 2, 3, 1)).astype(jnp.bfloat16)   # NHWC
    p = jnp.transpose(p_nchw, (0, 2, 3, 1)).astype(jnp.bfloat16)   # NHWC

    s_lat, b_lat = params["bn_lat"]
    s_dec, b_dec = params["bn_deconv"]
    s_cv, b_cv = params["bn_conv"]

    # ---- lat weight: (C1, Fp), BN scale folded ----
    w_lat = jnp.transpose(params["w_lat"], (2, 3, 1, 0)).reshape(C1, F) * s_lat[None, :]
    w_lat = jnp.pad(w_lat, ((0, 0), (0, Fp - F))).astype(jnp.bfloat16)

    # ---- deconv polyphase weights: phase (r,s), tap (dy,dx) uses kernel
    #      element (ky,kx) = (3-r-2*dy, 3-s-2*dx); rows ordered (dy,dx,c2). ----
    wd = params["w_deconv"]                                           # (C2, F, 4, 4)
    w_dec_ph = []
    for r in range(2):
        for s in range(2):
            taps = [wd[:, :, 3 - r - 2 * dy, 3 - s - 2 * dx]
                    for dy in range(2) for dx in range(2)]
            wp_ = jnp.concatenate(taps, axis=0) * s_dec[None, :]      # (4*C2, F)
            w_dec_ph.append(jnp.pad(wp_, ((0, 0), (0, Fp - F))))
    w_dec_ph = jnp.stack(w_dec_ph, axis=0).astype(jnp.bfloat16)       # (4, 4*C2, Fp)

    bias1 = jnp.pad(b_lat + b_dec, (0, Fp - F)).reshape(1, Fp).astype(jnp.float32)

    # ---- phase-sliced lateral input + polyphase 2x2 patches of p ----
    p_sp = jnp.pad(p, ((0, 0), (1, 1), (1, 1), (0, 0)))               # (N, Hp+2, Wp+2, C2)
    c_ph, patches = [], []
    for r in range(2):
        for s in range(2):
            c_ph.append(c[:, r::2, s::2, :].reshape(Mp, C1))
            cols = [p_sp[:, r + dy:r + dy + Hp, s + dx:s + dx + Wp, :]
                    for dy in range(2) for dx in range(2)]
            patches.append(jnp.concatenate(cols, axis=-1).reshape(Mp, 4 * C2))
    c_ph = jnp.stack(c_ph, axis=0)                                    # (4, Mp, C1)
    patches = jnp.stack(patches, axis=0)                              # (4, Mp, 4*C2)

    # row tiling: big tiles, cdiv grid + zero padding (no "tm = M" fallback)
    tm = 512 if Mp >= 512 else _round_up(Mp, 8)
    Mp_pad = _round_up(Mp, tm)
    if Mp_pad != Mp:
        c_ph = jnp.pad(c_ph, ((0, 0), (0, Mp_pad - Mp), (0, 0)))
        patches = jnp.pad(patches, ((0, 0), (0, Mp_pad - Mp), (0, 0)))

    y_ph = lat_plus_deconv(c_ph, patches, w_lat, w_dec_ph, bias1, tm)  # (4, Mp_pad, Fp)
    y_ph = y_ph[:, :Mp, :]

    # interleave the four phases back to (N, H, W, Fp)
    y = y_ph.reshape(2, 2, N, Hp, Wp, Fp)
    y = jnp.transpose(y, (2, 3, 0, 4, 1, 5)).reshape(N, H, W, Fp)

    # ---- 3x3 conv + BN + ReLU ----
    y_pad = jnp.pad(y, ((0, 0), (1, 1), (1, 1), (0, 0)))               # bf16
    w_taps = []
    for kh in range(3):
        for kw in range(3):
            wt = params["w_conv"][:, :, kh, kw].T * s_cv[None, :]      # (F_in, F_out)
            w_taps.append(jnp.pad(wt, ((0, Fp - F), (0, Fp - F))))
    w_taps = jnp.stack(w_taps, axis=0).astype(jnp.bfloat16)            # (9, Fp, Fp)
    bias2 = jnp.pad(b_cv, (0, Fp - F)).reshape(1, Fp).astype(jnp.float32)

    out = conv3x3_bn_relu(y_pad, w_taps, bias2)                        # (N, H, W, Fp) f32
    return jnp.transpose(out[..., :F], (0, 3, 1, 2))                   # NCHW


# --------------------------------- main --------------------------------------

if __name__ == "__main__":
    key = jax.random.PRNGKey(0)
    kc, kp, kparams = jax.random.split(key, 3)

    N, C1, C2, F = 2, 4, 8, 8
    H = W = 16
    c = jax.random.normal(kc, (N, C1, H, W), jnp.float32)               # lateral feature
    p = jax.random.normal(kp, (N, C2, H // 2, W // 2), jnp.float32)     # top-down feature

    params = init_params(kparams, C1, C2, F)
    fwd = jax.jit(functools.partial(deconv_top_down, params))
    out = fwd(c, p)
    jax.block_until_ready(out)
    assert out.shape == (N, F, H, W)
    assert out.dtype == jnp.float32
    print("KERNEL_OK")
</pallas_src>

<mosaic_0001>
module attributes {stable_mosaic.version = 11 : i64} {
  func.func @_lat_deconv_kernel(%arg0: i32, %arg1: i32, %arg2: memref<1x128x4xbf16, #tpu.memory_space<vmem>>, %arg3: memref<1x128x32xbf16, #tpu.memory_space<vmem>>, %arg4: memref<4x128xbf16, #tpu.memory_space<vmem>>, %arg5: memref<1x32x128xbf16, #tpu.memory_space<vmem>>, %arg6: memref<1x128xf32, #tpu.memory_space<vmem>>, %arg7: memref<1x128x128xbf16, #tpu.memory_space<vmem>>) attributes {dimension_semantics = [#tpu.dimension_semantics<parallel>, #tpu.dimension_semantics<parallel>], iteration_bounds = array<i64: 4, 1>, scalar_prefetch = 0 : i64, scratch_operands = 0 : i64, tpu.core_type = #tpu.core_type<tc>, window_params = [{transform_indices = @transform_0, window_bounds = array<i64: 1, 128, 4>}, {transform_indices = @transform_1, window_bounds = array<i64: 1, 128, 32>}, {pipeline_mode = #tpu.pipeline_mode<synchronous>, transform_indices = @transform_2, window_bounds = array<i64: 4, 128>}, {transform_indices = @transform_3, window_bounds = array<i64: 1, 32, 128>}, {pipeline_mode = #tpu.pipeline_mode<synchronous>, transform_indices = @transform_4, window_bounds = array<i64: 1, 128>}, {transform_indices = @transform_5, window_bounds = array<i64: 1, 128, 128>}]} {
    %c0 = arith.constant 0 : index
    %c0_0 = arith.constant 0 : index
    %c0_1 = arith.constant 0 : index
    %0 = vector.load %arg3[%c0, %c0_0, %c0_1] : memref<1x128x32xbf16, #tpu.memory_space<vmem>>, vector<1x128x32xbf16>
    %1 = vector.shape_cast %0 : vector<1x128x32xbf16> to vector<128x32xbf16>
    %c0_2 = arith.constant 0 : index
    %c0_3 = arith.constant 0 : index
    %c0_4 = arith.constant 0 : index
    %2 = vector.load %arg5[%c0_2, %c0_3, %c0_4] : memref<1x32x128xbf16, #tpu.memory_space<vmem>>, vector<1x32x128xbf16>
    %3 = vector.shape_cast %2 : vector<1x32x128xbf16> to vector<32x128xbf16>
    %cst = arith.constant dense<0.000000e+00> : vector<128x128xf32>
    %4 = tpu.matmul %1, %3, %cst {dimension_numbers = #tpu.dot_dimension_numbers<[1], [0], [0], [1], [0, 0, 1, 1], [], []>} : vector<128x32xbf16>, vector<32x128xbf16>, vector<128x128xf32> -> vector<128x128xf32>
    %c0_5 = arith.constant 0 : index
    %c0_6 = arith.constant 0 : index
    %c0_7 = arith.constant 0 : index
    %5 = vector.load %arg2[%c0_5, %c0_6, %c0_7] : memref<1x128x4xbf16, #tpu.memory_space<vmem>>, vector<1x128x4xbf16>
    %6 = vector.shape_cast %5 : vector<1x128x4xbf16> to vector<128x4xbf16>
    %c0_8 = arith.constant 0 : index
    %c0_9 = arith.constant 0 : index
    %7 = vector.load %arg4[%c0_8, %c0_9] : memref<4x128xbf16, #tpu.memory_space<vmem>>, vector<4x128xbf16>
    %cst_10 = arith.constant dense<0.000000e+00> : vector<128x128xf32>
    %8 = tpu.matmul %6, %7, %cst_10 {dimension_numbers = #tpu.dot_dimension_numbers<[1], [0], [0], [1], [0, 0, 1, 1], [], []>} : vector<128x4xbf16>, vector<4x128xbf16>, vector<128x128xf32> -> vector<128x128xf32>
    %9 = arith.addf %4, %8 : vector<128x128xf32>
    %c0_11 = arith.constant 0 : index
    %c0_12 = arith.constant 0 : index
    %10 = vector.load %arg6[%c0_11, %c0_12] : memref<1x128xf32, #tpu.memory_space<vmem>>, vector<1x128xf32>
    %11 = vector.broadcast %10 : vector<1x128xf32> to vector<128x128xf32>
    %12 = arith.addf %9, %11 : vector<128x128xf32>
    %13 = arith.truncf %12 : vector<128x128xf32> to vector<128x128xbf16>
    %c0_13 = arith.constant 0 : index
    %c0_14 = arith.constant 0 : index
    %c0_15 = arith.constant 0 : index
    %14 = vector.load %arg7[%c0_13, %c0_14, %c0_15] : memref<1x128x128xbf16, #tpu.memory_space<vmem>>, vector<1x128x128xbf16>
    %15 = vector.shape_cast %14 : vector<1x128x128xbf16> to vector<128x128xbf16>
    %16 = vector.shape_cast %13 : vector<128x128xbf16> to vector<1x128x128xbf16>
    tpu.vector_store %arg7[%c0_13, %c0_14, %c0_15], %16 {strides = array<i32>} : memref<1x128x128xbf16, #tpu.memory_space<vmem>>, vector<1x128x128xbf16>,
    return
  }
  func.func @transform_0(%arg0: i32, %arg1: i32) -> (i32, i32, i32) {
    %c0_i32 = arith.constant 0 : i32
    %c0_i32_0 = arith.constant 0 : i32
    return %arg0, %arg1, %c0_i32 : i32, i32, i32
  }
  func.func @transform_1(%arg0: i32, %arg1: i32) -> (i32, i32, i32) {
    %c0_i32 = arith.constant 0 : i32
    %c0_i32_0 = arith.constant 0 : i32
    return %arg0, %arg1, %c0_i32 : i32, i32, i32
  }
  func.func @transform_2(%arg0: i32, %arg1: i32) -> (i32, i32) {
    %c0_i32 = arith.constant 0 : i32
    %c0_i32_0 = arith.constant 0 : i32
    %c0_i32_1 = arith.constant 0 : i32
    return %c0_i32, %c0_i32_0 : i32, i32
  }
  func.func @transform_3(%arg0: i32, %arg1: i32) -> (i32, i32, i32) {
    %c0_i32 = arith.constant 0 : i32
    %c0_i32_0 = arith.constant 0 : i32
    %c0_i32_1 = arith.constant 0 : i32
    return %arg0, %c0_i32, %c0_i32_0 : i32, i32, i32
  }
  func.func @transform_4(%arg0: i32, %arg1: i32) -> (i32, i32) {
    %c0_i32 = arith.constant 0 : i32
    %c0_i32_0 = arith.constant 0 : i32
    %c0_i32_1 = arith.constant 0 : i32
    return %c0_i32, %c0_i32_0 : i32, i32
  }
  func.func @transform_5(%arg0: i32, %arg1: i32) -> (i32, i32, i32) {
    %c0_i32 = arith.constant 0 : i32
    %c0_i32_0 = arith.constant 0 : i32
    return %arg0, %arg1, %c0_i32 : i32, i32, i32
  }
}

module attributes {stable_mosaic.version = 11 : i64} {
  func.func @_conv3x3_relu_kernel(%arg0: i32, %arg1: memref<1x18x18x128xbf16, #tpu.memory_space<vmem>>, %arg2: memref<9x128x128xbf16, #tpu.memory_space<vmem>>, %arg3: memref<1x128xf32, #tpu.memory_space<vmem>>, %arg4: memref<1x16x16x128xf32, #tpu.memory_space<vmem>>) attributes {dimension_semantics = [#tpu.dimension_semantics<parallel>], iteration_bounds = array<i64: 2>, scalar_prefetch = 0 : i64, scratch_operands = 0 : i64, tpu.core_type = #tpu.core_type<tc>, window_params = [{transform_indices = @transform_0, window_bounds = array<i64: 1, 18, 18, 128>}, {pipeline_mode = #tpu.pipeline_mode<synchronous>, transform_indices = @transform_1, window_bounds = array<i64: 9, 128, 128>}, {pipeline_mode = #tpu.pipeline_mode<synchronous>, transform_indices = @transform_2, window_bounds = array<i64: 1, 128>}, {transform_indices = @transform_3, window_bounds = array<i64: 1, 16, 16, 128>}]} {
    %cst = arith.constant 0.000000e+00 : f32
    %0 = vector.broadcast %cst : f32 to vector<256x128xf32>
    %c0 = arith.constant 0 : index
    %c0_0 = arith.constant 0 : index
    %c0_1 = arith.constant 0 : index
    %c0_2 = arith.constant 0 : index
    %1 = vector.load %arg1[%c0, %c0_0, %c0_1, %c0_2] : memref<1x18x18x128xbf16, #tpu.memory_space<vmem>>, vector<1x16x16x128xbf16>
    %2 = vector.shape_cast %1 : vector<1x16x16x128xbf16> to vector<16x16x128xbf16>
    %3 = vector.shape_cast %2 : vector<16x16x128xbf16> to vector<256x128xbf16>
    %c0_3 = arith.constant 0 : index
    %c0_4 = arith.constant 0 : index
    %c0_5 = arith.constant 0 : index
    %4 = vector.load %arg2[%c0_3, %c0_4, %c0_5] : memref<9x128x128xbf16, #tpu.memory_space<vmem>>, vector<1x128x128xbf16>
    %5 = vector.shape_cast %4 : vector<1x128x128xbf16> to vector<128x128xbf16>
    %cst_6 = arith.constant dense<0.000000e+00> : vector<256x128xf32>
    %6 = tpu.matmul %3, %5, %cst_6 {dimension_numbers = #tpu.dot_dimension_numbers<[1], [0], [0], [1], [0, 0, 1, 1], [], []>} : vector<256x128xbf16>, vector<128x128xbf16>, vector<256x128xf32> -> vector<256x128xf32>
    %7 = arith.addf %0, %6 : vector<256x128xf32>
    %c0_7 = arith.constant 0 : index
    %c0_8 = arith.constant 0 : index
    %c1 = arith.constant 1 : index
    %c0_9 = arith.constant 0 : index
    %8 = vector.load %arg1[%c0_7, %c0_8, %c1, %c0_9] : memref<1x18x18x128xbf16, #tpu.memory_space<vmem>>, vector<1x16x16x128xbf16>
    %9 = vector.shape_cast %8 : vector<1x16x16x128xbf16> to vector<16x16x128xbf16>
    %10 = vector.shape_cast %9 : vector<16x16x128xbf16> to vector<256x128xbf16>
    %c1_10 = arith.constant 1 : index
    %c0_11 = arith.constant 0 : index
    %c0_12 = arith.constant 0 : index
    %11 = vector.load %arg2[%c1_10, %c0_11, %c0_12] : memref<9x128x128xbf16, #tpu.memory_space<vmem>>, vector<1x128x128xbf16>
    %12 = vector.shape_cast %11 : vector<1x128x128xbf16> to vector<128x128xbf16>
    %cst_13 = arith.constant dense<0.000000e+00> : vector<256x128xf32>
    %13 = tpu.matmul %10, %12, %cst_13 {dimension_numbers = #tpu.dot_dimension_numbers<[1], [0], [0], [1], [0, 0, 1, 1], [], []>} : vector<256x128xbf16>, vector<128x128xbf16>, vector<256x128xf32> -> vector<256x128xf32>
    %14 = arith.addf %7, %13 : vector<256x128xf32>
    %c0_14 = arith.constant 0 : index
    %c0_15 = arith.constant 0 : index
    %c2 = arith.constant 2 : index
    %c0_16 = arith.constant 0 : index
    %15 = vector.load %arg1[%c0_14, %c0_15, %c2, %c0_16] : memref<1x18x18x128xbf16, #tpu.memory_space<vmem>>, vector<1x16x16x128xbf16>
    %16 = vector.shape_cast %15 : vector<1x16x16x128xbf16> to vector<16x16x128xbf16>
    %17 = vector.shape_cast %16 : vector<16x16x128xbf16> to vector<256x128xbf16>
    %c2_17 = arith.constant 2 : index
    %c0_18 = arith.constant 0 : index
    %c0_19 = arith.constant 0 : index
    %18 = vector.load %arg2[%c2_17, %c0_18, %c0_19] : memref<9x128x128xbf16, #tpu.memory_space<vmem>>, vector<1x128x128xbf16>
    %19 = vector.shape_cast %18 : vector<1x128x128xbf16> to vector<128x128xbf16>
    %cst_20 = arith.constant dense<0.000000e+00> : vector<256x128xf32>
    %20 = tpu.matmul %17, %19, %cst_20 {dimension_numbers = #tpu.dot_dimension_numbers<[1], [0], [0], [1], [0, 0, 1, 1], [], []>} : vector<256x128xbf16>, vector<128x128xbf16>, vector<256x128xf32> -> vector<256x128xf32>
    %21 = arith.addf %14, %20 : vector<256x128xf32>
    %c0_21 = arith.constant 0 : index
    %c1_22 = arith.constant 1 : index
    %c0_23 = arith.constant 0 : index
    %c0_24 = arith.constant 0 : index
    %22 = vector.load %arg1[%c0_21, %c1_22, %c0_23, %c0_24] : memref<1x18x18x128xbf16, #tpu.memory_space<vmem>>, vector<1x16x16x128xbf16>
    %23 = vector.shape_cast %22 : vector<1x16x16x128xbf16> to vector<16x16x128xbf16>
    %24 = vector.shape_cast %23 : vector<16x16x128xbf16> to vector<256x128xbf16>
    %c3 = arith.constant 3 : index
    %c0_25 = arith.constant 0 : index
    %c0_26 = arith.constant 0 : index
    %25 = vector.load %arg2[%c3, %c0_25, %c0_26] : memref<9x128x128xbf16, #tpu.memory_space<vmem>>, vector<1x128x128xbf16>
    %26 = vector.shape_cast %25 : vector<1x128x128xbf16> to vector<128x128xbf16>
    %cst_27 = arith.constant dense<0.000000e+00> : vector<256x128xf32>
    %27 = tpu.matmul %24, %26, %cst_27 {dimension_numbers = #tpu.dot_dimension_numbers<[1], [0], [0], [1], [0, 0, 1, 1], [], []>} : vector<256x128xbf16>, vector<128x128xbf16>, vector<256x128xf32> -> vector<256x128xf32>
    %28 = arith.addf %21, %27 : vector<256x128xf32>
    %c0_28 = arith.constant 0 : index
    %c1_29 = arith.constant 1 : index
    %c1_30 = arith.constant 1 : index
    %c0_31 = arith.constant 0 : index
    %29 = vector.load %arg1[%c0_28, %c1_29, %c1_30, %c0_31] : memref<1x18x18x128xbf16, #tpu.memory_space<vmem>>, vector<1x16x16x128xbf16>
    %30 = vector.shape_cast %29 : vector<1x16x16x128xbf16> to vector<16x16x128xbf16>
    %31 = vector.shape_cast %30 : vector<16x16x128xbf16> to vector<256x128xbf16>
    %c4 = arith.constant 4 : index
    %c0_32 = arith.constant 0 : index
    %c0_33 = arith.constant 0 : index
    %32 = vector.load %arg2[%c4, %c0_32, %c0_33] : memref<9x128x128xbf16, #tpu.memory_space<vmem>>, vector<1x128x128xbf16>
    %33 = vector.shape_cast %32 : vector<1x128x128xbf16> to vector<128x128xbf16>
    %cst_34 = arith.constant dense<0.000000e+00> : vector<256x128xf32>
    %34 = tpu.matmul %31, %33, %cst_34 {dimension_numbers = #tpu.dot_dimension_numbers<[1], [0], [0], [1], [0, 0, 1, 1], [], []>} : vector<256x128xbf16>, vector<128x128xbf16>, vector<256x128xf32> -> vector<256x128xf32>
    %35 = arith.addf %28, %34 : vector<256x128xf32>
    %c0_35 = arith.constant 0 : index
    %c1_36 = arith.constant 1 : index
    %c2_37 = arith.constant 2 : index
    %c0_38 = arith.constant 0 : index
    %36 = vector.load %arg1[%c0_35, %c1_36, %c2_37, %c0_38] : memref<1x18x18x128xbf16, #tpu.memory_space<vmem>>, vector<1x16x16x128xbf16>
    %37 = vector.shape_cast %36 : vector<1x16x16x128xbf16> to vector<16x16x128xbf16>
    %38 = vector.shape_cast %37 : vector<16x16x128xbf16> to vector<256x128xbf16>
    %c5 = arith.constant 5 : index
    %c0_39 = arith.constant 0 : index
    %c0_40 = arith.constant 0 : index
    %39 = vector.load %arg2[%c5, %c0_39, %c0_40] : memref<9x128x128xbf16, #tpu.memory_space<vmem>>, vector<1x128x128xbf16>
    %40 = vector.shape_cast %39 : vector<1x128x128xbf16> to vector<128x128xbf16>
    %cst_41 = arith.constant dense<0.000000e+00> : vector<256x128xf32>
    %41 = tpu.matmul %38, %40, %cst_41 {dimension_numbers = #tpu.dot_dimension_numbers<[1], [0], [0], [1], [0, 0, 1, 1], [], []>} : vector<256x128xbf16>, vector<128x128xbf16>, vector<256x128xf32> -> vector<256x128xf32>
    %42 = arith.addf %35, %41 : vector<256x128xf32>
    %c0_42 = arith.constant 0 : index
    %c2_43 = arith.constant 2 : index
    %c0_44 = arith.constant 0 : index
    %c0_45 = arith.constant 0 : index
    %43 = vector.load %arg1[%c0_42, %c2_43, %c0_44, %c0_45] : memref<1x18x18x128xbf16, #tpu.memory_space<vmem>>, vector<1x16x16x128xbf16>
    %44 = vector.shape_cast %43 : vector<1x16x16x128xbf16> to vector<16x16x128xbf16>
    %45 = vector.shape_cast %44 : vector<16x16x128xbf16> to vector<256x128xbf16>
    %c6 = arith.constant 6 : index
    %c0_46 = arith.constant 0 : index
    %c0_47 = arith.constant 0 : index
    %46 = vector.load %arg2[%c6, %c0_46, %c0_47] : memref<9x128x128xbf16, #tpu.memory_space<vmem>>, vector<1x128x128xbf16>
    %47 = vector.shape_cast %46 : vector<1x128x128xbf16> to vector<128x128xbf16>
    %cst_48 = arith.constant dense<0.000000e+00> : vector<256x128xf32>
    %48 = tpu.matmul %45, %47, %cst_48 {dimension_numbers = #tpu.dot_dimension_numbers<[1], [0], [0], [1], [0, 0, 1, 1], [], []>} : vector<256x128xbf16>, vector<128x128xbf16>, vector<256x128xf32> -> vector<256x128xf32>
    %49 = arith.addf %42, %48 : vector<256x128xf32>
    %c0_49 = arith.constant 0 : index
    %c2_50 = arith.constant 2 : index
    %c1_51 = arith.constant 1 : index
    %c0_52 = arith.constant 0 : index
    %50 = vector.load %arg1[%c0_49, %c2_50, %c1_51, %c0_52] : memref<1x18x18x128xbf16, #tpu.memory_space<vmem>>, vector<1x16x16x128xbf16>
    %51 = vector.shape_cast %50 : vector<1x16x16x128xbf16> to vector<16x16x128xbf16>
    %52 = vector.shape_cast %51 : vector<16x16x128xbf16> to vector<256x128xbf16>
    %c7 = arith.constant 7 : index
    %c0_53 = arith.constant 0 : index
    %c0_54 = arith.constant 0 : index
    %53 = vector.load %arg2[%c7, %c0_53, %c0_54] : memref<9x128x128xbf16, #tpu.memory_space<vmem>>, vector<1x128x128xbf16>
    %54 = vector.shape_cast %53 : vector<1x128x128xbf16> to vector<128x128xbf16>
    %cst_55 = arith.constant dense<0.000000e+00> : vector<256x128xf32>
    %55 = tpu.matmul %52, %54, %cst_55 {dimension_numbers = #tpu.dot_dimension_numbers<[1], [0], [0], [1], [0, 0, 1, 1], [], []>} : vector<256x128xbf16>, vector<128x128xbf16>, vector<256x128xf32> -> vector<256x128xf32>
    %56 = arith.addf %49, %55 : vector<256x128xf32>
    %c0_56 = arith.constant 0 : index
    %c2_57 = arith.constant 2 : index
    %c2_58 = arith.constant 2 : index
    %c0_59 = arith.constant 0 : index
    %57 = vector.load %arg1[%c0_56, %c2_57, %c2_58, %c0_59] : memref<1x18x18x128xbf16, #tpu.memory_space<vmem>>, vector<1x16x16x128xbf16>
    %58 = vector.shape_cast %57 : vector<1x16x16x128xbf16> to vector<16x16x128xbf16>
    %59 = vector.shape_cast %58 : vector<16x16x128xbf16> to vector<256x128xbf16>
    %c8 = arith.constant 8 : index
    %c0_60 = arith.constant 0 : index
    %c0_61 = arith.constant 0 : index
    %60 = vector.load %arg2[%c8, %c0_60, %c0_61] : memref<9x128x128xbf16, #tpu.memory_space<vmem>>, vector<1x128x128xbf16>
    %61 = vector.shape_cast %60 : vector<1x128x128xbf16> to vector<128x128xbf16>
    %cst_62 = arith.constant dense<0.000000e+00> : vector<256x128xf32>
    %62 = tpu.matmul %59, %61, %cst_62 {dimension_numbers = #tpu.dot_dimension_numbers<[1], [0], [0], [1], [0, 0, 1, 1], [], []>} : vector<256x128xbf16>, vector<128x128xbf16>, vector<256x128xf32> -> vector<256x128xf32>
    %63 = arith.addf %56, %62 : vector<256x128xf32>
    %c0_63 = arith.constant 0 : index
    %c0_64 = arith.constant 0 : index
    %64 = vector.load %arg3[%c0_63, %c0_64] : memref<1x128xf32, #tpu.memory_space<vmem>>, vector<1x128xf32>
    %65 = vector.broadcast %64 : vector<1x128xf32> to vector<256x128xf32>
    %66 = arith.addf %63, %65 : vector<256x128xf32>
    %cst_65 = arith.constant 0.000000e+00 : f32
    %67 = vector.broadcast %cst_65 : f32 to vector<256x128xf32>
    %68 = arith.maximumf %66, %67 : vector<256x128xf32>
    %69 = vector.shape_cast %68 : vector<256x128xf32> to vector<16x16x128xf32>
    %c0_66 = arith.constant 0 : index
    %c0_67 = arith.constant 0 : index
    %c0_68 = arith.constant 0 : index
    %c0_69 = arith.constant 0 : index
    %70 = vector.load %arg4[%c0_66, %c0_67, %c0_68, %c0_69] : memref<1x16x16x128xf32, #tpu.memory_space<vmem>>, vector<1x16x16x128xf32>
    %71 = vector.shape_cast %70 : vector<1x16x16x128xf32> to vector<16x16x128xf32>
    %72 = vector.shape_cast %69 : vector<16x16x128xf32> to vector<1x16x16x128xf32>
    tpu.vector_store %arg4[%c0_66, %c0_67, %c0_68, %c0_69], %72 {strides = array<i32>} : memref<1x16x16x128xf32, #tpu.memory_space<vmem>>, vector<1x16x16x128xf32>,
    return
  }
  func.func @transform_0(%arg0: i32) -> (i32, i32, i32, i32) {
    %c0_i32 = arith.constant 0 : i32
    %c0_i32_0 = arith.constant 0 : i32
    %c0_i32_1 = arith.constant 0 : i32
    %c0_i32_2 = arith.constant 0 : i32
    return %arg0, %c0_i32, %c0_i32_0, %c0_i32_1 : i32, i32, i32, i32
  }
  func.func @transform_1(%arg0: i32) -> (i32, i32, i32) {
    %c0_i32 = arith.constant 0 : i32
    %c0_i32_0 = arith.constant 0 : i32
    %c0_i32_1 = arith.constant 0 : i32
    %c0_i32_2 = arith.constant 0 : i32
    return %c0_i32, %c0_i32_0, %c0_i32_1 : i32, i32, i32
  }
  func.func @transform_2(%arg0: i32) -> (i32, i32) {
    %c0_i32 = arith.constant 0 : i32
    %c0_i32_0 = arith.constant 0 : i32
    %c0_i32_1 = arith.constant 0 : i32
    return %c0_i32, %c0_i32_0 : i32, i32
  }
  func.func @transform_3(%arg0: i32) -> (i32, i32, i32, i32) {
    %c0_i32 = arith.constant 0 : i32
    %c0_i32_0 = arith.constant 0 : i32
    %c0_i32_1 = arith.constant 0 : i32
    %c0_i32_2 = arith.constant 0 : i32
    return %arg0, %c0_i32, %c0_i32_0, %c0_i32_1 : i32, i32, i32, i32
  }
}

</mosaic_0001>

<llo_original>
// kernel: deconv_top_down.2
$region0: #{deconv_top_down.2}
  #allocation0 [shape = 'u32[]', space=smem, size = 0x4, offset = 0x4, fixed_abs, tag = 'smem constant byte address 0x4 - core index']
  #allocation1 [shape = 'u32[72,128]{1,0:T(1,128)}', space=vmem, size = 0x9000, scoped, tag = 'internal scratch']
  %s0 = inlined_call_operand.vmem [shape: bf16[4,128,4], index: 0, kind: input, shape index: {}]
  %s1 = inlined_call_operand.vmem [shape: bf16[4,128,32], index: 1, kind: input, shape index: {}]
  %s2 = inlined_call_operand.vmem [shape: bf16[4,128], index: 2, kind: input, shape index: {}]
  %s3 = inlined_call_operand.vmem [shape: bf16[4,32,128], index: 3, kind: input, shape index: {}]
  %s4 = inlined_call_operand.vmem [shape: f32[1,128], index: 4, kind: input, shape index: {}]
  %s5 = inlined_call_operand.vmem [shape: bf16[4,128,128], index: 5, kind: output, shape index: {}]
  %s6 = sld [smem:[#allocation0]]
  $region53: #{deconv_top_down.2} parent=0
    _
  %s8 = ssub.s32 1, %s6
  %s9 = scalar_select 0, %s8, %s6
  loop: start=0, step=1, limit=6
  $region2: #{deconv_top_down.2} parent=0 // loop_pre_header
    _
  $region3: #{deconv_top_down.2} parent=0 // loop_header
    %s11 = sphi 0, %s15
    %p12 = scmp.ge.s32.totalorder %s11, 6
    %s18 = sphi 0, %s30
    %s19 = sphi 0, %s26
    %s20 = sphi 0, %s18
    %s21 = sphi 0, %s19
    %s22 = sphi 0, %s20
    %s23 = sphi 0, %s21
    %s35 = sphi 0, %s37
    %s38 = sphi 0, %s35
    %s39 = sphi 0, %s38
    %s55 = sphi 0, %s39
    %s63 = sphi 0, %s65
    %s66 = sphi 0, %s63
    %s67 = sphi 0, %s66
    %s83 = sphi 0, %s67
    %s87 = sphi 0, %s87
    %s89 = sphi 0, %s87
    %s90 = sphi 0, %s89
    %s104 = sphi 0, %s90
    %s110 = sphi 0, %s112
    %s113 = sphi 0, %s110
    %s114 = sphi 0, %s113
    %s130 = sphi 0, %s114
    %s134 = sphi 0, %s134
    %s136 = sphi 0, %s134
    %s137 = sphi 0, %s136
    %s151 = sphi 0, %s137
    %s159 = sphi 0, %s161
    %s162 = sphi 0, %s159
    %s163 = sphi 0, %s162
    %s179 = sphi 0, %s163
  $region4: #{deconv_top_down.2} parent=0 // loop_header_branch
    %14 = sbr.rel (%p12) target = $region8
  $region5: #{deconv_top_down.2} parent=0 // loop_body
    %s16 = ssub.s32 %s11, 1
    %s17 = ssub.s32 %s11, 2
    %s24 = sadd.s32 1, %s19
    %p25 = scmp.ge.s32.totalorder %s24, 1
    %s26 = scalar_select %p25, 0, %s24
    %s27 = sadd.s32 1, %s18
    %s28 = scalar_select %p25, %s27, %s18
    %p29 = scmp.ge.s32.totalorder %s28, 4
    %s30 = scalar_select %p29, 0, %s28
    %s31 = ssub.s32 %s18, %s30
    %s32 = ssub.s32 %s19, %s26
    %s33 = sor.u32 %s31, %s32
    %p34 = scmp.eq.s32.totalorder %s33, 0
    %s36 = sadd.s32 %s35, 1
    %s37 = scalar_select %p34, %s35, %s36
    %p40 = pneg %p34
    %p41 = scmp.eq.s32.totalorder %s11, 3
    %p42 = por %p40, %p41
    %p43 = scmp.ne.s32.totalorder %s35, %s38
    %p44 = scmp.eq.s32.totalorder %s11, 0
    %p45 = por %p43, %p44
    %p46 = scmp.ne.s32.totalorder %s35, %s38
    %p47 = scmp.eq.s32.totalorder %s16, 3
    %p48 = por %p46, %p47
    %p49 = scmp.ne.s32.totalorder %s38, %s39
    %p50 = scmp.eq.s32.totalorder %s16, 0
    %p51 = por %p49, %p50
    %p52 = scmp.ne.s32.totalorder %s38, %s39
    %p53 = scmp.eq.s32.totalorder %s17, 3
    %p54 = por %p52, %p53
    %p56 = scmp.ne.s32.totalorder %s39, %s55
    %p57 = scmp.eq.s32.totalorder %s17, 0
    %p58 = por %p56, %p57
    %s59 = ssub.s32 %s18, %s30
    %s60 = ssub.s32 %s19, %s26
    %s61 = sor.u32 %s59, %s60
    %p62 = scmp.eq.s32.totalorder %s61, 0
    %s64 = sadd.s32 %s63, 1
    %s65 = scalar_select %p62, %s63, %s64
    %p68 = pneg %p62
    %p69 = scmp.eq.s32.totalorder %s11, 3
    %p70 = por %p68, %p69
    %p71 = scmp.ne.s32.totalorder %s63, %s66
    %p72 = scmp.eq.s32.totalorder %s11, 0
    %p73 = por %p71, %p72
    %p74 = scmp.ne.s32.totalorder %s63, %s66
    %p75 = scmp.eq.s32.totalorder %s16, 3
    %p76 = por %p74, %p75
    %p77 = scmp.ne.s32.totalorder %s66, %s67
    %p78 = scmp.eq.s32.totalorder %s16, 0
    %p79 = por %p77, %p78
    %p80 = scmp.ne.s32.totalorder %s66, %s67
    %p81 = scmp.eq.s32.totalorder %s17, 3
    %p82 = por %p80, %p81
    %p84 = scmp.ne.s32.totalorder %s67, %s83
    %p85 = scmp.eq.s32.totalorder %s17, 0
    %p86 = por %p84, %p85
    %s88 = sadd.s32 %s87, 1
    %p91 = scmp.eq.s32.totalorder %s11, 3
    %p92 = scmp.ne.s32.totalorder %s87, %s89
    %p93 = scmp.eq.s32.totalorder %s11, 0
    %p94 = por %p92, %p93
    %p95 = scmp.ne.s32.totalorder %s87, %s89
    %p96 = scmp.eq.s32.totalorder %s16, 3
    %p97 = por %p95, %p96
    %p98 = scmp.ne.s32.totalorder %s89, %s90
    %p99 = scmp.eq.s32.totalorder %s16, 0
    %p100 = por %p98, %p99
    %p101 = scmp.ne.s32.totalorder %s89, %s90
    %p102 = scmp.eq.s32.totalorder %s17, 3
    %p103 = por %p101, %p102
    %p105 = scmp.ne.s32.totalorder %s90, %s104
    %p106 = scmp.eq.s32.totalorder %s17, 0
    %p107 = por %p105, %p106
    %s108 = ssub.s32 %s18, %s30
    %p109 = scmp.eq.s32.totalorder %s108, 0
    %s111 = sadd.s32 %s110, 1
    %s112 = scalar_select %p109, %s110, %s111
    %p115 = pneg %p109
    %p116 = scmp.eq.s32.totalorder %s11, 3
    %p117 = por %p115, %p116
    %p118 = scmp.ne.s32.totalorder %s110, %s113
    %p119 = scmp.eq.s32.totalorder %s11, 0
    %p120 = por %p118, %p119
    %p121 = scmp.ne.s32.totalorder %s110, %s113
    %p122 = scmp.eq.s32.totalorder %s16, 3
    %p123 = por %p121, %p122
    %p124 = scmp.ne.s32.totalorder %s113, %s114
    %p125 = scmp.eq.s32.totalorder %s16, 0
    %p126 = por %p124, %p125
    %p127 = scmp.ne.s32.totalorder %s113, %s114
    %p128 = scmp.eq.s32.totalorder %s17, 3
    %p129 = por %p127, %p128
    %p131 = scmp.ne.s32.totalorder %s114, %s130
    %p132 = scmp.eq.s32.totalorder %s17, 0
    %p133 = por %p131, %p132
    %s135 = sadd.s32 %s134, 1
    %p138 = scmp.eq.s32.totalorder %s11, 3
    %p139 = scmp.ne.s32.totalorder %s134, %s136
    %p140 = scmp.eq.s32.totalorder %s11, 0
    %p141 = por %p139, %p140
    %p142 = scmp.ne.s32.totalorder %s134, %s136
    %p143 = scmp.eq.s32.totalorder %s16, 3
    %p144 = por %p142, %p143
    %p145 = scmp.ne.s32.totalorder %s136, %s137
    %p146 = scmp.eq.s32.totalorder %s16, 0
    %p147 = por %p145, %p146
    %p148 = scmp.ne.s32.totalorder %s136, %s137
    %p149 = scmp.eq.s32.totalorder %s17, 3
    %p150 = por %p148, %p149
    %p152 = scmp.ne.s32.totalorder %s137, %s151
    %p153 = scmp.eq.s32.totalorder %s17, 0
    %p154 = por %p152, %p153
    %s155 = ssub.s32 %s18, %s30
    %s156 = ssub.s32 %s19, %s26
    %s157 = sor.u32 %s155, %s156
    %p158 = scmp.eq.s32.totalorder %s157, 0
    %s160 = sadd.s32 %s159, 1
    %s161 = scalar_select %p158, %s159, %s160
    %p164 = pneg %p158
    %p165 = scmp.eq.s32.totalorder %s11, 3
    %p166 = por %p164, %p165
    %p167 = scmp.ne.s32.totalorder %s159, %s162
    %p168 = scmp.eq.s32.totalorder %s11, 0
    %p169 = por %p167, %p168
    %p170 = scmp.ne.s32.totalorder %s159, %s162
    %p171 = scmp.eq.s32.totalorder %s16, 3
    %p172 = por %p170, %p171
    %p173 = scmp.ne.s32.totalorder %s162, %s163
    %p174 = scmp.eq.s32.totalorder %s16, 0
    %p175 = por %p173, %p174
    %p176 = scmp.ne.s32.totalorder %s162, %s163
    %p177 = scmp.eq.s32.totalorder %s17, 3
    %p178 = por %p176, %p177
    %p180 = scmp.ne.s32.totalorder %s163, %s179
    %p181 = scmp.eq.s32.totalorder %s17, 0
    %p182 = por %p180, %p181
    %p183 = scmp.le.s32.totalorder 1, %s11
    %p184 = scmp.lt.s32.totalorder %s11, 5
    %p185 = pnand %p183, %p184
    %p186 = pneg %p185
    // Predicated region
    $region9: #{deconv_top_down.2} parent=5 // pred_check
      _
    $region10: #{deconv_top_down.2} parent=5 // pred_check_branch
      %188 = sbr.rel (%p185) target = $region12
    $region11: #{deconv_top_down.2} parent=5 // pred_region
      %s189 = ssub.s32 %s11, 1
      // Predicated region
      $region13: #{deconv_top_down.2} parent=11 // pred_check
        %p190 = pneg %p100
      $region14: #{deconv_top_down.2} parent=11 // pred_check_branch
        %192 = sbr.rel (%p190) target = $region16
      $region15: #{deconv_top_down.2} parent=11 // pred_region
        _
      $region16: #{deconv_top_down.2} parent=11 // pred_fallthru
        _
      // Predicated region
      $region17: #{deconv_top_down.2} parent=11 // pred_check
        %p193 = pneg %p147
      $region18: #{deconv_top_down.2} parent=11 // pred_check_branch
        %195 = sbr.rel (%p193) target = $region20
      $region19: #{deconv_top_down.2} parent=11 // pred_region
        _
      $region20: #{deconv_top_down.2} parent=11 // pred_fallthru
        _
    $region12: #{deconv_top_down.2} parent=5 // pred_fallthru
      _
    %p196 = scmp.lt.s32.totalorder %s11, 4
    // Predicated region
    $region21: #{deconv_top_down.2} parent=5 // pred_check
      %p197 = pneg %p196
    $region22: #{deconv_top_down.2} parent=5 // pred_check_branch
      %199 = sbr.rel (%p197) target = $region24
    $region23: #{deconv_top_down.2} parent=5 // pred_region
      // Predicated region
      $region25: #{deconv_top_down.2} parent=23 // pred_check
        %p200 = pneg %p45
      $region26: #{deconv_top_down.2} parent=23 // pred_check_branch
        %202 = sbr.rel (%p200) target = $region28
      $region27: #{deconv_top_down.2} parent=23 // pred_region
        %s203 = smul.u32 16, %s19
        %p204 = scmp.lt.s32.totalorder %s18, 3
        %s205 = scalar_select %p204, %s18, 3
        %p206 = scmp.lt.s32.totalorder %s203, 15
        %s207 = scalar_select %p206, %s203, 15
        %s208 = smul.addr %s205, 16
        %s209 = sadd.s32 %s207, %s208
        %s210 = smul.addr %s209, 4
        %s211 = scalar_lea.vmem %s0, %s210
        %s212 = smul.u32 16, %s19
      $region28: #{deconv_top_down.2} parent=23 // pred_fallthru
        _
      // Predicated region
      $region29: #{deconv_top_down.2} parent=23 // pred_check
        %p213 = pneg %p73
      $region30: #{deconv_top_down.2} parent=23 // pred_check_branch
        %215 = sbr.rel (%p213) target = $region32
      $region31: #{deconv_top_down.2} parent=23 // pred_region
        %s216 = smul.u32 16, %s19
        %p217 = scmp.lt.s32.totalorder %s18, 3
        %s218 = scalar_select %p217, %s18, 3
        %p219 = scmp.lt.s32.totalorder %s216, 15
        %s220 = scalar_select %p219, %s216, 15
        %s221 = smul.addr %s218, 16
        %s222 = sadd.s32 %s220, %s221
        %s223 = smul.addr %s222, 4
        %s224 = scalar_lea.vmem %s1, %s223
        %s225 = smul.u32 16, %s19
      $region32: #{deconv_top_down.2} parent=23 // pred_fallthru
        _
      // Predicated region
      $region33: #{deconv_top_down.2} parent=23 // pred_check
        %p226 = pneg %p120
      $region34: #{deconv_top_down.2} parent=23 // pred_check_branch
        %228 = sbr.rel (%p226) target = $region36
      $region35: #{deconv_top_down.2} parent=23 // pred_region
        %p229 = scmp.lt.s32.totalorder %s18, 3
        %s230 = scalar_select %p229, %s18, 3
        %s231 = smul.addr %s230, 4
        %s232 = smul.addr %s231, 4
        %s233 = scalar_lea.vmem %s3, %s232
      $region36: #{deconv_top_down.2} parent=23 // pred_fallthru
        _
    $region24: #{deconv_top_down.2} parent=5 // pred_fallthru
      _
    %p234 = scmp.le.s32.totalorder 1, %s11
    %p235 = scmp.lt.s32.totalorder %s11, 5
    %p236 = pnand %p234, %p235
    %p237 = pneg %p236
    // Predicated region
    $region37: #{deconv_top_down.2} parent=5 // pred_check
      _
    $region38: #{deconv_top_down.2} parent=5 // pred_check_branch
      %239 = sbr.rel (%p236) target = $region40
    $region39: #{deconv_top_down.2} parent=5 // pred_region
      %s240 = ssub.s32 %s11, 1
      %s241 = smul.u32 16, %s21
      %p242 = scmp.lt.s32.totalorder %s20, 3
      %s243 = scalar_select %p242, %s20, 3
      %p244 = scmp.lt.s32.totalorder %s241, 15
      %s245 = scalar_select %p244, %s241, 15
      %s246 = smul.addr %s243, 16
      %s247 = sadd.s32 %s245, %s246
      %s248 = smul.addr %s247, 4
      %s249 = scalar_lea.vmem %s0, %s248
      %p250 = pneg %p51
      %p251 = pneg %p48
      %s252 = smul.u32 16, %s21
      %p253 = scmp.lt.s32.totalorder %s20, 3
      %s254 = scalar_select %p253, %s20, 3
      %p255 = scmp.lt.s32.totalorder %s252, 15
      %s256 = scalar_select %p255, %s252, 15
      %s257 = smul.addr %s254, 16
      %s258 = sadd.s32 %s256, %s257
      %s259 = smul.addr %s258, 4
      %s260 = scalar_lea.vmem %s1, %s259
      %p261 = pneg %p79
      %p262 = pneg %p76
      %p263 = pneg %p100
      %p264 = pneg %p97
      %p265 = scmp.lt.s32.totalorder %s20, 3
      %s266 = scalar_select %p265, %s20, 3
      %s267 = smul.addr %s266, 4
      %s268 = smul.addr %s267, 4
      %s269 = scalar_lea.vmem %s3, %s268
      %p270 = pneg %p126
      %p271 = pneg %p123
      %p272 = pneg %p147
      %p273 = pneg %p144
      %p274 = pneg %p175
      %p275 = pneg %p172
      %s276 = smul.u32 16, %s21
      %p277 = scmp.lt.s32.totalorder %s20, 3
      %s278 = scalar_select %p277, %s20, 3
      %p279 = scmp.lt.s32.totalorder %s276, 15
      %s280 = scalar_select %p279, %s276, 15
      %s281 = smul.addr %s278, 16
      %s282 = sadd.s32 %s280, %s281
      %s283 = smul.addr %s282, 4
      %s284 = scalar_lea.vmem %s5, %s283
      %s285 = smul.u32 16, %s21
      %p286 = scmp.lt.s32.totalorder %s20, 3
      %s287 = scalar_select %p286, %s20, 3
      %p288 = scmp.lt.s32.totalorder %s285, 15
      %s289 = scalar_select %p288, %s285, 15
      %s290 = smul.addr %s287, 16
      %s291 = sadd.s32 %s289, %s290
      %s292 = smul.addr %s291, 4
      %s293 = scalar_lea.vmem %s0, %s292
      %s294 = smul.u32 16, %s21
      %s295 = smul.u32 16, %s21
      %p296 = scmp.lt.s32.totalorder %s20, 3
      %s297 = scalar_select %p296, %s20, 3
      %p298 = scmp.lt.s32.totalorder %s295, 15
      %s299 = scalar_select %p298, %s295, 15
      %s300 = smul.addr %s297, 16
      %s301 = sadd.s32 %s299, %s300
      %s302 = smul.addr %s301, 4
      %s303 = scalar_lea.vmem %s1, %s302
      %s304 = smul.u32 16, %s21
      %p305 = scmp.lt.s32.totalorder %s20, 3
      %s306 = scalar_select %p305, %s20, 3
      %s307 = smul.addr %s306, 4
      %s308 = smul.addr %s307, 4
      %s309 = scalar_lea.vmem %s3, %s308
      %s310 = smul.u32 16, %s21
      %p311 = scmp.lt.s32.totalorder %s20, 3
      %s312 = scalar_select %p311, %s20, 3
      %p313 = scmp.lt.s32.totalorder %s310, 15
      %s314 = scalar_select %p313, %s310, 15
      %s315 = smul.addr %s312, 16
      %s316 = sadd.s32 %s314, %s315
      %s317 = smul.addr %s316, 4
      %s318 = scalar_lea.vmem %s5, %s317
      %s319 = smul.u32 16, %s21
      %v321 = vld [vmem:[%s303] sm:$0xf]
      %v322 = vld [vmem:[%s303 + $0x4] sm:$0xf]
      %v323 = vld [vmem:[%s303 + $0x8] sm:$0xf]
      %v324 = vld [vmem:[%s303 + $0xc] sm:$0xf]
      %v325 = vld [vmem:[%s303 + $0x10] sm:$0xf]
      %v326 = vld [vmem:[%s303 + $0x14] sm:$0xf]
      %v327 = vld [vmem:[%s303 + $0x18] sm:$0xf]
      %v328 = vld [vmem:[%s303 + $0x1c] sm:$0xf]
      %v329 = vld [vmem:[%s303 + $0x20] sm:$0xf]
      %v330 = vld [vmem:[%s303 + $0x24] sm:$0xf]
      %v331 = vld [vmem:[%s303 + $0x28] sm:$0xf]
      %v332 = vld [vmem:[%s303 + $0x2c] sm:$0xf]
      %v333 = vld [vmem:[%s303 + $0x30] sm:$0xf]
      %v334 = vld [vmem:[%s303 + $0x34] sm:$0xf]
      %v335 = vld [vmem:[%s303 + $0x38] sm:$0xf]
      %v336 = vld [vmem:[%s303 + $0x3c] sm:$0xf]
      %v337 = vld [vmem:[%s309] sm:$0xf]
      %v338 = vld [vmem:[%s309 + $0x4] sm:$0xf]
      %v339 = vld [vmem:[%s309 + $0x8] sm:$0xf]
      %v340 = vld [vmem:[%s309 + $0xc] sm:$0xf]
      %v341 = vld [vmem:[%s293] sm:$0xf]
      %v342 = vld [vmem:[%s293 + $0x4] sm:$0xf]
      %v343 = vld [vmem:[%s293 + $0x8] sm:$0xf]
      %v344 = vld [vmem:[%s293 + $0xc] sm:$0xf]
      %v345 = vld [vmem:[%s293 + $0x10] sm:$0xf]
      %v346 = vld [vmem:[%s293 + $0x14] sm:$0xf]
      %v347 = vld [vmem:[%s293 + $0x18] sm:$0xf]
      %v348 = vld [vmem:[%s293 + $0x1c] sm:$0xf]
      %v349 = vld [vmem:[%s293 + $0x20] sm:$0xf]
      %v350 = vld [vmem:[%s293 + $0x24] sm:$0xf]
      %v351 = vld [vmem:[%s293 + $0x28] sm:$0xf]
      %v352 = vld [vmem:[%s293 + $0x2c] sm:$0xf]
      %v353 = vld [vmem:[%s293 + $0x30] sm:$0xf]
      %v354 = vld [vmem:[%s293 + $0x34] sm:$0xf]
      %v355 = vld [vmem:[%s293 + $0x38] sm:$0xf]
      %v356 = vld [vmem:[%s293 + $0x3c] sm:$0xf]
      %v357 = vld [vmem:[%s2] sm:$0x3]
      %v374 = vunpack.c.l.b16 %v341
      %v375 = vunpack.c.l.b16 %v342
      %v376 = vunpack.c.l.b16 %v343
      %v377 = vunpack.c.l.b16 %v344
      %v378 = vunpack.c.l.b16 %v345
      %v379 = vunpack.c.l.b16 %v346
      %v380 = vunpack.c.l.b16 %v347
      %v381 = vunpack.c.l.b16 %v348
      %v382 = vunpack.c.l.b16 %v349
      %v383 = vunpack.c.l.b16 %v350
      %v384 = vunpack.c.l.b16 %v351
      %v385 = vunpack.c.l.b16 %v352
      %v386 = vunpack.c.l.b16 %v353
      %v387 = vunpack.c.l.b16 %v354
      %v388 = vunpack.c.l.b16 %v355
      %v389 = vunpack.c.l.b16 %v356
      %v390 = vpack.c.b16 %v375, %v374
      %v391 = vpack.c.b16 %v377, %v376
      %v392 = vpack.c.b16 %v379, %v378
      %v393 = vpack.c.b16 %v381, %v380
      %v394 = vpack.c.b16 %v383, %v382
      %v395 = vpack.c.b16 %v385, %v384
      %v396 = vpack.c.b16 %v387, %v386
      %v397 = vpack.c.b16 %v389, %v388
      %vm398 = vcmask 31744
      %v400 = vsel %vm398, %v390, 0
      %v403 = vsel %vm398, %v391, 0
      %v406 = vsel %vm398, %v392, 0
      %v409 = vsel %vm398, %v393, 0
      %v412 = vsel %vm398, %v394, 0
      %v415 = vsel %vm398, %v395, 0
      %v418 = vsel %vm398, %v396, 0
      %v421 = vsel %vm398, %v397, 0
      %vm423 = vcmask 1041408
      %v425 = vsel %vm423, %v357, 0
      %427 = vmatpush.bf16.msra.mxu0 0
      %428 = vmatpush.bf16.msra.mxu0 0
      %429 = vmatpush.bf16.msra.mxu0 0
      %430 = vmatpush.bf16.msra.mxu0 0
      %431 = vmatpush.bf16.msra.mxu0 0
      %432 = vmatpush.bf16.msra.mxu0 0
      %433 = vmatpush.bf16.msra.mxu0 0
      %434 = vmatpush.bf16.msra.mxu0 %v425
      %435 = vmatmul.bf16.gmra.mxu0 %v400
      %v436 = vpop.f32.mrf.mxu0
      %v437 = vadd.f32 0.0, %v436
      %v438 = vpop.f32.mrf.mxu0
      %v439 = vadd.f32 0.0, %v438
      %440 = vmatmul.bf16.gmra.mxu0 %v403
      %v441 = vpop.f32.mrf.mxu0
      %v442 = vadd.f32 0.0, %v441
      %v443 = vpop.f32.mrf.mxu0
      %v444 = vadd.f32 0.0, %v443
      %445 = vmatmul.bf16.gmra.mxu0 %v406
      %v446 = vpop.f32.mrf.mxu0
      %v447 = vadd.f32 0.0, %v446
      %v448 = vpop.f32.mrf.mxu0
      %v449 = vadd.f32 0.0, %v448
      %450 = vmatmul.bf16.gmra.mxu0 %v409
      %v451 = vpop.f32.mrf.mxu0
      %v452 = vadd.f32 0.0, %v451
      %v453 = vpop.f32.mrf.mxu0
      %v454 = vadd.f32 0.0, %v453
      %455 = vmatmul.bf16.gmra.mxu0 %v412
      %v456 = vpop.f32.mrf.mxu0
      %v457 = vadd.f32 0.0, %v456
      %v458 = vpop.f32.mrf.mxu0
      %v459 = vadd.f32 0.0, %v458
      %460 = vmatmul.bf16.gmra.mxu0 %v415
      %v461 = vpop.f32.mrf.mxu0
      %v462 = vadd.f32 0.0, %v461
      %v463 = vpop.f32.mrf.mxu0
      %v464 = vadd.f32 0.0, %v463
      %465 = vmatmul.bf16.gmra.mxu0 %v418
      %v466 = vpop.f32.mrf.mxu0
      %v467 = vadd.f32 0.0, %v466
      %v468 = vpop.f32.mrf.mxu0
      %v469 = vadd.f32 0.0, %v468
      %470 = vmatmul.bf16.gmra.mxu0 %v421
      %v471 = vpop.f32.mrf.mxu0
      %v472 = vadd.f32 0.0, %v471
      %v473 = vpop.f32.mrf.mxu0
      %v474 = vadd.f32 0.0, %v473
      %475 = vdwg.mxu0
      %v492 = vunpack.c.l.b16 %v321
      %v493 = vunpack.c.l.b16 %v322
      %v494 = vunpack.c.l.b16 %v323
      %v495 = vunpack.c.l.b16 %v324
      %v496 = vunpack.c.l.b16 %v325
      %v497 = vunpack.c.l.b16 %v326
      %v498 = vunpack.c.l.b16 %v327
      %v499 = vunpack.c.l.b16 %v328
      %v500 = vunpack.c.l.b16 %v329
      %v501 = vunpack.c.l.b16 %v330
      %v502 = vunpack.c.l.b16 %v331
      %v503 = vunpack.c.l.b16 %v332
      %v504 = vunpack.c.l.b16 %v333
      %v505 = vunpack.c.l.b16 %v334
      %v506 = vunpack.c.l.b16 %v335
      %v507 = vunpack.c.l.b16 %v336
      %v508 = vpack.c.b16 %v493, %v492
      %v509 = vpack.c.b16 %v495, %v494
      %v510 = vpack.c.b16 %v497, %v496
      %v511 = vpack.c.b16 %v499, %v498
      %v512 = vpack.c.b16 %v501, %v500
      %v513 = vpack.c.b16 %v503, %v502
      %v514 = vpack.c.b16 %v505, %v504
      %v515 = vpack.c.b16 %v507, %v506
      %v520 = vunpack.c.l.b16 %v337
      %v521 = vunpack.c.l.b16 %v338
      %v522 = vunpack.c.l.b16 %v339
      %v523 = vunpack.c.l.b16 %v340
      %v524 = vpack.c.b16 %v521, %v520
      %v525 = vpack.c.b16 %v523, %v522
      %vm528 = vcmask 261120
      %v530 = vsel %vm528, %v508, 0
      %v533 = vsel %vm528, %v509, 0
      %v536 = vsel %vm528, %v510, 0
      %v539 = vsel %vm528, %v511, 0
      %v542 = vsel %vm528, %v512, 0
      %v545 = vsel %vm528, %v513, 0
      %v548 = vsel %vm528, %v514, 0
      %v551 = vsel %vm528, %v515, 0
      %553 = vmatpush.bf16.msra.mxu0 0
      %554 = vmatpush.bf16.msra.mxu0 0
      %555 = vmatpush.bf16.msra.mxu0 0
      %556 = vmatpush.bf16.msra.mxu0 0
      %557 = vmatpush.bf16.msra.mxu0 0
      %558 = vmatpush.bf16.msra.mxu0 0
      %559 = vmatpush.bf16.msra.mxu0 %v525
      %560 = vmatpush.bf16.msra.mxu0 %v524
      %561 = vmatmul.bf16.gmra.mxu0 %v530
      %v562 = vpop.f32.mrf.mxu0
      %v563 = vadd.f32 %v437, %v562
      %v564 = vpop.f32.mrf.mxu0
      %v565 = vadd.f32 %v439, %v564
      %566 = vmatmul.bf16.gmra.mxu0 %v533
      %v567 = vpop.f32.mrf.mxu0
      %v568 = vadd.f32 %v442, %v567
      %v569 = vpop.f32.mrf.mxu0
      %v570 = vadd.f32 %v444, %v569
      %571 = vmatmul.bf16.gmra.mxu0 %v536
      %v572 = vpop.f32.mrf.mxu0
      %v573 = vadd.f32 %v447, %v572
      %v574 = vpop.f32.mrf.mxu0
      %v575 = vadd.f32 %v449, %v574
      %576 = vmatmul.bf16.gmra.mxu0 %v539
      %v577 = vpop.f32.mrf.mxu0
      %v578 = vadd.f32 %v452, %v577
      %v579 = vpop.f32.mrf.mxu0
      %v580 = vadd.f32 %v454, %v579
      %581 = vmatmul.bf16.gmra.mxu0 %v542
      %v582 = vpop.f32.mrf.mxu0
      %v583 = vadd.f32 %v457, %v582
      %v584 = vpop.f32.mrf.mxu0
      %v585 = vadd.f32 %v459, %v584
      %586 = vmatmul.bf16.gmra.mxu0 %v545
      %v587 = vpop.f32.mrf.mxu0
      %v588 = vadd.f32 %v462, %v587
      %v589 = vpop.f32.mrf.mxu0
      %v590 = vadd.f32 %v464, %v589
      %591 = vmatmul.bf16.gmra.mxu0 %v548
      %v592 = vpop.f32.mrf.mxu0
      %v593 = vadd.f32 %v467, %v592
      %v594 = vpop.f32.mrf.mxu0
      %v595 = vadd.f32 %v469, %v594
      %596 = vmatmul.bf16.gmra.mxu0 %v551
      %v597 = vpop.f32.mrf.mxu0
      %v598 = vadd.f32 %v472, %v597
      %v599 = vpop.f32.mrf.mxu0
      %v600 = vadd.f32 %v474, %v599
      %601 = vdwg.mxu0
      %v602 = vld [vmem:[%s4] sm:$0x1]
      %v604 = vperm.slane %v602, 0
      %v606 = vadd.f32 %v563, %v604
      %v607 = vadd.f32 %v565, %v604
      %v608 = vadd.f32 %v568, %v604
      %v609 = vadd.f32 %v570, %v604
      %v610 = vadd.f32 %v573, %v604
      %v611 = vadd.f32 %v575, %v604
      %v612 = vadd.f32 %v578, %v604
      %v613 = vadd.f32 %v580, %v604
      %v614 = vadd.f32 %v583, %v604
      %v615 = vadd.f32 %v585, %v604
      %v616 = vadd.f32 %v588, %v604
      %v617 = vadd.f32 %v590, %v604
      %v618 = vadd.f32 %v593, %v604
      %v619 = vadd.f32 %v595, %v604
      %v620 = vadd.f32 %v598, %v604
      %v621 = vadd.f32 %v600, %v604
      %v622 = vpack.c.bf16 %v606, %v606
      %v623 = vpack.c.bf16 %v607, %v607
      %v624 = vpack.c.bf16 %v608, %v608
      %v625 = vpack.c.bf16 %v609, %v609
      %v626 = vpack.c.bf16 %v610, %v610
      %v627 = vpack.c.bf16 %v611, %v611
      %v628 = vpack.c.bf16 %v612, %v612
      %v629 = vpack.c.bf16 %v613, %v613
      %v630 = vpack.c.bf16 %v614, %v614
      %v631 = vpack.c.bf16 %v615, %v615
      %v632 = vpack.c.bf16 %v616, %v616
      %v633 = vpack.c.bf16 %v617, %v617
      %v634 = vpack.c.bf16 %v618, %v618
      %v635 = vpack.c.bf16 %v619, %v619
      %v636 = vpack.c.bf16 %v620, %v620
      %v637 = vpack.c.bf16 %v621, %v621
      %638 = vst [vmem:[%s318] sm:$0xf] %v622
      %639 = vst [vmem:[%s318 + $0x4] sm:$0xf] %v623
      %640 = vst [vmem:[%s318 + $0x8] sm:$0xf] %v624
      %641 = vst [vmem:[%s318 + $0xc] sm:$0xf] %v625
      %642 = vst [vmem:[%s318 + $0x10] sm:$0xf] %v626
      %643 = vst [vmem:[%s318 + $0x14] sm:$0xf] %v627
      %644 = vst [vmem:[%s318 + $0x18] sm:$0xf] %v628
      %645 = vst [vmem:[%s318 + $0x1c] sm:$0xf] %v629
      %646 = vst [vmem:[%s318 + $0x20] sm:$0xf] %v630
      %647 = vst [vmem:[%s318 + $0x24] sm:$0xf] %v631
      %648 = vst [vmem:[%s318 + $0x28] sm:$0xf] %v632
      %649 = vst [vmem:[%s318 + $0x2c] sm:$0xf] %v633
      %650 = vst [vmem:[%s318 + $0x30] sm:$0xf] %v634
      %651 = vst [vmem:[%s318 + $0x34] sm:$0xf] %v635
      %652 = vst [vmem:[%s318 + $0x38] sm:$0xf] %v636
      %653 = vst [vmem:[%s318 + $0x3c] sm:$0xf] %v637
      %s654 = smul.u32 16, %s21
      %p655 = scmp.lt.s32.totalorder %s20, 3
      %s656 = scalar_select %p655, %s20, 3
      %p657 = scmp.lt.s32.totalorder %s654, 15
      %s658 = scalar_select %p657, %s654, 15
      %s659 = smul.addr %s656, 16
      %s660 = sadd.s32 %s658, %s659
      %s661 = smul.addr %s660, 4
      %s662 = scalar_lea.vmem %s5, %s661
      // Predicated region
      $region41: #{deconv_top_down.2} parent=39 // pred_check
        %p663 = pneg %p172
      $region42: #{deconv_top_down.2} parent=39 // pred_check_branch
        %665 = sbr.rel (%p663) target = $region44
      $region43: #{deconv_top_down.2} parent=39 // pred_region
        %s666 = smul.u32 16, %s21
      $region44: #{deconv_top_down.2} parent=39 // pred_fallthru
        _
    $region40: #{deconv_top_down.2} parent=5 // pred_fallthru
      _
    %p667 = scmp.le.s32.totalorder 2, %s11
    // Predicated region
    $region45: #{deconv_top_down.2} parent=5 // pred_check
      %p668 = pneg %p667
    $region46: #{deconv_top_down.2} parent=5 // pred_check_branch
      %670 = sbr.rel (%p668) target = $region48
    $region47: #{deconv_top_down.2} parent=5 // pred_region
      %s671 = ssub.s32 %s11, 2
      // Predicated region
      $region49: #{deconv_top_down.2} parent=47 // pred_check
        %p672 = pneg %p178
      $region50: #{deconv_top_down.2} parent=47 // pred_check_branch
        %674 = sbr.rel (%p672) target = $region52
      $region51: #{deconv_top_down.2} parent=47 // pred_region
        %s675 = smul.u32 16, %s23
        %p676 = scmp.lt.s32.totalorder %s22, 3
        %s677 = scalar_select %p676, %s22, 3
        %p678 = scmp.lt.s32.totalorder %s675, 15
        %s679 = scalar_select %p678, %s675, 15
        %s680 = smul.addr %s677, 16
        %s681 = sadd.s32 %s679, %s680
        %s682 = smul.addr %s681, 4
        %s683 = scalar_lea.vmem %s5, %s682
      $region52: #{deconv_top_down.2} parent=47 // pred_fallthru
        _
    $region48: #{deconv_top_down.2} parent=5 // pred_fallthru
      _
  $region6: #{deconv_top_down.2} parent=0 // loop_footer
    %s15 = sadd.s32 1, %s11
  $region7: #{deconv_top_down.2} parent=0 // loop_footer_branch
    %10 = sbr.rel target = $region3
  $region8: #{deconv_top_down.2} parent=0 // loop_exit
    _

// kernel: deconv_top_down.3
$region0: #{deconv_top_down.3}
  #allocation0 [shape = 'u32[]', space=smem, size = 0x4, offset = 0x4, fixed_abs, tag = 'smem constant byte address 0x4 - core index']
  #allocation1 [shape = 'u32[72,128]{1,0:T(1,128)}', space=vmem, size = 0x9000, scoped, tag = 'internal scratch']
  %s0 = inlined_call_operand.vmem [shape: bf16[2,18,18,128], index: 0, kind: input, shape index: {}]
  %s1 = inlined_call_operand.vmem [shape: bf16[9,128,128], index: 1, kind: input, shape index: {}]
  %s2 = inlined_call_operand.vmem [shape: f32[1,128], index: 2, kind: input, shape index: {}]
  %s3 = inlined_call_operand.vmem [shape: f32[2,16,16,128], index: 3, kind: output, shape index: {}]
  %s4 = sld [smem:[#allocation0]]
  $region45: #{deconv_top_down.3} parent=0
    _
  %s6 = ssub.s32 1, %s4
  %s7 = scalar_select 0, %s6, %s4
  loop: start=0, step=1, limit=4
  $region2: #{deconv_top_down.3} parent=0 // loop_pre_header
    _
  $region3: #{deconv_top_down.3} parent=0 // loop_header
    %s9 = sphi 0, %s13
    %p10 = scmp.ge.s32.totalorder %s9, 4
    %s19 = sphi 0, %s21
    %s22 = sphi 0, %s19
    %s23 = sphi 0, %s22
    %s39 = sphi 0, %s23
    %s43 = sphi 0, %s43
    %s45 = sphi 0, %s43
    %s46 = sphi 0, %s45
    %s60 = sphi 0, %s46
    %s64 = sphi 0, %s64
    %s66 = sphi 0, %s64
    %s67 = sphi 0, %s66
    %s81 = sphi 0, %s67
    %s87 = sphi 0, %s89
    %s90 = sphi 0, %s87
    %s91 = sphi 0, %s90
    %s107 = sphi 0, %s91
  $region4: #{deconv_top_down.3} parent=0 // loop_header_branch
    %12 = sbr.rel (%p10) target = $region8
  $region5: #{deconv_top_down.3} parent=0 // loop_body
    %s14 = ssub.s32 %s9, 1
    %s15 = ssub.s32 %s9, 2
    %s16 = sadd.s32 %s9, 1
    %s17 = ssub.s32 %s9, %s16
    %p18 = scmp.eq.s32.totalorder %s17, 0
    %s20 = sadd.s32 %s19, 1
    %s21 = scalar_select %p18, %s19, %s20
    %p24 = pneg %p18
    %p25 = scmp.eq.s32.totalorder %s9, 1
    %p26 = por %p24, %p25
    %p27 = scmp.ne.s32.totalorder %s19, %s22
    %p28 = scmp.eq.s32.totalorder %s9, 0
    %p29 = por %p27, %p28
    %p30 = scmp.ne.s32.totalorder %s19, %s22
    %p31 = scmp.eq.s32.totalorder %s14, 1
    %p32 = por %p30, %p31
    %p33 = scmp.ne.s32.totalorder %s22, %s23
    %p34 = scmp.eq.s32.totalorder %s14, 0
    %p35 = por %p33, %p34
    %p36 = scmp.ne.s32.totalorder %s22, %s23
    %p37 = scmp.eq.s32.totalorder %s15, 1
    %p38 = por %p36, %p37
    %p40 = scmp.ne.s32.totalorder %s23, %s39
    %p41 = scmp.eq.s32.totalorder %s15, 0
    %p42 = por %p40, %p41
    %s44 = sadd.s32 %s43, 1
    %p47 = scmp.eq.s32.totalorder %s9, 1
    %p48 = scmp.ne.s32.totalorder %s43, %s45
    %p49 = scmp.eq.s32.totalorder %s9, 0
    %p50 = por %p48, %p49
    %p51 = scmp.ne.s32.totalorder %s43, %s45
    %p52 = scmp.eq.s32.totalorder %s14, 1
    %p53 = por %p51, %p52
    %p54 = scmp.ne.s32.totalorder %s45, %s46
    %p55 = scmp.eq.s32.totalorder %s14, 0
    %p56 = por %p54, %p55
    %p57 = scmp.ne.s32.totalorder %s45, %s46
    %p58 = scmp.eq.s32.totalorder %s15, 1
    %p59 = por %p57, %p58
    %p61 = scmp.ne.s32.totalorder %s46, %s60
    %p62 = scmp.eq.s32.totalorder %s15, 0
    %p63 = por %p61, %p62
    %s65 = sadd.s32 %s64, 1
    %p68 = scmp.eq.s32.totalorder %s9, 1
    %p69 = scmp.ne.s32.totalorder %s64, %s66
    %p70 = scmp.eq.s32.totalorder %s9, 0
    %p71 = por %p69, %p70
    %p72 = scmp.ne.s32.totalorder %s64, %s66
    %p73 = scmp.eq.s32.totalorder %s14, 1
    %p74 = por %p72, %p73
    %p75 = scmp.ne.s32.totalorder %s66, %s67
    %p76 = scmp.eq.s32.totalorder %s14, 0
    %p77 = por %p75, %p76
    %p78 = scmp.ne.s32.totalorder %s66, %s67
    %p79 = scmp.eq.s32.totalorder %s15, 1
    %p80 = por %p78, %p79
    %p82 = scmp.ne.s32.totalorder %s67, %s81
    %p83 = scmp.eq.s32.totalorder %s15, 0
    %p84 = por %p82, %p83
    %s85 = ssub.s32 %s9, %s16
    %p86 = scmp.eq.s32.totalorder %s85, 0
    %s88 = sadd.s32 %s87, 1
    %s89 = scalar_select %p86, %s87, %s88
    %p92 = pneg %p86
    %p93 = scmp.eq.s32.totalorder %s9, 1
    %p94 = por %p92, %p93
    %p95 = scmp.ne.s32.totalorder %s87, %s90
    %p96 = scmp.eq.s32.totalorder %s9, 0
    %p97 = por %p95, %p96
    %p98 = scmp.ne.s32.totalorder %s87, %s90
    %p99 = scmp.eq.s32.totalorder %s14, 1
    %p100 = por %p98, %p99
    %p101 = scmp.ne.s32.totalorder %s90, %s91
    %p102 = scmp.eq.s32.totalorder %s14, 0
    %p103 = por %p101, %p102
    %p104 = scmp.ne.s32.totalorder %s90, %s91
    %p105 = scmp.eq.s32.totalorder %s15, 1
    %p106 = por %p104, %p105
    %p108 = scmp.ne.s32.totalorder %s91, %s107
    %p109 = scmp.eq.s32.totalorder %s15, 0
    %p110 = por %p108, %p109
    %p111 = scmp.le.s32.totalorder 1, %s9
    %p112 = scmp.lt.s32.totalorder %s9, 3
    %p113 = pnand %p111, %p112
    %p114 = pneg %p113
    // Predicated region
    $region9: #{deconv_top_down.3} parent=5 // pred_check
      _
    $region10: #{deconv_top_down.3} parent=5 // pred_check_branch
      %116 = sbr.rel (%p113) target = $region12
    $region11: #{deconv_top_down.3} parent=5 // pred_region
      %s117 = ssub.s32 %s9, 1
      // Predicated region
      $region13: #{deconv_top_down.3} parent=11 // pred_check
        %p118 = pneg %p56
      $region14: #{deconv_top_down.3} parent=11 // pred_check_branch
        %120 = sbr.rel (%p118) target = $region16
      $region15: #{deconv_top_down.3} parent=11 // pred_region
        _
      $region16: #{deconv_top_down.3} parent=11 // pred_fallthru
        _
      // Predicated region
      $region17: #{deconv_top_down.3} parent=11 // pred_check
        %p121 = pneg %p77
      $region18: #{deconv_top_down.3} parent=11 // pred_check_branch
        %123 = sbr.rel (%p121) target = $region20
      $region19: #{deconv_top_down.3} parent=11 // pred_region
        _
      $region20: #{deconv_top_down.3} parent=11 // pred_fallthru
        _
    $region12: #{deconv_top_down.3} parent=5 // pred_fallthru
      _
    %p124 = scmp.lt.s32.totalorder %s9, 2
    // Predicated region
    $region21: #{deconv_top_down.3} parent=5 // pred_check
      %p125 = pneg %p124
    $region22: #{deconv_top_down.3} parent=5 // pred_check_branch
      %127 = sbr.rel (%p125) target = $region24
    $region23: #{deconv_top_down.3} parent=5 // pred_region
      // Predicated region
      $region25: #{deconv_top_down.3} parent=23 // pred_check
        %p128 = pneg %p29
      $region26: #{deconv_top_down.3} parent=23 // pred_check_branch
        %130 = sbr.rel (%p128) target = $region28
      $region27: #{deconv_top_down.3} parent=23 // pred_region
        %p131 = scmp.lt.s32.totalorder %s9, 1
        %s132 = scalar_select %p131, %s9, 1
        %s133 = smul.addr %s132, 54
        %s134 = smul.addr %s133, 4
        %s135 = scalar_lea.vmem %s0, %s134
      $region28: #{deconv_top_down.3} parent=23 // pred_fallthru
        _
    $region24: #{deconv_top_down.3} parent=5 // pred_fallthru
      _
    %p136 = scmp.le.s32.totalorder 1, %s9
    %p137 = scmp.lt.s32.totalorder %s9, 3
    %p138 = pnand %p136, %p137
    %p139 = pneg %p138
    // Predicated region
    $region29: #{deconv_top_down.3} parent=5 // pred_check
      _
    $region30: #{deconv_top_down.3} parent=5 // pred_check_branch
      %141 = sbr.rel (%p138) target = $region32
    $region31: #{deconv_top_down.3} parent=5 // pred_region
      %s142 = ssub.s32 %s9, 1
      %p143 = scmp.lt.s32.totalorder %s14, 1
      %s144 = scalar_select %p143, %s14, 1
      %s145 = smul.addr %s144, 54
      %s146 = smul.addr %s145, 4
      %s147 = scalar_lea.vmem %s0, %s146
      %p148 = pneg %p35
      %p149 = pneg %p32
      %p150 = pneg %p56
      %p151 = pneg %p53
      %p152 = pneg %p77
      %p153 = pneg %p74
      %p154 = pneg %p103
      %p155 = pneg %p100
      %p156 = scmp.lt.s32.totalorder %s14, 1
      %s157 = scalar_select %p156, %s14, 1
      %s158 = smul.addr %s157, 32
      %s159 = smul.addr %s158, 8
      %s160 = scalar_lea.vmem %s3, %s159
      %p161 = scmp.lt.s32.totalorder %s14, 1
      %s162 = scalar_select %p161, %s14, 1
      %s163 = smul.addr %s162, 54
      %s164 = smul.addr %s163, 4
      %s165 = scalar_lea.vmem %s0, %s164
      %p166 = scmp.lt.s32.totalorder %s14, 1
      %s167 = scalar_select %p166, %s14, 1
      %s168 = smul.addr %s167, 32
      %s169 = smul.addr %s168, 8
      %s170 = scalar_lea.vmem %s3, %s169
      %v171 = vld [vmem:[%s165] sm:$0xf]
      %v172 = vld [vmem:[%s165 + $0x4] sm:$0xf]
      %v173 = vld [vmem:[%s165 + $0xc] sm:$0xf]
      %v174 = vld [vmem:[%s165 + $0x10] sm:$0xf]
      %v175 = vld [vmem:[%s165 + $0x18] sm:$0xf]
      %v176 = vld [vmem:[%s165 + $0x1c] sm:$0xf]
      %v177 = vld [vmem:[%s165 + $0x24] sm:$0xf]
      %v178 = vld [vmem:[%s165 + $0x28] sm:$0xf]
      %v179 = vld [vmem:[%s165 + $0x30] sm:$0xf]
      %v180 = vld [vmem:[%s165 + $0x34] sm:$0xf]
      %v181 = vld [vmem:[%s165 + $0x3c] sm:$0xf]
      %v182 = vld [vmem:[%s165 + $0x40] sm:$0xf]
      %v183 = vld [vmem:[%s165 + $0x48] sm:$0xf]
      %v184 = vld [vmem:[%s165 + $0x4c] sm:$0xf]
      %v185 = vld [vmem:[%s165 + $0x54] sm:$0xf]
      %v186 = vld [vmem:[%s165 + $0x58] sm:$0xf]
      %v187 = vld [vmem:[%s165 + $0x60] sm:$0xf]
      %v188 = vld [vmem:[%s165 + $0x64] sm:$0xf]
      %v189 = vld [vmem:[%s165 + $0x6c] sm:$0xf]
      %v190 = vld [vmem:[%s165 + $0x70] sm:$0xf]
      %v191 = vld [vmem:[%s165 + $0x78] sm:$0xf]
      %v192 = vld [vmem:[%s165 + $0x7c] sm:$0xf]
      %v193 = vld [vmem:[%s165 + $0x84] sm:$0xf]
      %v194 = vld [vmem:[%s165 + $0x88] sm:$0xf]
      %v195 = vld [vmem:[%s165 + $0x90] sm:$0xf]
      %v196 = vld [vmem:[%s165 + $0x94] sm:$0xf]
      %v197 = vld [vmem:[%s165 + $0x9c] sm:$0xf]
      %v198 = vld [vmem:[%s165 + $0xa0] sm:$0xf]
      %v199 = vld [vmem:[%s165 + $0xa8] sm:$0xf]
      %v200 = vld [vmem:[%s165 + $0xac] sm:$0xf]
      %v201 = vld [vmem:[%s165 + $0xb4] sm:$0xf]
      %v202 = vld [vmem:[%s165 + $0xb8] sm:$0xf]
      %v203 = vld [vmem:[%s1] sm:$0xf]
      %v204 = vld [vmem:[%s1 + $0x4] sm:$0xf]
      %v205 = vld [vmem:[%s1 + $0x8] sm:$0xf]
      %v206 = vld [vmem:[%s1 + $0xc] sm:$0xf]
      %v207 = vld [vmem:[%s1 + $0x10] sm:$0xf]
      %v208 = vld [vmem:[%s1 + $0x14] sm:$0xf]
      %v209 = vld [vmem:[%s1 + $0x18] sm:$0xf]
      %v210 = vld [vmem:[%s1 + $0x1c] sm:$0xf]
      %v211 = vld [vmem:[%s1 + $0x20] sm:$0xf]
      %v212 = vld [vmem:[%s1 + $0x24] sm:$0xf]
      %v213 = vld [vmem:[%s1 + $0x28] sm:$0xf]
      %v214 = vld [vmem:[%s1 + $0x2c] sm:$0xf]
      %v215 = vld [vmem:[%s1 + $0x30] sm:$0xf]
      %v216 = vld [vmem:[%s1 + $0x34] sm:$0xf]
      %v217 = vld [vmem:[%s1 + $0x38] sm:$0xf]
      %v218 = vld [vmem:[%s1 + $0x3c] sm:$0xf]
      %v219 = vld [vmem:[%s165 + $0x8] sm:$0x1]
      %v220 = vld [vmem:[%s165 + $0x14] sm:$0x1]
      %v221 = vld [vmem:[%s165 + $0x20] sm:$0x1]
      %v222 = vld [vmem:[%s165 + $0x2c] sm:$0x1]
      %v223 = vld [vmem:[%s165 + $0x38] sm:$0x1]
      %v224 = vld [vmem:[%s165 + $0x44] sm:$0x1]
      %v225 = vld [vmem:[%s165 + $0x50] sm:$0x1]
      %v226 = vld [vmem:[%s165 + $0x5c] sm:$0x1]
      %v227 = vld [vmem:[%s165 + $0x68] sm:$0x1]
      %v228 = vld [vmem:[%s165 + $0x74] sm:$0x1]
      %v229 = vld [vmem:[%s165 + $0x80] sm:$0x1]
      %v230 = vld [vmem:[%s165 + $0x8c] sm:$0x1]
      %v231 = vld [vmem:[%s165 + $0x98] sm:$0x1]
      %v232 = vld [vmem:[%s165 + $0xa4] sm:$0x1]
      %v233 = vld [vmem:[%s165 + $0xb0] sm:$0x1]
      %v234 = vld [vmem:[%s165 + $0xbc] sm:$0x1]
      %vm235 = vsmask.f32 3328
      %vm236 = vsmask.f32 7440
      %vm237 = vmor %vm235, %vm236
      %v239 = vshrl.u32 %v171, 16
      %v241 = vrot.slane %v239, 4
      %v242 = vshll.u32 %v171, 16
      %v244 = vrot.slane %v242, 5
      %v245 = vor.u32 %v241, %v244
      %v246 = vrot.slane %v245, 4
      %v248 = vshll.u32 %v172, 16
      %v250 = vrot.slane %v248, 5
      %v251 = vsel %vm237, %v246, %v250
      %v252 = vshrl.u32 %v172, 16
      %v254 = vrot.slane %v252, 4
      %v255 = vor.u32 %v254, %v250
      %v256 = vrot.slane %v255, 4
      %v258 = vshll.u32 %v219, 16
      %v260 = vrot.slane %v258, 5
      %v261 = vsel %vm237, %v256, %v260
      %v263 = vshrl.u32 %v173, 16
      %v265 = vrot.slane %v263, 4
      %v266 = vshll.u32 %v173, 16
      %v268 = vrot.slane %v266, 5
      %v269 = vor.u32 %v265, %v268
      %v270 = vrot.slane %v269, 4
      %v272 = vshll.u32 %v174, 16
      %v274 = vrot.slane %v272, 5
      %v275 = vsel %vm237, %v270, %v274
      %v276 = vshrl.u32 %v174, 16
      %v278 = vrot.slane %v276, 4
      %v279 = vor.u32 %v278, %v274
      %v280 = vrot.slane %v279, 4
      %v282 = vshll.u32 %v220, 16
      %v284 = vrot.slane %v282, 5
      %v285 = vsel %vm237, %v280, %v284
      %v287 = vshrl.u32 %v175, 16
      %v289 = vrot.slane %v287, 4
      %v290 = vshll.u32 %v175, 16
      %v292 = vrot.slane %v290, 5
      %v293 = vor.u32 %v289, %v292
      %v294 = vrot.slane %v293, 4
      %v296 = vshll.u32 %v176, 16
      %v298 = vrot.slane %v296, 5
      %v299 = vsel %vm237, %v294, %v298
      %v300 = vshrl.u32 %v176, 16
      %v302 = vrot.slane %v300, 4
      %v303 = vor.u32 %v302, %v298
      %v304 = vrot.slane %v303, 4
      %v306 = vshll.u32 %v221, 16
      %v308 = vrot.slane %v306, 5
      %v309 = vsel %vm237, %v304, %v308
      %v311 = vshrl.u32 %v177, 16
      %v313 = vrot.slane %v311, 4
      %v314 = vshll.u32 %v177, 16
      %v316 = vrot.slane %v314, 5
      %v317 = vor.u32 %v313, %v316
      %v318 = vrot.slane %v317, 4
      %v320 = vshll.u32 %v178, 16
      %v322 = vrot.slane %v320, 5
      %v323 = vsel %vm237, %v318, %v322
      %v324 = vshrl.u32 %v178, 16
      %v326 = vrot.slane %v324, 4
      %v327 = vor.u32 %v326, %v322
      %v328 = vrot.slane %v327, 4
      %v330 = vshll.u32 %v222, 16
      %v332 = vrot.slane %v330, 5
      %v333 = vsel %vm237, %v328, %v332
      %v335 = vshrl.u32 %v179, 16
      %v337 = vrot.slane %v335, 4
      %v338 = vshll.u32 %v179, 16
      %v340 = vrot.slane %v338, 5
      %v341 = vor.u32 %v337, %v340
      %v342 = vrot.slane %v341, 4
      %v344 = vshll.u32 %v180, 16
      %v346 = vrot.slane %v344, 5
      %v347 = vsel %vm237, %v342, %v346
      %v348 = vshrl.u32 %v180, 16
      %v350 = vrot.slane %v348, 4
      %v351 = vor.u32 %v350, %v346
      %v352 = vrot.slane %v351, 4
      %v354 = vshll.u32 %v223, 16
      %v356 = vrot.slane %v354, 5
      %v357 = vsel %vm237, %v352, %v356
      %v359 = vshrl.u32 %v181, 16
      %v361 = vrot.slane %v359, 4
      %v362 = vshll.u32 %v181, 16
      %v364 = vrot.slane %v362, 5
      %v365 = vor.u32 %v361, %v364
      %v366 = vrot.slane %v365, 4
      %v368 = vshll.u32 %v182, 16
      %v370 = vrot.slane %v368, 5
      %v371 = vsel %vm237, %v366, %v370
      %v372 = vshrl.u32 %v182, 16
      %v374 = vrot.slane %v372, 4
      %v375 = vor.u32 %v374, %v370
      %v376 = vrot.slane %v375, 4
      %v378 = vshll.u32 %v224, 16
      %v380 = vrot.slane %v378, 5
      %v381 = vsel %vm237, %v376, %v380
      %v383 = vshrl.u32 %v183, 16
      %v385 = vrot.slane %v383, 4
      %v386 = vshll.u32 %v183, 16
      %v388 = vrot.slane %v386, 5
      %v389 = vor.u32 %v385, %v388
      %v390 = vrot.slane %v389, 4
      %v392 = vshll.u32 %v184, 16
      %v394 = vrot.slane %v392, 5
      %v395 = vsel %vm237, %v390, %v394
      %v396 = vshrl.u32 %v184, 16
      %v398 = vrot.slane %v396, 4
      %v399 = vor.u32 %v398, %v394
      %v400 = vrot.slane %v399, 4
      %v402 = vshll.u32 %v225, 16
      %v404 = vrot.slane %v402, 5
      %v405 = vsel %vm237, %v400, %v404
      %v407 = vshrl.u32 %v185, 16
      %v409 = vrot.slane %v407, 4
      %v410 = vshll.u32 %v185, 16
      %v412 = vrot.slane %v410, 5
      %v413 = vor.u32 %v409, %v412
      %v414 = vrot.slane %v413, 4
      %v416 = vshll.u32 %v186, 16
      %v418 = vrot.slane %v416, 5
      %v419 = vsel %vm237, %v414, %v418
      %v420 = vshrl.u32 %v186, 16
      %v422 = vrot.slane %v420, 4
      %v423 = vor.u32 %v422, %v418
      %v424 = vrot.slane %v423, 4
      %v426 = vshll.u32 %v226, 16
      %v428 = vrot.slane %v426, 5
      %v429 = vsel %vm237, %v424, %v428
      %v431 = vshrl.u32 %v187, 16
      %v433 = vrot.slane %v431, 4
      %v434 = vshll.u32 %v187, 16
      %v436 = vrot.slane %v434, 5
      %v437 = vor.u32 %v433, %v436
      %v438 = vrot.slane %v437, 4
      %v440 = vshll.u32 %v188, 16
      %v442 = vrot.slane %v440, 5
      %v443 = vsel %vm237, %v438, %v442
      %v444 = vshrl.u32 %v188, 16
      %v446 = vrot.slane %v444, 4
      %v447 = vor.u32 %v446, %v442
      %v448 = vrot.slane %v447, 4
      %v450 = vshll.u32 %v227, 16
      %v452 = vrot.slane %v450, 5
      %v453 = vsel %vm237, %v448, %v452
      %v455 = vshrl.u32 %v189, 16
      %v457 = vrot.slane %v455, 4
      %v458 = vshll.u32 %v189, 16
      %v460 = vrot.slane %v458, 5
      %v461 = vor.u32 %v457, %v460
      %v462 = vrot.slane %v461, 4
      %v464 = vshll.u32 %v190, 16
      %v466 = vrot.slane %v464, 5
      %v467 = vsel %vm237, %v462, %v466
      %v468 = vshrl.u32 %v190, 16
      %v470 = vrot.slane %v468, 4
      %v471 = vor.u32 %v470, %v466
      %v472 = vrot.slane %v471, 4
      %v474 = vshll.u32 %v228, 16
      %v476 = vrot.slane %v474, 5
      %v477 = vsel %vm237, %v472, %v476
      %v479 = vshrl.u32 %v191, 16
      %v481 = vrot.slane %v479, 4
      %v482 = vshll.u32 %v191, 16
      %v484 = vrot.slane %v482, 5
      %v485 = vor.u32 %v481, %v484
      %v486 = vrot.slane %v485, 4
      %v488 = vshll.u32 %v192, 16
      %v490 = vrot.slane %v488, 5
      %v491 = vsel %vm237, %v486, %v490
      %v492 = vshrl.u32 %v192, 16
      %v494 = vrot.slane %v492, 4
      %v495 = vor.u32 %v494, %v490
      %v496 = vrot.slane %v495, 4
      %v498 = vshll.u32 %v229, 16
      %v500 = vrot.slane %v498, 5
      %v501 = vsel %vm237, %v496, %v500
      %v503 = vshrl.u32 %v193, 16
      %v505 = vrot.slane %v503, 4
      %v506 = vshll.u32 %v193, 16
      %v508 = vrot.slane %v506, 5
      %v509 = vor.u32 %v505, %v508
      %v510 = vrot.slane %v509, 4
      %v512 = vshll.u32 %v194, 16
      %v514 = vrot.slane %v512, 5
      %v515 = vsel %vm237, %v510, %v514
      %v516 = vshrl.u32 %v194, 16
      %v518 = vrot.slane %v516, 4
      %v519 = vor.u32 %v518, %v514
      %v520 = vrot.slane %v519, 4
      %v522 = vshll.u32 %v230, 16
      %v524 = vrot.slane %v522, 5
      %v525 = vsel %vm237, %v520, %v524
      %v527 = vshrl.u32 %v195, 16
      %v529 = vrot.slane %v527, 4
      %v530 = vshll.u32 %v195, 16
      %v532 = vrot.slane %v530, 5
      %v533 = vor.u32 %v529, %v532
      %v534 = vrot.slane %v533, 4
      %v536 = vshll.u32 %v196, 16
      %v538 = vrot.slane %v536, 5
      %v539 = vsel %vm237, %v534, %v538
      %v540 = vshrl.u32 %v196, 16
      %v542 = vrot.slane %v540, 4
      %v543 = vor.u32 %v542, %v538
      %v544 = vrot.slane %v543, 4
      %v546 = vshll.u32 %v231, 16
      %v548 = vrot.slane %v546, 5
      %v549 = vsel %vm237, %v544, %v548
      %v551 = vshrl.u32 %v197, 16
      %v553 = vrot.slane %v551, 4
      %v554 = vshll.u32 %v197, 16
      %v556 = vrot.slane %v554, 5
      %v557 = vor.u32 %v553, %v556
      %v558 = vrot.slane %v557, 4
      %v560 = vshll.u32 %v198, 16
      %v562 = vrot.slane %v560, 5
      %v563 = vsel %vm237, %v558, %v562
      %v564 = vshrl.u32 %v198, 16
      %v566 = vrot.slane %v564, 4
      %v567 = vor.u32 %v566, %v562
      %v568 = vrot.slane %v567, 4
      %v570 = vshll.u32 %v232, 16
      %v572 = vrot.slane %v570, 5
      %v573 = vsel %vm237, %v568, %v572
      %v575 = vshrl.u32 %v199, 16
      %v577 = vrot.slane %v575, 4
      %v578 = vshll.u32 %v199, 16
      %v580 = vrot.slane %v578, 5
      %v581 = vor.u32 %v577, %v580
      %v582 = vrot.slane %v581, 4
      %v584 = vshll.u32 %v200, 16
      %v586 = vrot.slane %v584, 5
      %v587 = vsel %vm237, %v582, %v586
      %v588 = vshrl.u32 %v200, 16
      %v590 = vrot.slane %v588, 4
      %v591 = vor.u32 %v590, %v586
      %v592 = vrot.slane %v591, 4
      %v594 = vshll.u32 %v233, 16
      %v596 = vrot.slane %v594, 5
      %v597 = vsel %vm237, %v592, %v596
      %v599 = vshrl.u32 %v201, 16
      %v601 = vrot.slane %v599, 4
      %v602 = vshll.u32 %v201, 16
      %v604 = vrot.slane %v602, 5
      %v605 = vor.u32 %v601, %v604
      %v606 = vrot.slane %v605, 4
      %v608 = vshll.u32 %v202, 16
      %v610 = vrot.slane %v608, 5
      %v611 = vsel %vm237, %v606, %v610
      %v612 = vshrl.u32 %v202, 16
      %v614 = vrot.slane %v612, 4
      %v615 = vor.u32 %v614, %v610
      %v616 = vrot.slane %v615, 4
      %v618 = vshll.u32 %v234, 16
      %v620 = vrot.slane %v618, 5
      %v621 = vsel %vm237, %v616, %v620
      %s622 = scalar_lea.vmem %s1, 64
      %v623 = vld [vmem:[%s622] sm:$0xf]
      %v624 = vld [vmem:[%s622 + $0x4] sm:$0xf]
      %v625 = vld [vmem:[%s622 + $0x8] sm:$0xf]
      %v626 = vld [vmem:[%s622 + $0xc] sm:$0xf]
      %v627 = vld [vmem:[%s622 + $0x10] sm:$0xf]
      %v628 = vld [vmem:[%s622 + $0x14] sm:$0xf]
      %v629 = vld [vmem:[%s622 + $0x18] sm:$0xf]
      %v630 = vld [vmem:[%s622 + $0x1c] sm:$0xf]
      %v631 = vld [vmem:[%s622 + $0x20] sm:$0xf]
      %v632 = vld [vmem:[%s622 + $0x24] sm:$0xf]
      %v633 = vld [vmem:[%s622 + $0x28] sm:$0xf]
      %v634 = vld [vmem:[%s622 + $0x2c] sm:$0xf]
      %v635 = vld [vmem:[%s622 + $0x30] sm:$0xf]
      %v636 = vld [vmem:[%s622 + $0x34] sm:$0xf]
      %v637 = vld [vmem:[%s622 + $0x38] sm:$0xf]
      %v638 = vld [vmem:[%s622 + $0x3c] sm:$0xf]
      %v639 = vunpack.c.l.b16 %v251
      %v640 = vunpack.c.l.b16 %v261
      %v641 = vunpack.c.l.b16 %v275
      %v642 = vunpack.c.l.b16 %v285
      %v643 = vunpack.c.l.b16 %v299
      %v644 = vunpack.c.l.b16 %v309
      %v645 = vunpack.c.l.b16 %v323
      %v646 = vunpack.c.l.b16 %v333
      %v647 = vunpack.c.l.b16 %v347
      %v648 = vunpack.c.l.b16 %v357
      %v649 = vunpack.c.l.b16 %v371
      %v650 = vunpack.c.l.b16 %v381
      %v651 = vunpack.c.l.b16 %v395
      %v652 = vunpack.c.l.b16 %v405
      %v653 = vunpack.c.l.b16 %v419
      %v654 = vunpack.c.l.b16 %v429
      %v655 = vunpack.c.l.b16 %v443
      %v656 = vunpack.c.l.b16 %v453
      %v657 = vunpack.c.l.b16 %v467
      %v658 = vunpack.c.l.b16 %v477
      %v659 = vunpack.c.l.b16 %v491
      %v660 = vunpack.c.l.b16 %v501
      %v661 = vunpack.c.l.b16 %v515
      %v662 = vunpack.c.l.b16 %v525
      %v663 = vunpack.c.l.b16 %v539
      %v664 = vunpack.c.l.b16 %v549
      %v665 = vunpack.c.l.b16 %v563
      %v666 = vunpack.c.l.b16 %v573
      %v667 = vunpack.c.l.b16 %v587
      %v668 = vunpack.c.l.b16 %v597
      %v669 = vunpack.c.l.b16 %v611
      %v670 = vunpack.c.l.b16 %v621
      %v671 = vpack.c.b16 %v640, %v639
      %v672 = vpack.c.b16 %v642, %v641
      %v673 = vpack.c.b16 %v644, %v643
      %v674 = vpack.c.b16 %v646, %v645
      %v675 = vpack.c.b16 %v648, %v647
      %v676 = vpack.c.b16 %v650, %v649
      %v677 = vpack.c.b16 %v652, %v651
      %v678 = vpack.c.b16 %v654, %v653
      %v679 = vpack.c.b16 %v656, %v655
      %v680 = vpack.c.b16 %v658, %v657
      %v681 = vpack.c.b16 %v660, %v659
      %v682 = vpack.c.b16 %v662, %v661
      %v683 = vpack.c.b16 %v664, %v663
      %v684 = vpack.c.b16 %v666, %v665
      %v685 = vpack.c.b16 %v668, %v667
      %v686 = vpack.c.b16 %v670, %v669
      %v719 = vunpack.c.l.b16 %v623
      %v720 = vunpack.c.l.b16 %v624
      %v721 = vunpack.c.l.b16 %v625
      %v722 = vunpack.c.l.b16 %v626
      %v723 = vunpack.c.l.b16 %v627
      %v724 = vunpack.c.l.b16 %v628
      %v725 = vunpack.c.l.b16 %v629
      %v726 = vunpack.c.l.b16 %v630
      %v727 = vunpack.c.l.b16 %v631
      %v728 = vunpack.c.l.b16 %v632
      %v729 = vunpack.c.l.b16 %v633
      %v730 = vunpack.c.l.b16 %v634
      %v731 = vunpack.c.l.b16 %v635
      %v732 = vunpack.c.l.b16 %v636
      %v733 = vunpack.c.l.b16 %v637
      %v734 = vunpack.c.l.b16 %v638
      %v735 = vpack.c.b16 %v720, %v719
      %v736 = vpack.c.b16 %v722, %v721
      %v737 = vpack.c.b16 %v724, %v723
      %v738 = vpack.c.b16 %v726, %v725
      %v739 = vpack.c.b16 %v728, %v727
      %v740 = vpack.c.b16 %v730, %v729
      %v741 = vpack.c.b16 %v732, %v731
      %v742 = vpack.c.b16 %v734, %v733
      %751 = vmatpush.bf16.msra.mxu0 %v742
      %752 = vmatpush.bf16.msra.mxu0 %v741
      %753 = vmatpush.bf16.msra.mxu0 %v740
      %754 = vmatpush.bf16.msra.mxu0 %v739
      %755 = vmatpush.bf16.msra.mxu0 %v738
      %756 = vmatpush.bf16.msra.mxu0 %v737
      %757 = vmatpush.bf16.msra.mxu0 %v736
      %758 = vmatpush.bf16.msra.mxu0 %v735
      %759 = vmatmul.bf16.gmra.mxu0 %v671
      %v760 = vpop.f32.mrf.mxu0
      %v761 = vadd.f32 0.0, %v760
      %v762 = vpop.f32.mrf.mxu0
      %v763 = vadd.f32 0.0, %v762
      %764 = vmatmul.bf16.gmra.mxu0 %v672
      %v765 = vpop.f32.mrf.mxu0
      %v766 = vadd.f32 0.0, %v765
      %v767 = vpop.f32.mrf.mxu0
      %v768 = vadd.f32 0.0, %v767
      %769 = vmatmul.bf16.gmra.mxu0 %v673
      %v770 = vpop.f32.mrf.mxu0
      %v771 = vadd.f32 0.0, %v770
      %v772 = vpop.f32.mrf.mxu0
      %v773 = vadd.f32 0.0, %v772
      %774 = vmatmul.bf16.gmra.mxu0 %v674
      %v775 = vpop.f32.mrf.mxu0
      %v776 = vadd.f32 0.0, %v775
      %v777 = vpop.f32.mrf.mxu0
      %v778 = vadd.f32 0.0, %v777
      %779 = vmatmul.bf16.gmra.mxu0 %v675
      %v780 = vpop.f32.mrf.mxu0
      %v781 = vadd.f32 0.0, %v780
      %v782 = vpop.f32.mrf.mxu0
      %v783 = vadd.f32 0.0, %v782
      %784 = vmatmul.bf16.gmra.mxu0 %v676
      %v785 = vpop.f32.mrf.mxu0
      %v786 = vadd.f32 0.0, %v785
      %v787 = vpop.f32.mrf.mxu0
      %v788 = vadd.f32 0.0, %v787
      %789 = vmatmul.bf16.gmra.mxu0 %v677
      %v790 = vpop.f32.mrf.mxu0
      %v791 = vadd.f32 0.0, %v790
      %v792 = vpop.f32.mrf.mxu0
      %v793 = vadd.f32 0.0, %v792
      %794 = vmatmul.bf16.gmra.mxu0 %v678
      %v795 = vpop.f32.mrf.mxu0
      %v796 = vadd.f32 0.0, %v795
      %v797 = vpop.f32.mrf.mxu0
      %v798 = vadd.f32 0.0, %v797
      %799 = vmatmul.bf16.gmra.mxu0 %v679
      %v800 = vpop.f32.mrf.mxu0
      %v801 = vadd.f32 0.0, %v800
      %v802 = vpop.f32.mrf.mxu0
      %v803 = vadd.f32 0.0, %v802
      %804 = vmatmul.bf16.gmra.mxu0 %v680
      %v805 = vpop.f32.mrf.mxu0
      %v806 = vadd.f32 0.0, %v805
      %v807 = vpop.f32.mrf.mxu0
      %v808 = vadd.f32 0.0, %v807
      %809 = vmatmul.bf16.gmra.mxu0 %v681
      %v810 = vpop.f32.mrf.mxu0
      %v811 = vadd.f32 0.0, %v810
      %v812 = vpop.f32.mrf.mxu0
      %v813 = vadd.f32 0.0, %v812
      %814 = vmatmul.bf16.gmra.mxu0 %v682
      %v815 = vpop.f32.mrf.mxu0
      %v816 = vadd.f32 0.0, %v815
      %v817 = vpop.f32.mrf.mxu0
      %v818 = vadd.f32 0.0, %v817
      %819 = vmatmul.bf16.gmra.mxu0 %v683
      %v820 = vpop.f32.mrf.mxu0
      %v821 = vadd.f32 0.0, %v820
      %v822 = vpop.f32.mrf.mxu0
      %v823 = vadd.f32 0.0, %v822
      %824 = vmatmul.bf16.gmra.mxu0 %v684
      %v825 = vpop.f32.mrf.mxu0
      %v826 = vadd.f32 0.0, %v825
      %v827 = vpop.f32.mrf.mxu0
      %v828 = vadd.f32 0.0, %v827
      %829 = vmatmul.bf16.gmra.mxu0 %v685
      %v830 = vpop.f32.mrf.mxu0
      %v831 = vadd.f32 0.0, %v830
      %v832 = vpop.f32.mrf.mxu0
      %v833 = vadd.f32 0.0, %v832
      %834 = vmatmul.bf16.gmra.mxu0 %v686
      %v835 = vpop.f32.mrf.mxu0
      %v836 = vadd.f32 0.0, %v835
      %v837 = vpop.f32.mrf.mxu0
      %v838 = vadd.f32 0.0, %v837
      %839 = vdwg.mxu0
      %v872 = vunpack.c.l.b16 %v171
      %v873 = vunpack.c.l.b16 %v172
      %v874 = vunpack.c.l.b16 %v173
      %v875 = vunpack.c.l.b16 %v174
      %v876 = vunpack.c.l.b16 %v175
      %v877 = vunpack.c.l.b16 %v176
      %v878 = vunpack.c.l.b16 %v177
      %v879 = vunpack.c.l.b16 %v178
      %v880 = vunpack.c.l.b16 %v179
      %v881 = vunpack.c.l.b16 %v180
      %v882 = vunpack.c.l.b16 %v181
      %v883 = vunpack.c.l.b16 %v182
      %v884 = vunpack.c.l.b16 %v183
      %v885 = vunpack.c.l.b16 %v184
      %v886 = vunpack.c.l.b16 %v185
      %v887 = vunpack.c.l.b16 %v186
      %v888 = vunpack.c.l.b16 %v187
      %v889 = vunpack.c.l.b16 %v188
      %v890 = vunpack.c.l.b16 %v189
      %v891 = vunpack.c.l.b16 %v190
      %v892 = vunpack.c.l.b16 %v191
      %v893 = vunpack.c.l.b16 %v192
      %v894 = vunpack.c.l.b16 %v193
      %v895 = vunpack.c.l.b16 %v194
      %v896 = vunpack.c.l.b16 %v195
      %v897 = vunpack.c.l.b16 %v196
      %v898 = vunpack.c.l.b16 %v197
      %v899 = vunpack.c.l.b16 %v198
      %v900 = vunpack.c.l.b16 %v199
      %v901 = vunpack.c.l.b16 %v200
      %v902 = vunpack.c.l.b16 %v201
      %v903 = vunpack.c.l.b16 %v202
      %v904 = vpack.c.b16 %v873, %v872
      %v905 = vpack.c.b16 %v875, %v874
      %v906 = vpack.c.b16 %v877, %v876
      %v907 = vpack.c.b16 %v879, %v878
      %v908 = vpack.c.b16 %v881, %v880
      %v909 = vpack.c.b16 %v883, %v882
      %v910 = vpack.c.b16 %v885, %v884
      %v911 = vpack.c.b16 %v887, %v886
      %v912 = vpack.c.b16 %v889, %v888
      %v913 = vpack.c.b16 %v891, %v890
      %v914 = vpack.c.b16 %v893, %v892
      %v915 = vpack.c.b16 %v895, %v894
      %v916 = vpack.c.b16 %v897, %v896
      %v917 = vpack.c.b16 %v899, %v898
      %v918 = vpack.c.b16 %v901, %v900
      %v919 = vpack.c.b16 %v903, %v902
      %v952 = vunpack.c.l.b16 %v203
      %v953 = vunpack.c.l.b16 %v204
      %v954 = vunpack.c.l.b16 %v205
      %v955 = vunpack.c.l.b16 %v206
      %v956 = vunpack.c.l.b16 %v207
      %v957 = vunpack.c.l.b16 %v208
      %v958 = vunpack.c.l.b16 %v209
      %v959 = vunpack.c.l.b16 %v210
      %v960 = vunpack.c.l.b16 %v211
      %v961 = vunpack.c.l.b16 %v212
      %v962 = vunpack.c.l.b16 %v213
      %v963 = vunpack.c.l.b16 %v214
      %v964 = vunpack.c.l.b16 %v215
      %v965 = vunpack.c.l.b16 %v216
      %v966 = vunpack.c.l.b16 %v217
      %v967 = vunpack.c.l.b16 %v218
      %v968 = vpack.c.b16 %v953, %v952
      %v969 = vpack.c.b16 %v955, %v954
      %v970 = vpack.c.b16 %v957, %v956
      %v971 = vpack.c.b16 %v959, %v958
      %v972 = vpack.c.b16 %v961, %v960
      %v973 = vpack.c.b16 %v963, %v962
      %v974 = vpack.c.b16 %v965, %v964
      %v975 = vpack.c.b16 %v967, %v966
      %984 = vmatpush.bf16.msra.mxu0 %v975
      %985 = vmatpush.bf16.msra.mxu0 %v974
      %986 = vmatpush.bf16.msra.mxu0 %v973
      %987 = vmatpush.bf16.msra.mxu0 %v972
      %988 = vmatpush.bf16.msra.mxu0 %v971
      %989 = vmatpush.bf16.msra.mxu0 %v970
      %990 = vmatpush.bf16.msra.mxu0 %v969
      %991 = vmatpush.bf16.msra.mxu0 %v968
      %992 = vmatmul.bf16.gmra.mxu0 %v904
      %v993 = vpop.f32.mrf.mxu0
      %v994 = vadd.f32 %v761, %v993
      %v995 = vpop.f32.mrf.mxu0
      %v996 = vadd.f32 %v763, %v995
      %997 = vmatmul.bf16.gmra.mxu0 %v905
      %v998 = vpop.f32.mrf.mxu0
      %v999 = vadd.f32 %v766, %v998
      %v1000 = vpop.f32.mrf.mxu0
      %v1001 = vadd.f32 %v768, %v1000
      %1002 = vmatmul.bf16.gmra.mxu0 %v906
      %v1003 = vpop.f32.mrf.mxu0
      %v1004 = vadd.f32 %v771, %v1003
      %v1005 = vpop.f32.mrf.mxu0
      %v1006 = vadd.f32 %v773, %v1005
      %1007 = vmatmul.bf16.gmra.mxu0 %v907
      %v1008 = vpop.f32.mrf.mxu0
      %v1009 = vadd.f32 %v776, %v1008
      %v1010 = vpop.f32.mrf.mxu0
      %v1011 = vadd.f32 %v778, %v1010
      %1012 = vmatmul.bf16.gmra.mxu0 %v908
      %v1013 = vpop.f32.mrf.mxu0
      %v1014 = vadd.f32 %v781, %v1013
      %v1015 = vpop.f32.mrf.mxu0
      %v1016 = vadd.f32 %v783, %v1015
      %1017 = vmatmul.bf16.gmra.mxu0 %v909
      %v1018 = vpop.f32.mrf.mxu0
      %v1019 = vadd.f32 %v786, %v1018
      %v1020 = vpop.f32.mrf.mxu0
      %v1021 = vadd.f32 %v788, %v1020
      %1022 = vmatmul.bf16.gmra.mxu0 %v910
      %v1023 = vpop.f32.mrf.mxu0
      %v1024 = vadd.f32 %v791, %v1023
      %v1025 = vpop.f32.mrf.mxu0
      %v1026 = vadd.f32 %v793, %v1025
      %1027 = vmatmul.bf16.gmra.mxu0 %v911
      %v1028 = vpop.f32.mrf.mxu0
      %v1029 = vadd.f32 %v796, %v1028
      %v1030 = vpop.f32.mrf.mxu0
      %v1031 = vadd.f32 %v798, %v1030
      %1032 = vmatmul.bf16.gmra.mxu0 %v912
      %v1033 = vpop.f32.mrf.mxu0
      %v1034 = vadd.f32 %v801, %v1033
      %v1035 = vpop.f32.mrf.mxu0
      %v1036 = vadd.f32 %v803, %v1035
      %1037 = vmatmul.bf16.gmra.mxu0 %v913
      %v1038 = vpop.f32.mrf.mxu0
      %v1039 = vadd.f32 %v806, %v1038
      %v1040 = vpop.f32.mrf.mxu0
      %v1041 = vadd.f32 %v808, %v1040
      %1042 = vmatmul.bf16.gmra.mxu0 %v914
      %v1043 = vpop.f32.mrf.mxu0
      %v1044 = vadd.f32 %v811, %v1043
      %v1045 = vpop.f32.mrf.mxu0
      %v1046 = vadd.f32 %v813, %v1045
      %1047 = vmatmul.bf16.gmra.mxu0 %v915
      %v1048 = vpop.f32.mrf.mxu0
      %v1049 = vadd.f32 %v816, %v1048
      %v1050 = vpop.f32.mrf.mxu0
      %v1051 = vadd.f32 %v818, %v1050
      %1052 = vmatmul.bf16.gmra.mxu0 %v916
      %v1053 = vpop.f32.mrf.mxu0
      %v1054 = vadd.f32 %v821, %v1053
      %v1055 = vpop.f32.mrf.mxu0
      %v1056 = vadd.f32 %v823, %v1055
      %1057 = vmatmul.bf16.gmra.mxu0 %v917
      %v1058 = vpop.f32.mrf.mxu0
      %v1059 = vadd.f32 %v826, %v1058
      %v1060 = vpop.f32.mrf.mxu0
      %v1061 = vadd.f32 %v828, %v1060
      %1062 = vmatmul.bf16.gmra.mxu0 %v918
      %v1063 = vpop.f32.mrf.mxu0
      %v1064 = vadd.f32 %v831, %v1063
      %v1065 = vpop.f32.mrf.mxu0
      %v1066 = vadd.f32 %v833, %v1065
      %1067 = vmatmul.bf16.gmra.mxu0 %v919
      %v1068 = vpop.f32.mrf.mxu0
      %v1069 = vadd.f32 %v836, %v1068
      %v1070 = vpop.f32.mrf.mxu0
      %v1071 = vadd.f32 %v838, %v1070
      %1072 = vdwg.mxu0
      %v1073 = vld [vmem:[%s165] sm:$0xe]
      %v1074 = vld [vmem:[%s165 + $0xc] sm:$0xe]
      %v1075 = vld [vmem:[%s165 + $0x18] sm:$0xe]
      %v1076 = vld [vmem:[%s165 + $0x24] sm:$0xe]
      %v1077 = vld [vmem:[%s165 + $0x30] sm:$0xe]
      %v1078 = vld [vmem:[%s165 + $0x3c] sm:$0xe]
      %v1079 = vld [vmem:[%s165 + $0x48] sm:$0xe]
      %v1080 = vld [vmem:[%s165 + $0x54] sm:$0xe]
      %v1081 = vld [vmem:[%s165 + $0x60] sm:$0xe]
      %v1082 = vld [vmem:[%s165 + $0x6c] sm:$0xe]
      %v1083 = vld [vmem:[%s165 + $0x78] sm:$0xe]
      %v1084 = vld [vmem:[%s165 + $0x84] sm:$0xe]
      %v1085 = vld [vmem:[%s165 + $0x90] sm:$0xe]
      %v1086 = vld [vmem:[%s165 + $0x9c] sm:$0xe]
      %v1087 = vld [vmem:[%s165 + $0xa8] sm:$0xe]
      %v1088 = vld [vmem:[%s165 + $0xb4] sm:$0xe]
      %vm1121 = vcmask 1042432
      %vm1122 = vcmask 1046532
      %vm1123 = vmor %vm1121, %vm1122
      %v1124 = vrot.slane %v1073, 5
      %v1125 = vrot.slane %v1124, 4
      %v1126 = vrot.slane %v172, 5
      %v1127 = vsel %vm1123, %v1125, %v1126
      %v1128 = vrot.slane %v1126, 4
      %v1129 = vrot.slane %v219, 5
      %v1130 = vsel %vm1123, %v1128, %v1129
      %v1131 = vrot.slane %v1074, 5
      %v1132 = vrot.slane %v1131, 4
      %v1133 = vrot.slane %v174, 5
      %v1134 = vsel %vm1123, %v1132, %v1133
      %v1135 = vrot.slane %v1133, 4
      %v1136 = vrot.slane %v220, 5
      %v1137 = vsel %vm1123, %v1135, %v1136
      %v1138 = vrot.slane %v1075, 5
      %v1139 = vrot.slane %v1138, 4
      %v1140 = vrot.slane %v176, 5
      %v1141 = vsel %vm1123, %v1139, %v1140
      %v1142 = vrot.slane %v1140, 4
      %v1143 = vrot.slane %v221, 5
      %v1144 = vsel %vm1123, %v1142, %v1143
      %v1145 = vrot.slane %v1076, 5
      %v1146 = vrot.slane %v1145, 4
      %v1147 = vrot.slane %v178, 5
      %v1148 = vsel %vm1123, %v1146, %v1147
      %v1149 = vrot.slane %v1147, 4
      %v1150 = vrot.slane %v222, 5
      %v1151 = vsel %vm1123, %v1149, %v1150
      %v1152 = vrot.slane %v1077, 5
      %v1153 = vrot.slane %v1152, 4
      %v1154 = vrot.slane %v180, 5
      %v1155 = vsel %vm1123, %v1153, %v1154
      %v1156 = vrot.slane %v1154, 4
      %v1157 = vrot.slane %v223, 5
      %v1158 = vsel %vm1123, %v1156, %v1157
      %v1159 = vrot.slane %v1078, 5
      %v1160 = vrot.slane %v1159, 4
      %v1161 = vrot.slane %v182, 5
      %v1162 = vsel %vm1123, %v1160, %v1161
      %v1163 = vrot.slane %v1161, 4
      %v1164 = vrot.slane %v224, 5
      %v1165 = vsel %vm1123, %v1163, %v1164
      %v1166 = vrot.slane %v1079, 5
      %v1167 = vrot.slane %v1166, 4
      %v1168 = vrot.slane %v184, 5
      %v1169 = vsel %vm1123, %v1167, %v1168
      %v1170 = vrot.slane %v1168, 4
      %v1171 = vrot.slane %v225, 5
      %v1172 = vsel %vm1123, %v1170, %v1171
      %v1173 = vrot.slane %v1080, 5
      %v1174 = vrot.slane %v1173, 4
      %v1175 = vrot.slane %v186, 5
      %v1176 = vsel %vm1123, %v1174, %v1175
      %v1177 = vrot.slane %v1175, 4
      %v1178 = vrot.slane %v226, 5
      %v1179 = vsel %vm1123, %v1177, %v1178
      %v1180 = vrot.slane %v1081, 5
      %v1181 = vrot.slane %v1180, 4
      %v1182 = vrot.slane %v188, 5
      %v1183 = vsel %vm1123, %v1181, %v1182
      %v1184 = vrot.slane %v1182, 4
      %v1185 = vrot.slane %v227, 5
      %v1186 = vsel %vm1123, %v1184, %v1185
      %v1187 = vrot.slane %v1082, 5
      %v1188 = vrot.slane %v1187, 4
      %v1189 = vrot.slane %v190, 5
      %v1190 = vsel %vm1123, %v1188, %v1189
      %v1191 = vrot.slane %v1189, 4
      %v1192 = vrot.slane %v228, 5
      %v1193 = vsel %vm1123, %v1191, %v1192
      %v1194 = vrot.slane %v1083, 5
      %v1195 = vrot.slane %v1194, 4
      %v1196 = vrot.slane %v192, 5
      %v1197 = vsel %vm1123, %v1195, %v1196
      %v1198 = vrot.slane %v1196, 4
      %v1199 = vrot.slane %v229, 5
      %v1200 = vsel %vm1123, %v1198, %v1199
      %v1201 = vrot.slane %v1084, 5
      %v1202 = vrot.slane %v1201, 4
      %v1203 = vrot.slane %v194, 5
      %v1204 = vsel %vm1123, %v1202, %v1203
      %v1205 = vrot.slane %v1203, 4
      %v1206 = vrot.slane %v230, 5
      %v1207 = vsel %vm1123, %v1205, %v1206
      %v1208 = vrot.slane %v1085, 5
      %v1209 = vrot.slane %v1208, 4
      %v1210 = vrot.slane %v196, 5
      %v1211 = vsel %vm1123, %v1209, %v1210
      %v1212 = vrot.slane %v1210, 4
      %v1213 = vrot.slane %v231, 5
      %v1214 = vsel %vm1123, %v1212, %v1213
      %v1215 = vrot.slane %v1086, 5
      %v1216 = vrot.slane %v1215, 4
      %v1217 = vrot.slane %v198, 5
      %v1218 = vsel %vm1123, %v1216, %v1217
      %v1219 = vrot.slane %v1217, 4
      %v1220 = vrot.slane %v232, 5
      %v1221 = vsel %vm1123, %v1219, %v1220
      %v1222 = vrot.slane %v1087, 5
      %v1223 = vrot.slane %v1222, 4
      %v1224 = vrot.slane %v200, 5
      %v1225 = vsel %vm1123, %v1223, %v1224
      %v1226 = vrot.slane %v1224, 4
      %v1227 = vrot.slane %v233, 5
      %v1228 = vsel %vm1123, %v1226, %v1227
      %v1229 = vrot.slane %v1088, 5
      %v1230 = vrot.slane %v1229, 4
      %v1231 = vrot.slane %v202, 5
      %v1232 = vsel %vm1123, %v1230, %v1231
      %v1233 = vrot.slane %v1231, 4
      %v1234 = vrot.slane %v234, 5
      %v1235 = vsel %vm1123, %v1233, %v1234
      %s1236 = scalar_lea.vmem %s1, 128
      %v1237 = vld [vmem:[%s1236] sm:$0xf]
      %v1238 = vld [vmem:[%s1236 + $0x4] sm:$0xf]
      %v1239 = vld [vmem:[%s1236 + $0x8] sm:$0xf]
      %v1240 = vld [vmem:[%s1236 + $0xc] sm:$0xf]
      %v1241 = vld [vmem:[%s1236 + $0x10] sm:$0xf]
      %v1242 = vld [vmem:[%s1236 + $0x14] sm:$0xf]
      %v1243 = vld [vmem:[%s1236 + $0x18] sm:$0xf]
      %v1244 = vld [vmem:[%s1236 + $0x1c] sm:$0xf]
      %v1245 = vld [vmem:[%s1236 + $0x20] sm:$0xf]
      %v1246 = vld [vmem:[%s1236 + $0x24] sm:$0xf]
      %v1247 = vld [vmem:[%s1236 + $0x28] sm:$0xf]
      %v1248 = vld [vmem:[%s1236 + $0x2c] sm:$0xf]
      %v1249 = vld [vmem:[%s1236 + $0x30] sm:$0xf]
      %v1250 = vld [vmem:[%s1236 + $0x34] sm:$0xf]
      %v1251 = vld [vmem:[%s1236 + $0x38] sm:$0xf]
      %v1252 = vld [vmem:[%s1236 + $0x3c] sm:$0xf]
      %v1253 = vunpack.c.l.b16 %v1127
      %v1254 = vunpack.c.l.b16 %v1130
      %v1255 = vunpack.c.l.b16 %v1134
      %v1256 = vunpack.c.l.b16 %v1137
      %v1257 = vunpack.c.l.b16 %v1141
      %v1258 = vunpack.c.l.b16 %v1144
      %v1259 = vunpack.c.l.b16 %v1148
      %v1260 = vunpack.c.l.b16 %v1151
      %v1261 = vunpack.c.l.b16 %v1155
      %v1262 = vunpack.c.l.b16 %v1158
      %v1263 = vunpack.c.l.b16 %v1162
      %v1264 = vunpack.c.l.b16 %v1165
      %v1265 = vunpack.c.l.b16 %v1169
      %v1266 = vunpack.c.l.b16 %v1172
      %v1267 = vunpack.c.l.b16 %v1176
      %v1268 = vunpack.c.l.b16 %v1179
      %v1269 = vunpack.c.l.b16 %v1183
      %v1270 = vunpack.c.l.b16 %v1186
      %v1271 = vunpack.c.l.b16 %v1190
      %v1272 = vunpack.c.l.b16 %v1193
      %v1273 = vunpack.c.l.b16 %v1197
      %v1274 = vunpack.c.l.b16 %v1200
      %v1275 = vunpack.c.l.b16 %v1204
      %v1276 = vunpack.c.l.b16 %v1207
      %v1277 = vunpack.c.l.b16 %v1211
      %v1278 = vunpack.c.l.b16 %v1214
      %v1279 = vunpack.c.l.b16 %v1218
      %v1280 = vunpack.c.l.b16 %v1221
      %v1281 = vunpack.c.l.b16 %v1225
      %v1282 = vunpack.c.l.b16 %v1228
      %v1283 = vunpack.c.l.b16 %v1232
      %v1284 = vunpack.c.l.b16 %v1235
      %v1285 = vpack.c.b16 %v1254, %v1253
      %v1286 = vpack.c.b16 %v1256, %v1255
      %v1287 = vpack.c.b16 %v1258, %v1257
      %v1288 = vpack.c.b16 %v1260, %v1259
      %v1289 = vpack.c.b16 %v1262, %v1261
      %v1290 = vpack.c.b16 %v1264, %v1263
      %v1291 = vpack.c.b16 %v1266, %v1265
      %v1292 = vpack.c.b16 %v1268, %v1267
      %v1293 = vpack.c.b16 %v1270, %v1269
      %v1294 = vpack.c.b16 %v1272, %v1271
      %v1295 = vpack.c.b16 %v1274, %v1273
      %v1296 = vpack.c.b16 %v1276, %v1275
      %v1297 = vpack.c.b16 %v1278, %v1277
      %v1298 = vpack.c.b16 %v1280, %v1279
      %v1299 = vpack.c.b16 %v1282, %v1281
      %v1300 = vpack.c.b16 %v1284, %v1283
      %v1333 = vunpack.c.l.b16 %v1237
      %v1334 = vunpack.c.l.b16 %v1238
      %v1335 = vunpack.c.l.b16 %v1239
      %v1336 = vunpack.c.l.b16 %v1240
      %v1337 = vunpack.c.l.b16 %v1241
      %v1338 = vunpack.c.l.b16 %v1242
      %v1339 = vunpack.c.l.b16 %v1243
      %v1340 = vunpack.c.l.b16 %v1244
      %v1341 = vunpack.c.l.b16 %v1245
      %v1342 = vunpack.c.l.b16 %v1246
      %v1343 = vunpack.c.l.b16 %v1247
      %v1344 = vunpack.c.l.b16 %v1248
      %v1345 = vunpack.c.l.b16 %v1249
      %v1346 = vunpack.c.l.b16 %v1250
      %v1347 = vunpack.c.l.b16 %v1251
      %v1348 = vunpack.c.l.b16 %v1252
      %v1349 = vpack.c.b16 %v1334, %v1333
      %v1350 = vpack.c.b16 %v1336, %v1335
      %v1351 = vpack.c.b16 %v1338, %v1337
      %v1352 = vpack.c.b16 %v1340, %v1339
      %v1353 = vpack.c.b16 %v1342, %v1341
      %v1354 = vpack.c.b16 %v1344, %v1343
      %v1355 = vpack.c.b16 %v1346, %v1345
      %v1356 = vpack.c.b16 %v1348, %v1347
      %1365 = vmatpush.bf16.msra.mxu0 %v1356
      %1366 = vmatpush.bf16.msra.mxu0 %v1355
      %1367 = vmatpush.bf16.msra.mxu0 %v1354
      %1368 = vmatpush.bf16.msra.mxu0 %v1353
      %1369 = vmatpush.bf16.msra.mxu0 %v1352
      %1370 = vmatpush.bf16.msra.mxu0 %v1351
      %1371 = vmatpush.bf16.msra.mxu0 %v1350
      %1372 = vmatpush.bf16.msra.mxu0 %v1349
      %1373 = vmatmul.bf16.gmra.mxu0 %v1285
      %v1374 = vpop.f32.mrf.mxu0
      %v1375 = vadd.f32 0.0, %v1374
      %v1376 = vpop.f32.mrf.mxu0
      %v1377 = vadd.f32 0.0, %v1376
      %1378 = vmatmul.bf16.gmra.mxu0 %v1286
      %v1379 = vpop.f32.mrf.mxu0
      %v1380 = vadd.f32 0.0, %v1379
      %v1381 = vpop.f32.mrf.mxu0
      %v1382 = vadd.f32 0.0, %v1381
      %1383 = vmatmul.bf16.gmra.mxu0 %v1287
      %v1384 = vpop.f32.mrf.mxu0
      %v1385 = vadd.f32 0.0, %v1384
      %v1386 = vpop.f32.mrf.mxu0
      %v1387 = vadd.f32 0.0, %v1386
      %1388 = vmatmul.bf16.gmra.mxu0 %v1288
      %v1389 = vpop.f32.mrf.mxu0
      %v1390 = vadd.f32 0.0, %v1389
      %v1391 = vpop.f32.mrf.mxu0
      %v1392 = vadd.f32 0.0, %v1391
      %1393 = vmatmul.bf16.gmra.mxu0 %v1289
      %v1394 = vpop.f32.mrf.mxu0
      %v1395 = vadd.f32 0.0, %v1394
      %v1396 = vpop.f32.mrf.mxu0
      %v1397 = vadd.f32 0.0, %v1396
      %1398 = vmatmul.bf16.gmra.mxu0 %v1290
      %v1399 = vpop.f32.mrf.mxu0
      %v1400 = vadd.f32 0.0, %v1399
      %v1401 = vpop.f32.mrf.mxu0
      %v1402 = vadd.f32 0.0, %v1401
      %1403 = vmatmul.bf16.gmra.mxu0 %v1291
      %v1404 = vpop.f32.mrf.mxu0
      %v1405 = vadd.f32 0.0, %v1404
      %v1406 = vpop.f32.mrf.mxu0
      %v1407 = vadd.f32 0.0, %v1406
      %1408 = vmatmul.bf16.gmra.mxu0 %v1292
      %v1409 = vpop.f32.mrf.mxu0
      %v1410 = vadd.f32 0.0, %v1409
      %v1411 = vpop.f32.mrf.mxu0
      %v1412 = vadd.f32 0.0, %v1411
      %1413 = vmatmul.bf16.gmra.mxu0 %v1293
      %v1414 = vpop.f32.mrf.mxu0
      %v1415 = vadd.f32 0.0, %v1414
      %v1416 = vpop.f32.mrf.mxu0
      %v1417 = vadd.f32 0.0, %v1416
      %1418 = vmatmul.bf16.gmra.mxu0 %v1294
      %v1419 = vpop.f32.mrf.mxu0
      %v1420 = vadd.f32 0.0, %v1419
      %v1421 = vpop.f32.mrf.mxu0
      %v1422 = vadd.f32 0.0, %v1421
      %1423 = vmatmul.bf16.gmra.mxu0 %v1295
      %v1424 = vpop.f32.mrf.mxu0
      %v1425 = vadd.f32 0.0, %v1424
      %v1426 = vpop.f32.mrf.mxu0
      %v1427 = vadd.f32 0.0, %v1426
      %1428 = vmatmul.bf16.gmra.mxu0 %v1296
      %v1429 = vpop.f32.mrf.mxu0
      %v1430 = vadd.f32 0.0, %v1429
      %v1431 = vpop.f32.mrf.mxu0
      %v1432 = vadd.f32 0.0, %v1431
      %1433 = vmatmul.bf16.gmra.mxu0 %v1297
      %v1434 = vpop.f32.mrf.mxu0
      %v1435 = vadd.f32 0.0, %v1434
      %v1436 = vpop.f32.mrf.mxu0
      %v1437 = vadd.f32 0.0, %v1436
      %1438 = vmatmul.bf16.gmra.mxu0 %v1298
      %v1439 = vpop.f32.mrf.mxu0
      %v1440 = vadd.f32 0.0, %v1439
      %v1441 = vpop.f32.mrf.mxu0
      %v1442 = vadd.f32 0.0, %v1441
      %1443 = vmatmul.bf16.gmra.mxu0 %v1299
      %v1444 = vpop.f32.mrf.mxu0
      %v1445 = vadd.f32 0.0, %v1444
      %v1446 = vpop.f32.mrf.mxu0
      %v1447 = vadd.f32 0.0, %v1446
      %1448 = vmatmul.bf16.gmra.mxu0 %v1300
      %v1449 = vpop.f32.mrf.mxu0
      %v1450 = vadd.f32 0.0, %v1449
      %v1451 = vpop.f32.mrf.mxu0
      %v1452 = vadd.f32 0.0, %v1451
      %1453 = vdwg.mxu0
      %v1454 = vadd.f32 %v994, %v1375
      %v1455 = vadd.f32 %v996, %v1377
      %v1456 = vadd.f32 %v999, %v1380
      %v1457 = vadd.f32 %v1001, %v1382
      %v1458 = vadd.f32 %v1004, %v1385
      %v1459 = vadd.f32 %v1006, %v1387
      %v1460 = vadd.f32 %v1009, %v1390
      %v1461 = vadd.f32 %v1011, %v1392
      %v1462 = vadd.f32 %v1014, %v1395
      %v1463 = vadd.f32 %v1016, %v1397
      %v1464 = vadd.f32 %v1019, %v1400
      %v1465 = vadd.f32 %v1021, %v1402
      %v1466 = vadd.f32 %v1024, %v1405
      %v1467 = vadd.f32 %v1026, %v1407
      %v1468 = vadd.f32 %v1029, %v1410
      %v1469 = vadd.f32 %v1031, %v1412
      %v1470 = vadd.f32 %v1034, %v1415
      %v1471 = vadd.f32 %v1036, %v1417
      %v1472 = vadd.f32 %v1039, %v1420
      %v1473 = vadd.f32 %v1041, %v1422
      %v1474 = vadd.f32 %v1044, %v1425
      %v1475 = vadd.f32 %v1046, %v1427
      %v1476 = vadd.f32 %v1049, %v1430
      %v1477 = vadd.f32 %v1051, %v1432
      %v1478 = vadd.f32 %v1054, %v1435
      %v1479 = vadd.f32 %v1056, %v1437
      %v1480 = vadd.f32 %v1059, %v1440
      %v1481 = vadd.f32 %v1061, %v1442
      %v1482 = vadd.f32 %v1064, %v1445
      %v1483 = vadd.f32 %v1066, %v1447
      %v1484 = vadd.f32 %v1069, %v1450
      %v1485 = vadd.f32 %v1071, %v1452
      %s1486 = scalar_lea.vmem %s165, 12
      %v1487 = vld [vmem:[%s1486] sm:$0xf]
      %v1488 = vld [vmem:[%s1486 + $0x4] sm:$0xf]
      %v1489 = vld [vmem:[%s1486 + $0xc] sm:$0xf]
      %v1490 = vld [vmem:[%s1486 + $0x10] sm:$0xf]
      %v1491 = vld [vmem:[%s1486 + $0x18] sm:$0xf]
      %v1492 = vld [vmem:[%s1486 + $0x1c] sm:$0xf]
      %v1493 = vld [vmem:[%s1486 + $0x24] sm:$0xf]
      %v1494 = vld [vmem:[%s1486 + $0x28] sm:$0xf]
      %v1495 = vld [vmem:[%s1486 + $0x30] sm:$0xf]
      %v1496 = vld [vmem:[%s1486 + $0x34] sm:$0xf]
      %v1497 = vld [vmem:[%s1486 + $0x3c] sm:$0xf]
      %v1498 = vld [vmem:[%s1486 + $0x40] sm:$0xf]
      %v1499 = vld [vmem:[%s1486 + $0x48] sm:$0xf]
      %v1500 = vld [vmem:[%s1486 + $0x4c] sm:$0xf]
      %v1501 = vld [vmem:[%s1486 + $0x54] sm:$0xf]
      %v1502 = vld [vmem:[%s1486 + $0x58] sm:$0xf]
      %v1503 = vld [vmem:[%s1486 + $0x60] sm:$0xf]
      %v1504 = vld [vmem:[%s1486 + $0x64] sm:$0xf]
      %v1505 = vld [vmem:[%s1486 + $0x6c] sm:$0xf]
      %v1506 = vld [vmem:[%s1486 + $0x70] sm:$0xf]
      %v1507 = vld [vmem:[%s1486 + $0x78] sm:$0xf]
      %v1508 = vld [vmem:[%s1486 + $0x7c] sm:$0xf]
      %v1509 = vld [vmem:[%s1486 + $0x84] sm:$0xf]
      %v1510 = vld [vmem:[%s1486 + $0x88] sm:$0xf]
      %v1511 = vld [vmem:[%s1486 + $0x90] sm:$0xf]
      %v1512 = vld [vmem:[%s1486 + $0x94] sm:$0xf]
      %v1513 = vld [vmem:[%s1486 + $0x9c] sm:$0xf]
      %v1514 = vld [vmem:[%s1486 + $0xa0] sm:$0xf]
      %v1515 = vld [vmem:[%s1486 + $0xa8] sm:$0xf]
      %v1516 = vld [vmem:[%s1486 + $0xac] sm:$0xf]
      %v1517 = vld [vmem:[%s1486 + $0xb4] sm:$0xf]
      %v1518 = vld [vmem:[%s1486 + $0xb8] sm:$0xf]
      %s1519 = scalar_lea.vmem %s1, 192
      %v1520 = vld [vmem:[%s1519] sm:$0xf]
      %v1521 = vld [vmem:[%s1519 + $0x4] sm:$0xf]
      %v1522 = vld [vmem:[%s1519 + $0x8] sm:$0xf]
      %v1523 = vld [vmem:[%s1519 + $0xc] sm:$0xf]
      %v1524 = vld [vmem:[%s1519 + $0x10] sm:$0xf]
      %v1525 = vld [vmem:[%s1519 + $0x14] sm:$0xf]
      %v1526 = vld [vmem:[%s1519 + $0x18] sm:$0xf]
      %v1527 = vld [vmem:[%s1519 + $0x1c] sm:$0xf]
      %v1528 = vld [vmem:[%s1519 + $0x20] sm:$0xf]
      %v1529 = vld [vmem:[%s1519 + $0x24] sm:$0xf]
      %v1530 = vld [vmem:[%s1519 + $0x28] sm:$0xf]
      %v1531 = vld [vmem:[%s1519 + $0x2c] sm:$0xf]
      %v1532 = vld [vmem:[%s1519 + $0x30] sm:$0xf]
      %v1533 = vld [vmem:[%s1519 + $0x34] sm:$0xf]
      %v1534 = vld [vmem:[%s1519 + $0x38] sm:$0xf]
      %v1535 = vld [vmem:[%s1519 + $0x3c] sm:$0xf]
      %v1568 = vunpack.c.l.b16 %v1487
      %v1569 = vunpack.c.l.b16 %v1488
      %v1570 = vunpack.c.l.b16 %v1489
      %v1571 = vunpack.c.l.b16 %v1490
      %v1572 = vunpack.c.l.b16 %v1491
      %v1573 = vunpack.c.l.b16 %v1492
      %v1574 = vunpack.c.l.b16 %v1493
      %v1575 = vunpack.c.l.b16 %v1494
      %v1576 = vunpack.c.l.b16 %v1495
      %v1577 = vunpack.c.l.b16 %v1496
      %v1578 = vunpack.c.l.b16 %v1497
      %v1579 = vunpack.c.l.b16 %v1498
      %v1580 = vunpack.c.l.b16 %v1499
      %v1581 = vunpack.c.l.b16 %v1500
      %v1582 = vunpack.c.l.b16 %v1501
      %v1583 = vunpack.c.l.b16 %v1502
      %v1584 = vunpack.c.l.b16 %v1503
      %v1585 = vunpack.c.l.b16 %v1504
      %v1586 = vunpack.c.l.b16 %v1505
      %v1587 = vunpack.c.l.b16 %v1506
      %v1588 = vunpack.c.l.b16 %v1507
      %v1589 = vunpack.c.l.b16 %v1508
      %v1590 = vunpack.c.l.b16 %v1509
      %v1591 = vunpack.c.l.b16 %v1510
      %v1592 = vunpack.c.l.b16 %v1511
      %v1593 = vunpack.c.l.b16 %v1512
      %v1594 = vunpack.c.l.b16 %v1513
      %v1595 = vunpack.c.l.b16 %v1514
      %v1596 = vunpack.c.l.b16 %v1515
      %v1597 = vunpack.c.l.b16 %v1516
      %v1598 = vunpack.c.l.b16 %v1517
      %v1599 = vunpack.c.l.b16 %v1518
      %v1600 = vpack.c.b16 %v1569, %v1568
      %v1601 = vpack.c.b16 %v1571, %v1570
      %v1602 = vpack.c.b16 %v1573, %v1572
      %v1603 = vpack.c.b16 %v1575, %v1574
      %v1604 = vpack.c.b16 %v1577, %v1576
      %v1605 = vpack.c.b16 %v1579, %v1578
      %v1606 = vpack.c.b16 %v1581, %v1580
      %v1607 = vpack.c.b16 %v1583, %v1582
      %v1608 = vpack.c.b16 %v1585, %v1584
      %v1609 = vpack.c.b16 %v1587, %v1586
      %v1610 = vpack.c.b16 %v1589, %v1588
      %v1611 = vpack.c.b16 %v1591, %v1590
      %v1612 = vpack.c.b16 %v1593, %v1592
      %v1613 = vpack.c.b16 %v1595, %v1594
      %v1614 = vpack.c.b16 %v1597, %v1596
      %v1615 = vpack.c.b16 %v1599, %v1598
      %v1648 = vunpack.c.l.b16 %v1520
      %v1649 = vunpack.c.l.b16 %v1521
      %v1650 = vunpack.c.l.b16 %v1522
      %v1651 = vunpack.c.l.b16 %v1523
      %v1652 = vunpack.c.l.b16 %v1524
      %v1653 = vunpack.c.l.b16 %v1525
      %v1654 = vunpack.c.l.b16 %v1526
      %v1655 = vunpack.c.l.b16 %v1527
      %v1656 = vunpack.c.l.b16 %v1528
      %v1657 = vunpack.c.l.b16 %v1529
      %v1658 = vunpack.c.l.b16 %v1530
      %v1659 = vunpack.c.l.b16 %v1531
      %v1660 = vunpack.c.l.b16 %v1532
      %v1661 = vunpack.c.l.b16 %v1533
      %v1662 = vunpack.c.l.b16 %v1534
      %v1663 = vunpack.c.l.b16 %v1535
      %v1664 = vpack.c.b16 %v1649, %v1648
      %v1665 = vpack.c.b16 %v1651, %v1650
      %v1666 = vpack.c.b16 %v1653, %v1652
      %v1667 = vpack.c.b16 %v1655, %v1654
      %v1668 = vpack.c.b16 %v1657, %v1656
      %v1669 = vpack.c.b16 %v1659, %v1658
      %v1670 = vpack.c.b16 %v1661, %v1660
      %v1671 = vpack.c.b16 %v1663, %v1662
      %1680 = vmatpush.bf16.msra.mxu0 %v1671
      %1681 = vmatpush.bf16.msra.mxu0 %v1670
      %1682 = vmatpush.bf16.msra.mxu0 %v1669
      %1683 = vmatpush.bf16.msra.mxu0 %v1668
      %1684 = vmatpush.bf16.msra.mxu0 %v1667
      %1685 = vmatpush.bf16.msra.mxu0 %v1666
      %1686 = vmatpush.bf16.msra.mxu0 %v1665
      %1687 = vmatpush.bf16.msra.mxu0 %v1664
      %1688 = vmatmul.bf16.gmra.mxu0 %v1600
      %v1689 = vpop.f32.mrf.mxu0
      %v1690 = vadd.f32 0.0, %v1689
      %v1691 = vpop.f32.mrf.mxu0
      %v1692 = vadd.f32 0.0, %v1691
      %1693 = vmatmul.bf16.gmra.mxu0 %v1601
      %v1694 = vpop.f32.mrf.mxu0
      %v1695 = vadd.f32 0.0, %v1694
      %v1696 = vpop.f32.mrf.mxu0
      %v1697 = vadd.f32 0.0, %v1696
      %1698 = vmatmul.bf16.gmra.mxu0 %v1602
      %v1699 = vpop.f32.mrf.mxu0
      %v1700 = vadd.f32 0.0, %v1699
      %v1701 = vpop.f32.mrf.mxu0
      %v1702 = vadd.f32 0.0, %v1701
      %1703 = vmatmul.bf16.gmra.mxu0 %v1603
      %v1704 = vpop.f32.mrf.mxu0
      %v1705 = vadd.f32 0.0, %v1704
      %v1706 = vpop.f32.mrf.mxu0
      %v1707 = vadd.f32 0.0, %v1706
      %1708 = vmatmul.bf16.gmra.mxu0 %v1604
      %v1709 = vpop.f32.mrf.mxu0
      %v1710 = vadd.f32 0.0, %v1709
      %v1711 = vpop.f32.mrf.mxu0
      %v1712 = vadd.f32 0.0, %v1711
      %1713 = vmatmul.bf16.gmra.mxu0 %v1605
      %v1714 = vpop.f32.mrf.mxu0
      %v1715 = vadd.f32 0.0, %v1714
      %v1716 = vpop.f32.mrf.mxu0
      %v1717 = vadd.f32 0.0, %v1716
      %1718 = vmatmul.bf16.gmra.mxu0 %v1606
      %v1719 = vpop.f32.mrf.mxu0
      %v1720 = vadd.f32 0.0, %v1719
      %v1721 = vpop.f32.mrf.mxu0
      %v1722 = vadd.f32 0.0, %v1721
      %1723 = vmatmul.bf16.gmra.mxu0 %v1607
      %v1724 = vpop.f32.mrf.mxu0
      %v1725 = vadd.f32 0.0, %v1724
      %v1726 = vpop.f32.mrf.mxu0
      %v1727 = vadd.f32 0.0, %v1726
      %1728 = vmatmul.bf16.gmra.mxu0 %v1608
      %v1729 = vpop.f32.mrf.mxu0
      %v1730 = vadd.f32 0.0, %v1729
      %v1731 = vpop.f32.mrf.mxu0
      %v1732 = vadd.f32 0.0, %v1731
      %1733 = vmatmul.bf16.gmra.mxu0 %v1609
      %v1734 = vpop.f32.mrf.mxu0
      %v1735 = vadd.f32 0.0, %v1734
      %v1736 = vpop.f32.mrf.mxu0
      %v1737 = vadd.f32 0.0, %v1736
      %1738 = vmatmul.bf16.gmra.mxu0 %v1610
      %v1739 = vpop.f32.mrf.mxu0
      %v1740 = vadd.f32 0.0, %v1739
      %v1741 = vpop.f32.mrf.mxu0
      %v1742 = vadd.f32 0.0, %v1741
      %1743 = vmatmul.bf16.gmra.mxu0 %v1611
      %v1744 = vpop.f32.mrf.mxu0
      %v1745 = vadd.f32 0.0, %v1744
      %v1746 = vpop.f32.mrf.mxu0
      %v1747 = vadd.f32 0.0, %v1746
      %1748 = vmatmul.bf16.gmra.mxu0 %v1612
      %v1749 = vpop.f32.mrf.mxu0
      %v1750 = vadd.f32 0.0, %v1749
      %v1751 = vpop.f32.mrf.mxu0
      %v1752 = vadd.f32 0.0, %v1751
      %1753 = vmatmul.bf16.gmra.mxu0 %v1613
      %v1754 = vpop.f32.mrf.mxu0
      %v1755 = vadd.f32 0.0, %v1754
      %v1756 = vpop.f32.mrf.mxu0
      %v1757 = vadd.f32 0.0, %v1756
      %1758 = vmatmul.bf16.gmra.mxu0 %v1614
      %v1759 = vpop.f32.mrf.mxu0
      %v1760 = vadd.f32 0.0, %v1759
      %v1761 = vpop.f32.mrf.mxu0
      %v1762 = vadd.f32 0.0, %v1761
      %1763 = vmatmul.bf16.gmra.mxu0 %v1615
      %v1764 = vpop.f32.mrf.mxu0
      %v1765 = vadd.f32 0.0, %v1764
      %v1766 = vpop.f32.mrf.mxu0
      %v1767 = vadd.f32 0.0, %v1766
      %1768 = vdwg.mxu0
      %v1769 = vadd.f32 %v1454, %v1690
      %v1770 = vadd.f32 %v1455, %v1692
      %v1771 = vadd.f32 %v1456, %v1695
      %v1772 = vadd.f32 %v1457, %v1697
      %v1773 = vadd.f32 %v1458, %v1700
      %v1774 = vadd.f32 %v1459, %v1702
      %v1775 = vadd.f32 %v1460, %v1705
      %v1776 = vadd.f32 %v1461, %v1707
      %v1777 = vadd.f32 %v1462, %v1710
      %v1778 = vadd.f32 %v1463, %v1712
      %v1779 = vadd.f32 %v1464, %v1715
      %v1780 = vadd.f32 %v1465, %v1717
      %v1781 = vadd.f32 %v1466, %v1720
      %v1782 = vadd.f32 %v1467, %v1722
      %v1783 = vadd.f32 %v1468, %v1725
      %v1784 = vadd.f32 %v1469, %v1727
      %v1785 = vadd.f32 %v1470, %v1730
      %v1786 = vadd.f32 %v1471, %v1732
      %v1787 = vadd.f32 %v1472, %v1735
      %v1788 = vadd.f32 %v1473, %v1737
      %v1789 = vadd.f32 %v1474, %v1740
      %v1790 = vadd.f32 %v1475, %v1742
      %v1791 = vadd.f32 %v1476, %v1745
      %v1792 = vadd.f32 %v1477, %v1747
      %v1793 = vadd.f32 %v1478, %v1750
      %v1794 = vadd.f32 %v1479, %v1752
      %v1795 = vadd.f32 %v1480, %v1755
      %v1796 = vadd.f32 %v1481, %v1757
      %v1797 = vadd.f32 %v1482, %v1760
      %v1798 = vadd.f32 %v1483, %v1762
      %v1799 = vadd.f32 %v1484, %v1765
      %v1800 = vadd.f32 %v1485, %v1767
      %v1801 = vld [vmem:[%s1486] sm:$0xf]
      %v1802 = vld [vmem:[%s1486 + $0x4] sm:$0xf]
      %v1803 = vld [vmem:[%s1486 + $0x8] sm:$0x1]
      %v1804 = vld [vmem:[%s1486 + $0xc] sm:$0xf]
      %v1805 = vld [vmem:[%s1486 + $0x10] sm:$0xf]
      %v1806 = vld [vmem:[%s1486 + $0x14] sm:$0x1]
      %v1807 = vld [vmem:[%s1486 + $0x18] sm:$0xf]
      %v1808 = vld [vmem:[%s1486 + $0x1c] sm:$0xf]
      %v1809 = vld [vmem:[%s1486 + $0x20] sm:$0x1]
      %v1810 = vld [vmem:[%s1486 + $0x24] sm:$0xf]
      %v1811 = vld [vmem:[%s1486 + $0x28] sm:$0xf]
      %v1812 = vld [vmem:[%s1486 + $0x2c] sm:$0x1]
      %v1813 = vld [vmem:[%s1486 + $0x30] sm:$0xf]
      %v1814 = vld [vmem:[%s1486 + $0x34] sm:$0xf]
      %v1815 = vld [vmem:[%s1486 + $0x38] sm:$0x1]
      %v1816 = vld [vmem:[%s1486 + $0x3c] sm:$0xf]
      %v1817 = vld [vmem:[%s1486 + $0x40] sm:$0xf]
      %v1818 = vld [vmem:[%s1486 + $0x44] sm:$0x1]
      %v1819 = vld [vmem:[%s1486 + $0x48] sm:$0xf]
      %v1820 = vld [vmem:[%s1486 + $0x4c] sm:$0xf]
      %v1821 = vld [vmem:[%s1486 + $0x50] sm:$0x1]
      %v1822 = vld [vmem:[%s1486 + $0x54] sm:$0xf]
      %v1823 = vld [vmem:[%s1486 + $0x58] sm:$0xf]
      %v1824 = vld [vmem:[%s1486 + $0x5c] sm:$0x1]
      %v1825 = vld [vmem:[%s1486 + $0x60] sm:$0xf]
      %v1826 = vld [vmem:[%s1486 + $0x64] sm:$0xf]
      %v1827 = vld [vmem:[%s1486 + $0x68] sm:$0x1]
      %v1828 = vld [vmem:[%s1486 + $0x6c] sm:$0xf]
      %v1829 = vld [vmem:[%s1486 + $0x70] sm:$0xf]
      %v1830 = vld [vmem:[%s1486 + $0x74] sm:$0x1]
      %v1831 = vld [vmem:[%s1486 + $0x78] sm:$0xf]
      %v1832 = vld [vmem:[%s1486 + $0x7c] sm:$0xf]
      %v1833 = vld [vmem:[%s1486 + $0x80] sm:$0x1]
      %v1834 = vld [vmem:[%s1486 + $0x84] sm:$0xf]
      %v1835 = vld [vmem:[%s1486 + $0x88] sm:$0xf]
      %v1836 = vld [vmem:[%s1486 + $0x8c] sm:$0x1]
      %v1837 = vld [vmem:[%s1486 + $0x90] sm:$0xf]
      %v1838 = vld [vmem:[%s1486 + $0x94] sm:$0xf]
      %v1839 = vld [vmem:[%s1486 + $0x98] sm:$0x1]
      %v1840 = vld [vmem:[%s1486 + $0x9c] sm:$0xf]
      %v1841 = vld [vmem:[%s1486 + $0xa0] sm:$0xf]
      %v1842 = vld [vmem:[%s1486 + $0xa4] sm:$0x1]
      %v1843 = vld [vmem:[%s1486 + $0xa8] sm:$0xf]
      %v1844 = vld [vmem:[%s1486 + $0xac] sm:$0xf]
      %v1845 = vld [vmem:[%s1486 + $0xb0] sm:$0x1]
      %v1846 = vld [vmem:[%s1486 + $0xb4] sm:$0xf]
      %v1847 = vld [vmem:[%s1486 + $0xb8] sm:$0xf]
      %v1848 = vld [vmem:[%s1486 + $0xbc] sm:$0x1]
      %v1850 = vshrl.u32 %v1801, 16
      %v1852 = vrot.slane %v1850, 4
      %v1853 = vshll.u32 %v1801, 16
      %v1855 = vrot.slane %v1853, 5
      %v1856 = vor.u32 %v1852, %v1855
      %v1857 = vrot.slane %v1856, 4
      %v1859 = vshll.u32 %v1802, 16
      %v1861 = vrot.slane %v1859, 5
      %v1862 = vsel %vm237, %v1857, %v1861
      %v1863 = vshrl.u32 %v1802, 16
      %v1865 = vrot.slane %v1863, 4
      %v1866 = vor.u32 %v1865, %v1861
      %v1867 = vrot.slane %v1866, 4
      %v1869 = vshll.u32 %v1803, 16
      %v1871 = vrot.slane %v1869, 5
      %v1872 = vsel %vm237, %v1867, %v1871
      %v1874 = vshrl.u32 %v1804, 16
      %v1876 = vrot.slane %v1874, 4
      %v1877 = vshll.u32 %v1804, 16
      %v1879 = vrot.slane %v1877, 5
      %v1880 = vor.u32 %v1876, %v1879
      %v1881 = vrot.slane %v1880, 4
      %v1883 = vshll.u32 %v1805, 16
      %v1885 = vrot.slane %v1883, 5
      %v1886 = vsel %vm237, %v1881, %v1885
      %v1887 = vshrl.u32 %v1805, 16
      %v1889 = vrot.slane %v1887, 4
      %v1890 = vor.u32 %v1889, %v1885
      %v1891 = vrot.slane %v1890, 4
      %v1893 = vshll.u32 %v1806, 16
      %v1895 = vrot.slane %v1893, 5
      %v1896 = vsel %vm237, %v1891, %v1895
      %v1898 = vshrl.u32 %v1807, 16
      %v1900 = vrot.slane %v1898, 4
      %v1901 = vshll.u32 %v1807, 16
      %v1903 = vrot.slane %v1901, 5
      %v1904 = vor.u32 %v1900, %v1903
      %v1905 = vrot.slane %v1904, 4
      %v1907 = vshll.u32 %v1808, 16
      %v1909 = vrot.slane %v1907, 5
      %v1910 = vsel %vm237, %v1905, %v1909
      %v1911 = vshrl.u32 %v1808, 16
      %v1913 = vrot.slane %v1911, 4
      %v1914 = vor.u32 %v1913, %v1909
      %v1915 = vrot.slane %v1914, 4
      %v1917 = vshll.u32 %v1809, 16
      %v1919 = vrot.slane %v1917, 5
      %v1920 = vsel %vm237, %v1915, %v1919
      %v1922 = vshrl.u32 %v1810, 16
      %v1924 = vrot.slane %v1922, 4
      %v1925 = vshll.u32 %v1810, 16
      %v1927 = vrot.slane %v1925, 5
      %v1928 = vor.u32 %v1924, %v1927
      %v1929 = vrot.slane %v1928, 4
      %v1931 = vshll.u32 %v1811, 16
      %v1933 = vrot.slane %v1931, 5
      %v1934 = vsel %vm237, %v1929, %v1933
      %v1935 = vshrl.u32 %v1811, 16
      %v1937 = vrot.slane %v1935, 4
      %v1938 = vor.u32 %v1937, %v1933
      %v1939 = vrot.slane %v1938, 4
      %v1941 = vshll.u32 %v1812, 16
      %v1943 = vrot.slane %v1941, 5
      %v1944 = vsel %vm237, %v1939, %v1943
      %v1946 = vshrl.u32 %v1813, 16
      %v1948 = vrot.slane %v1946, 4
      %v1949 = vshll.u32 %v1813, 16
      %v1951 = vrot.slane %v1949, 5
      %v1952 = vor.u32 %v1948, %v1951
      %v1953 = vrot.slane %v1952, 4
      %v1955 = vshll.u32 %v1814, 16
      %v1957 = vrot.slane %v1955, 5
      %v1958 = vsel %vm237, %v1953, %v1957
      %v1959 = vshrl.u32 %v1814, 16
      %v1961 = vrot.slane %v1959, 4
      %v1962 = vor.u32 %v1961, %v1957
      %v1963 = vrot.slane %v1962, 4
      %v1965 = vshll.u32 %v1815, 16
      %v1967 = vrot.slane %v1965, 5
      %v1968 = vsel %vm237, %v1963, %v1967
      %v1970 = vshrl.u32 %v1816, 16
      %v1972 = vrot.slane %v1970, 4
      %v1973 = vshll.u32 %v1816, 16
      %v1975 = vrot.slane %v1973, 5
      %v1976 = vor.u32 %v1972, %v1975
      %v1977 = vrot.slane %v1976, 4
      %v1979 = vshll.u32 %v1817, 16
      %v1981 = vrot.slane %v1979, 5
      %v1982 = vsel %vm237, %v1977, %v1981
      %v1983 = vshrl.u32 %v1817, 16
      %v1985 = vrot.slane %v1983, 4
      %v1986 = vor.u32 %v1985, %v1981
      %v1987 = vrot.slane %v1986, 4
      %v1989 = vshll.u32 %v1818, 16
      %v1991 = vrot.slane %v1989, 5
      %v1992 = vsel %vm237, %v1987, %v1991
      %v1994 = vshrl.u32 %v1819, 16
      %v1996 = vrot.slane %v1994, 4
      %v1997 = vshll.u32 %v1819, 16
      %v1999 = vrot.slane %v1997, 5
      %v2000 = vor.u32 %v1996, %v1999
      %v2001 = vrot.slane %v2000, 4
      %v2003 = vshll.u32 %v1820, 16
      %v2005 = vrot.slane %v2003, 5
      %v2006 = vsel %vm237, %v2001, %v2005
      %v2007 = vshrl.u32 %v1820, 16
      %v2009 = vrot.slane %v2007, 4
      %v2010 = vor.u32 %v2009, %v2005
      %v2011 = vrot.slane %v2010, 4
      %v2013 = vshll.u32 %v1821, 16
      %v2015 = vrot.slane %v2013, 5
      %v2016 = vsel %vm237, %v2011, %v2015
      %v2018 = vshrl.u32 %v1822, 16
      %v2020 = vrot.slane %v2018, 4
      %v2021 = vshll.u32 %v1822, 16
      %v2023 = vrot.slane %v2021, 5
      %v2024 = vor.u32 %v2020, %v2023
      %v2025 = vrot.slane %v2024, 4
      %v2027 = vshll.u32 %v1823, 16
      %v2029 = vrot.slane %v2027, 5
      %v2030 = vsel %vm237, %v2025, %v2029
      %v2031 = vshrl.u32 %v1823, 16
      %v2033 = vrot.slane %v2031, 4
      %v2034 = vor.u32 %v2033, %v2029
      %v2035 = vrot.slane %v2034, 4
      %v2037 = vshll.u32 %v1824, 16
      %v2039 = vrot.slane %v2037, 5
      %v2040 = vsel %vm237, %v2035, %v2039
      %v2042 = vshrl.u32 %v1825, 16
      %v2044 = vrot.slane %v2042, 4
      %v2045 = vshll.u32 %v1825, 16
      %v2047 = vrot.slane %v2045, 5
      %v2048 = vor.u32 %v2044, %v2047
      %v2049 = vrot.slane %v2048, 4
      %v2051 = vshll.u32 %v1826, 16
      %v2053 = vrot.slane %v2051, 5
      %v2054 = vsel %vm237, %v2049, %v2053
      %v2055 = vshrl.u32 %v1826, 16
      %v2057 = vrot.slane %v2055, 4
      %v2058 = vor.u32 %v2057, %v2053
      %v2059 = vrot.slane %v2058, 4
      %v2061 = vshll.u32 %v1827, 16
      %v2063 = vrot.slane %v2061, 5
      %v2064 = vsel %vm237, %v2059, %v2063
      %v2066 = vshrl.u32 %v1828, 16
      %v2068 = vrot.slane %v2066, 4
      %v2069 = vshll.u32 %v1828, 16
      %v2071 = vrot.slane %v2069, 5
      %v2072 = vor.u32 %v2068, %v2071
      %v2073 = vrot.slane %v2072, 4
      %v2075 = vshll.u32 %v1829, 16
      %v2077 = vrot.slane %v2075, 5
      %v2078 = vsel %vm237, %v2073, %v2077
      %v2079 = vshrl.u32 %v1829, 16
      %v2081 = vrot.slane %v2079, 4
      %v2082 = vor.u32 %v2081, %v2077
      %v2083 = vrot.slane %v2082, 4
      %v2085 = vshll.u32 %v1830, 16
      %v2087 = vrot.slane %v2085, 5
      %v2088 = vsel %vm237, %v2083, %v2087
      %v2090 = vshrl.u32 %v1831, 16
      %v2092 = vrot.slane %v2090, 4
      %v2093 = vshll.u32 %v1831, 16
      %v2095 = vrot.slane %v2093, 5
      %v2096 = vor.u32 %v2092, %v2095
      %v2097 = vrot.slane %v2096, 4
      %v2099 = vshll.u32 %v1832, 16
      %v2101 = vrot.slane %v2099, 5
      %v2102 = vsel %vm237, %v2097, %v2101
      %v2103 = vshrl.u32 %v1832, 16
      %v2105 = vrot.slane %v2103, 4
      %v2106 = vor.u32 %v2105, %v2101
      %v2107 = vrot.slane %v2106, 4
      %v2109 = vshll.u32 %v1833, 16
      %v2111 = vrot.slane %v2109, 5
      %v2112 = vsel %vm237, %v2107, %v2111
      %v2114 = vshrl.u32 %v1834, 16
      %v2116 = vrot.slane %v2114, 4
      %v2117 = vshll.u32 %v1834, 16
      %v2119 = vrot.slane %v2117, 5
      %v2120 = vor.u32 %v2116, %v2119
      %v2121 = vrot.slane %v2120, 4
      %v2123 = vshll.u32 %v1835, 16
      %v2125 = vrot.slane %v2123, 5
      %v2126 = vsel %vm237, %v2121, %v2125
      %v2127 = vshrl.u32 %v1835, 16
      %v2129 = vrot.slane %v2127, 4
      %v2130 = vor.u32 %v2129, %v2125
      %v2131 = vrot.slane %v2130, 4
      %v2133 = vshll.u32 %v1836, 16
      %v2135 = vrot.slane %v2133, 5
      %v2136 = vsel %vm237, %v2131, %v2135
      %v2138 = vshrl.u32 %v1837, 16
      %v2140 = vrot.slane %v2138, 4
      %v2141 = vshll.u32 %v1837, 16
      %v2143 = vrot.slane %v2141, 5
      %v2144 = vor.u32 %v2140, %v2143
      %v2145 = vrot.slane %v2144, 4
      %v2147 = vshll.u32 %v1838, 16
      %v2149 = vrot.slane %v2147, 5
      %v2150 = vsel %vm237, %v2145, %v2149
      %v2151 = vshrl.u32 %v1838, 16
      %v2153 = vrot.slane %v2151, 4
      %v2154 = vor.u32 %v2153, %v2149
      %v2155 = vrot.slane %v2154, 4
      %v2157 = vshll.u32 %v1839, 16
      %v2159 = vrot.slane %v2157, 5
      %v2160 = vsel %vm237, %v2155, %v2159
      %v2162 = vshrl.u32 %v1840, 16
      %v2164 = vrot.slane %v2162, 4
      %v2165 = vshll.u32 %v1840, 16
      %v2167 = vrot.slane %v2165, 5
      %v2168 = vor.u32 %v2164, %v2167
      %v2169 = vrot.slane %v2168, 4
      %v2171 = vshll.u32 %v1841, 16
      %v2173 = vrot.slane %v2171, 5
      %v2174 = vsel %vm237, %v2169, %v2173
      %v2175 = vshrl.u32 %v1841, 16
      %v2177 = vrot.slane %v2175, 4
      %v2178 = vor.u32 %v2177, %v2173
      %v2179 = vrot.slane %v2178, 4
      %v2181 = vshll.u32 %v1842, 16
      %v2183 = vrot.slane %v2181, 5
      %v2184 = vsel %vm237, %v2179, %v2183
      %v2186 = vshrl.u32 %v1843, 16
      %v2188 = vrot.slane %v2186, 4
      %v2189 = vshll.u32 %v1843, 16
      %v2191 = vrot.slane %v2189, 5
      %v2192 = vor.u32 %v2188, %v2191
      %v2193 = vrot.slane %v2192, 4
      %v2195 = vshll.u32 %v1844, 16
      %v2197 = vrot.slane %v2195, 5
      %v2198 = vsel %vm237, %v2193, %v2197
      %v2199 = vshrl.u32 %v1844, 16
      %v2201 = vrot.slane %v2199, 4
      %v2202 = vor.u32 %v2201, %v2197
      %v2203 = vrot.slane %v2202, 4
      %v2205 = vshll.u32 %v1845, 16
      %v2207 = vrot.slane %v2205, 5
      %v2208 = vsel %vm237, %v2203, %v2207
      %v2210 = vshrl.u32 %v1846, 16
      %v2212 = vrot.slane %v2210, 4
      %v2213 = vshll.u32 %v1846, 16
      %v2215 = vrot.slane %v2213, 5
      %v2216 = vor.u32 %v2212, %v2215
      %v2217 = vrot.slane %v2216, 4
      %v2219 = vshll.u32 %v1847, 16
      %v2221 = vrot.slane %v2219, 5
      %v2222 = vsel %vm237, %v2217, %v2221
      %v2223 = vshrl.u32 %v1847, 16
      %v2225 = vrot.slane %v2223, 4
      %v2226 = vor.u32 %v2225, %v2221
      %v2227 = vrot.slane %v2226, 4
      %v2229 = vshll.u32 %v1848, 16
      %v2231 = vrot.slane %v2229, 5
      %v2232 = vsel %vm237, %v2227, %v2231
      %s2233 = scalar_lea.vmem %s1, 256
      %v2234 = vld [vmem:[%s2233] sm:$0xf]
      %v2235 = vld [vmem:[%s2233 + $0x4] sm:$0xf]
      %v2236 = vld [vmem:[%s2233 + $0x8] sm:$0xf]
      %v2237 = vld [vmem:[%s2233 + $0xc] sm:$0xf]
      %v2238 = vld [vmem:[%s2233 + $0x10] sm:$0xf]
      %v2239 = vld [vmem:[%s2233 + $0x14] sm:$0xf]
      %v2240 = vld [vmem:[%s2233 + $0x18] sm:$0xf]
      %v2241 = vld [vmem:[%s2233 + $0x1c] sm:$0xf]
      %v2242 = vld [vmem:[%s2233 + $0x20] sm:$0xf]
      %v2243 = vld [vmem:[%s2233 + $0x24] sm:$0xf]
      %v2244 = vld [vmem:[%s2233 + $0x28] sm:$0xf]
      %v2245 = vld [vmem:[%s2233 + $0x2c] sm:$0xf]
      %v2246 = vld [vmem:[%s2233 + $0x30] sm:$0xf]
      %v2247 = vld [vmem:[%s2233 + $0x34] sm:$0xf]
      %v2248 = vld [vmem:[%s2233 + $0x38] sm:$0xf]
      %v2249 = vld [vmem:[%s2233 + $0x3c] sm:$0xf]
      %v2250 = vunpack.c.l.b16 %v1862
      %v2251 = vunpack.c.l.b16 %v1872
      %v2252 = vunpack.c.l.b16 %v1886
      %v2253 = vunpack.c.l.b16 %v1896
      %v2254 = vunpack.c.l.b16 %v1910
      %v2255 = vunpack.c.l.b16 %v1920
      %v2256 = vunpack.c.l.b16 %v1934
      %v2257 = vunpack.c.l.b16 %v1944
      %v2258 = vunpack.c.l.b16 %v1958
      %v2259 = vunpack.c.l.b16 %v1968
      %v2260 = vunpack.c.l.b16 %v1982
      %v2261 = vunpack.c.l.b16 %v1992
      %v2262 = vunpack.c.l.b16 %v2006
      %v2263 = vunpack.c.l.b16 %v2016
      %v2264 = vunpack.c.l.b16 %v2030
      %v2265 = vunpack.c.l.b16 %v2040
      %v2266 = vunpack.c.l.b16 %v2054
      %v2267 = vunpack.c.l.b16 %v2064
      %v2268 = vunpack.c.l.b16 %v2078
      %v2269 = vunpack.c.l.b16 %v2088
      %v2270 = vunpack.c.l.b16 %v2102
      %v2271 = vunpack.c.l.b16 %v2112
      %v2272 = vunpack.c.l.b16 %v2126
      %v2273 = vunpack.c.l.b16 %v2136
      %v2274 = vunpack.c.l.b16 %v2150
      %v2275 = vunpack.c.l.b16 %v2160
      %v2276 = vunpack.c.l.b16 %v2174
      %v2277 = vunpack.c.l.b16 %v2184
      %v2278 = vunpack.c.l.b16 %v2198
      %v2279 = vunpack.c.l.b16 %v2208
      %v2280 = vunpack.c.l.b16 %v2222
      %v2281 = vunpack.c.l.b16 %v2232
      %v2282 = vpack.c.b16 %v2251, %v2250
      %v2283 = vpack.c.b16 %v2253, %v2252
      %v2284 = vpack.c.b16 %v2255, %v2254
      %v2285 = vpack.c.b16 %v2257, %v2256
      %v2286 = vpack.c.b16 %v2259, %v2258
      %v2287 = vpack.c.b16 %v2261, %v2260
      %v2288 = vpack.c.b16 %v2263, %v2262
      %v2289 = vpack.c.b16 %v2265, %v2264
      %v2290 = vpack.c.b16 %v2267, %v2266
      %v2291 = vpack.c.b16 %v2269, %v2268
      %v2292 = vpack.c.b16 %v2271, %v2270
      %v2293 = vpack.c.b16 %v2273, %v2272
      %v2294 = vpack.c.b16 %v2275, %v2274
      %v2295 = vpack.c.b16 %v2277, %v2276
      %v2296 = vpack.c.b16 %v2279, %v2278
      %v2297 = vpack.c.b16 %v2281, %v2280
      %v2330 = vunpack.c.l.b16 %v2234
      %v2331 = vunpack.c.l.b16 %v2235
      %v2332 = vunpack.c.l.b16 %v2236
      %v2333 = vunpack.c.l.b16 %v2237
      %v2334 = vunpack.c.l.b16 %v2238
      %v2335 = vunpack.c.l.b16 %v2239
      %v2336 = vunpack.c.l.b16 %v2240
      %v2337 = vunpack.c.l.b16 %v2241
      %v2338 = vunpack.c.l.b16 %v2242
      %v2339 = vunpack.c.l.b16 %v2243
      %v2340 = vunpack.c.l.b16 %v2244
      %v2341 = vunpack.c.l.b16 %v2245
      %v2342 = vunpack.c.l.b16 %v2246
      %v2343 = vunpack.c.l.b16 %v2247
      %v2344 = vunpack.c.l.b16 %v2248
      %v2345 = vunpack.c.l.b16 %v2249
      %v2346 = vpack.c.b16 %v2331, %v2330
      %v2347 = vpack.c.b16 %v2333, %v2332
      %v2348 = vpack.c.b16 %v2335, %v2334
      %v2349 = vpack.c.b16 %v2337, %v2336
      %v2350 = vpack.c.b16 %v2339, %v2338
      %v2351 = vpack.c.b16 %v2341, %v2340
      %v2352 = vpack.c.b16 %v2343, %v2342
      %v2353 = vpack.c.b16 %v2345, %v2344
      %2362 = vmatpush.bf16.msra.mxu0 %v2353
      %2363 = vmatpush.bf16.msra.mxu0 %v2352
      %2364 = vmatpush.bf16.msra.mxu0 %v2351
      %2365 = vmatpush.bf16.msra.mxu0 %v2350
      %2366 = vmatpush.bf16.msra.mxu0 %v2349
      %2367 = vmatpush.bf16.msra.mxu0 %v2348
      %2368 = vmatpush.bf16.msra.mxu0 %v2347
      %2369 = vmatpush.bf16.msra.mxu0 %v2346
      %2370 = vmatmul.bf16.gmra.mxu0 %v2282
      %v2371 = vpop.f32.mrf.mxu0
      %v2372 = vadd.f32 0.0, %v2371
      %v2373 = vpop.f32.mrf.mxu0
      %v2374 = vadd.f32 0.0, %v2373
      %2375 = vmatmul.bf16.gmra.mxu0 %v2283
      %v2376 = vpop.f32.mrf.mxu0
      %v2377 = vadd.f32 0.0, %v2376
      %v2378 = vpop.f32.mrf.mxu0
      %v2379 = vadd.f32 0.0, %v2378
      %2380 = vmatmul.bf16.gmra.mxu0 %v2284
      %v2381 = vpop.f32.mrf.mxu0
      %v2382 = vadd.f32 0.0, %v2381
      %v2383 = vpop.f32.mrf.mxu0
      %v2384 = vadd.f32 0.0, %v2383
      %2385 = vmatmul.bf16.gmra.mxu0 %v2285
      %v2386 = vpop.f32.mrf.mxu0
      %v2387 = vadd.f32 0.0, %v2386
      %v2388 = vpop.f32.mrf.mxu0
      %v2389 = vadd.f32 0.0, %v2388
      %2390 = vmatmul.bf16.gmra.mxu0 %v2286
      %v2391 = vpop.f32.mrf.mxu0
      %v2392 = vadd.f32 0.0, %v2391
      %v2393 = vpop.f32.mrf.mxu0
      %v2394 = vadd.f32 0.0, %v2393
      %2395 = vmatmul.bf16.gmra.mxu0 %v2287
      %v2396 = vpop.f32.mrf.mxu0
      %v2397 = vadd.f32 0.0, %v2396
      %v2398 = vpop.f32.mrf.mxu0
      %v2399 = vadd.f32 0.0, %v2398
      %2400 = vmatmul.bf16.gmra.mxu0 %v2288
      %v2401 = vpop.f32.mrf.mxu0
      %v2402 = vadd.f32 0.0, %v2401
      %v2403 = vpop.f32.mrf.mxu0
      %v2404 = vadd.f32 0.0, %v2403
      %2405 = vmatmul.bf16.gmra.mxu0 %v2289
      %v2406 = vpop.f32.mrf.mxu0
      %v2407 = vadd.f32 0.0, %v2406
      %v2408 = vpop.f32.mrf.mxu0
      %v2409 = vadd.f32 0.0, %v2408
      %2410 = vmatmul.bf16.gmra.mxu0 %v2290
      %v2411 = vpop.f32.mrf.mxu0
      %v2412 = vadd.f32 0.0, %v2411
      %v2413 = vpop.f32.mrf.mxu0
      %v2414 = vadd.f32 0.0, %v2413
      %2415 = vmatmul.bf16.gmra.mxu0 %v2291
      %v2416 = vpop.f32.mrf.mxu0
      %v2417 = vadd.f32 0.0, %v2416
      %v2418 = vpop.f32.mrf.mxu0
      %v2419 = vadd.f32 0.0, %v2418
      %2420 = vmatmul.bf16.gmra.mxu0 %v2292
      %v2421 = vpop.f32.mrf.mxu0
      %v2422 = vadd.f32 0.0, %v2421
      %v2423 = vpop.f32.mrf.mxu0
      %v2424 = vadd.f32 0.0, %v2423
      %2425 = vmatmul.bf16.gmra.mxu0 %v2293
      %v2426 = vpop.f32.mrf.mxu0
      %v2427 = vadd.f32 0.0, %v2426
      %v2428 = vpop.f32.mrf.mxu0
      %v2429 = vadd.f32 0.0, %v2428
      %2430 = vmatmul.bf16.gmra.mxu0 %v2294
      %v2431 = vpop.f32.mrf.mxu0
      %v2432 = vadd.f32 0.0, %v2431
      %v2433 = vpop.f32.mrf.mxu0
      %v2434 = vadd.f32 0.0, %v2433
      %2435 = vmatmul.bf16.gmra.mxu0 %v2295
      %v2436 = vpop.f32.mrf.mxu0
      %v2437 = vadd.f32 0.0, %v2436
      %v2438 = vpop.f32.mrf.mxu0
      %v2439 = vadd.f32 0.0, %v2438
      %2440 = vmatmul.bf16.gmra.mxu0 %v2296
      %v2441 = vpop.f32.mrf.mxu0
      %v2442 = vadd.f32 0.0, %v2441
      %v2443 = vpop.f32.mrf.mxu0
      %v2444 = vadd.f32 0.0, %v2443
      %2445 = vmatmul.bf16.gmra.mxu0 %v2297
      %v2446 = vpop.f32.mrf.mxu0
      %v2447 = vadd.f32 0.0, %v2446
      %v2448 = vpop.f32.mrf.mxu0
      %v2449 = vadd.f32 0.0, %v2448
      %2450 = vdwg.mxu0
      %v2451 = vadd.f32 %v1769, %v2372
      %v2452 = vadd.f32 %v1770, %v2374
      %v2453 = vadd.f32 %v1771, %v2377
      %v2454 = vadd.f32 %v1772, %v2379
      %v2455 = vadd.f32 %v1773, %v2382
      %v2456 = vadd.f32 %v1774, %v2384
      %v2457 = vadd.f32 %v1775, %v2387
      %v2458 = vadd.f32 %v1776, %v2389
      %v2459 = vadd.f32 %v1777, %v2392
      %v2460 = vadd.f32 %v1778, %v2394
      %v2461 = vadd.f32 %v1779, %v2397
      %v2462 = vadd.f32 %v1780, %v2399
      %v2463 = vadd.f32 %v1781, %v2402
      %v2464 = vadd.f32 %v1782, %v2404
      %v2465 = vadd.f32 %v1783, %v2407
      %v2466 = vadd.f32 %v1784, %v2409
      %v2467 = vadd.f32 %v1785, %v2412
      %v2468 = vadd.f32 %v1786, %v2414
      %v2469 = vadd.f32 %v1787, %v2417
      %v2470 = vadd.f32 %v1788, %v2419
      %v2471 = vadd.f32 %v1789, %v2422
      %v2472 = vadd.f32 %v1790, %v2424
      %v2473 = vadd.f32 %v1791, %v2427
      %v2474 = vadd.f32 %v1792, %v2429
      %v2475 = vadd.f32 %v1793, %v2432
      %v2476 = vadd.f32 %v1794, %v2434
      %v2477 = vadd.f32 %v1795, %v2437
      %v2478 = vadd.f32 %v1796, %v2439
      %v2479 = vadd.f32 %v1797, %v2442
      %v2480 = vadd.f32 %v1798, %v2444
      %v2481 = vadd.f32 %v1799, %v2447
      %v2482 = vadd.f32 %v1800, %v2449
      %v2483 = vld [vmem:[%s1486] sm:$0xe]
      %v2484 = vld [vmem:[%s1486 + $0xc] sm:$0xe]
      %v2485 = vld [vmem:[%s1486 + $0x18] sm:$0xe]
      %v2486 = vld [vmem:[%s1486 + $0x24] sm:$0xe]
      %v2487 = vld [vmem:[%s1486 + $0x30] sm:$0xe]
      %v2488 = vld [vmem:[%s1486 + $0x3c] sm:$0xe]
      %v2489 = vld [vmem:[%s1486 + $0x48] sm:$0xe]
      %v2490 = vld [vmem:[%s1486 + $0x54] sm:$0xe]
      %v2491 = vld [vmem:[%s1486 + $0x60] sm:$0xe]
      %v2492 = vld [vmem:[%s1486 + $0x6c] sm:$0xe]
      %v2493 = vld [vmem:[%s1486 + $0x78] sm:$0xe]
      %v2494 = vld [vmem:[%s1486 + $0x84] sm:$0xe]
      %v2495 = vld [vmem:[%s1486 + $0x90] sm:$0xe]
      %v2496 = vld [vmem:[%s1486 + $0x9c] sm:$0xe]
      %v2497 = vld [vmem:[%s1486 + $0xa8] sm:$0xe]
      %v2498 = vld [vmem:[%s1486 + $0xb4] sm:$0xe]
      %v2547 = vrot.slane %v2483, 5
      %v2548 = vrot.slane %v2547, 4
      %v2549 = vrot.slane %v1802, 5
      %v2550 = vsel %vm1123, %v2548, %v2549
      %v2551 = vrot.slane %v2549, 4
      %v2552 = vrot.slane %v1803, 5
      %v2553 = vsel %vm1123, %v2551, %v2552
      %v2554 = vrot.slane %v2484, 5
      %v2555 = vrot.slane %v2554, 4
      %v2556 = vrot.slane %v1805, 5
      %v2557 = vsel %vm1123, %v2555, %v2556
      %v2558 = vrot.slane %v2556, 4
      %v2559 = vrot.slane %v1806, 5
      %v2560 = vsel %vm1123, %v2558, %v2559
      %v2561 = vrot.slane %v2485, 5
      %v2562 = vrot.slane %v2561, 4
      %v2563 = vrot.slane %v1808, 5
      %v2564 = vsel %vm1123, %v2562, %v2563
      %v2565 = vrot.slane %v2563, 4
      %v2566 = vrot.slane %v1809, 5
      %v2567 = vsel %vm1123, %v2565, %v2566
      %v2568 = vrot.slane %v2486, 5
      %v2569 = vrot.slane %v2568, 4
      %v2570 = vrot.slane %v1811, 5
      %v2571 = vsel %vm1123, %v2569, %v2570
      %v2572 = vrot.slane %v2570, 4
      %v2573 = vrot.slane %v1812, 5
      %v2574 = vsel %vm1123, %v2572, %v2573
      %v2575 = vrot.slane %v2487, 5
      %v2576 = vrot.slane %v2575, 4
      %v2577 = vrot.slane %v1814, 5
      %v2578 = vsel %vm1123, %v2576, %v2577
      %v2579 = vrot.slane %v2577, 4
      %v2580 = vrot.slane %v1815, 5
      %v2581 = vsel %vm1123, %v2579, %v2580
      %v2582 = vrot.slane %v2488, 5
      %v2583 = vrot.slane %v2582, 4
      %v2584 = vrot.slane %v1817, 5
      %v2585 = vsel %vm1123, %v2583, %v2584
      %v2586 = vrot.slane %v2584, 4
      %v2587 = vrot.slane %v1818, 5
      %v2588 = vsel %vm1123, %v2586, %v2587
      %v2589 = vrot.slane %v2489, 5
      %v2590 = vrot.slane %v2589, 4
      %v2591 = vrot.slane %v1820, 5
      %v2592 = vsel %vm1123, %v2590, %v2591
      %v2593 = vrot.slane %v2591, 4
      %v2594 = vrot.slane %v1821, 5
      %v2595 = vsel %vm1123, %v2593, %v2594
      %v2596 = vrot.slane %v2490, 5
      %v2597 = vrot.slane %v2596, 4
      %v2598 = vrot.slane %v1823, 5
      %v2599 = vsel %vm1123, %v2597, %v2598
      %v2600 = vrot.slane %v2598, 4
      %v2601 = vrot.slane %v1824, 5
      %v2602 = vsel %vm1123, %v2600, %v2601
      %v2603 = vrot.slane %v2491, 5
      %v2604 = vrot.slane %v2603, 4
      %v2605 = vrot.slane %v1826, 5
      %v2606 = vsel %vm1123, %v2604, %v2605
      %v2607 = vrot.slane %v2605, 4
      %v2608 = vrot.slane %v1827, 5
      %v2609 = vsel %vm1123, %v2607, %v2608
      %v2610 = vrot.slane %v2492, 5
      %v2611 = vrot.slane %v2610, 4
      %v2612 = vrot.slane %v1829, 5
      %v2613 = vsel %vm1123, %v2611, %v2612
      %v2614 = vrot.slane %v2612, 4
      %v2615 = vrot.slane %v1830, 5
      %v2616 = vsel %vm1123, %v2614, %v2615
      %v2617 = vrot.slane %v2493, 5
      %v2618 = vrot.slane %v2617, 4
      %v2619 = vrot.slane %v1832, 5
      %v2620 = vsel %vm1123, %v2618, %v2619
      %v2621 = vrot.slane %v2619, 4
      %v2622 = vrot.slane %v1833, 5
      %v2623 = vsel %vm1123, %v2621, %v2622
      %v2624 = vrot.slane %v2494, 5
      %v2625 = vrot.slane %v2624, 4
      %v2626 = vrot.slane %v1835, 5
      %v2627 = vsel %vm1123, %v2625, %v2626
      %v2628 = vrot.slane %v2626, 4
      %v2629 = vrot.slane %v1836, 5
      %v2630 = vsel %vm1123, %v2628, %v2629
      %v2631 = vrot.slane %v2495, 5
      %v2632 = vrot.slane %v2631, 4
      %v2633 = vrot.slane %v1838, 5
      %v2634 = vsel %vm1123, %v2632, %v2633
      %v2635 = vrot.slane %v2633, 4
      %v2636 = vrot.slane %v1839, 5
      %v2637 = vsel %vm1123, %v2635, %v2636
      %v2638 = vrot.slane %v2496, 5
      %v2639 = vrot.slane %v2638, 4
      %v2640 = vrot.slane %v1841, 5
      %v2641 = vsel %vm1123, %v2639, %v2640
      %v2642 = vrot.slane %v2640, 4
      %v2643 = vrot.slane %v1842, 5
      %v2644 = vsel %vm1123, %v2642, %v2643
      %v2645 = vrot.slane %v2497, 5
      %v2646 = vrot.slane %v2645, 4
      %v2647 = vrot.slane %v1844, 5
      %v2648 = vsel %vm1123, %v2646, %v2647
      %v2649 = vrot.slane %v2647, 4
      %v2650 = vrot.slane %v1845, 5
      %v2651 = vsel %vm1123, %v2649, %v2650
      %v2652 = vrot.slane %v2498, 5
      %v2653 = vrot.slane %v2652, 4
      %v2654 = vrot.slane %v1847, 5
      %v2655 = vsel %vm1123, %v2653, %v2654
      %v2656 = vrot.slane %v2654, 4
      %v2657 = vrot.slane %v1848, 5
      %v2658 = vsel %vm1123, %v2656, %v2657
      %s2659 = scalar_lea.vmem %s1, 320
      %v2660 = vld [vmem:[%s2659] sm:$0xf]
      %v2661 = vld [vmem:[%s2659 + $0x4] sm:$0xf]
      %v2662 = vld [vmem:[%s2659 + $0x8] sm:$0xf]
      %v2663 = vld [vmem:[%s2659 + $0xc] sm:$0xf]
      %v2664 = vld [vmem:[%s2659 + $0x10] sm:$0xf]
      %v2665 = vld [vmem:[%s2659 + $0x14] sm:$0xf]
      %v2666 = vld [vmem:[%s2659 + $0x18] sm:$0xf]
      %v2667 = vld [vmem:[%s2659 + $0x1c] sm:$0xf]
      %v2668 = vld [vmem:[%s2659 + $0x20] sm:$0xf]
      %v2669 = vld [vmem:[%s2659 + $0x24] sm:$0xf]
      %v2670 = vld [vmem:[%s2659 + $0x28] sm:$0xf]
      %v2671 = vld [vmem:[%s2659 + $0x2c] sm:$0xf]
      %v2672 = vld [vmem:[%s2659 + $0x30] sm:$0xf]
      %v2673 = vld [vmem:[%s2659 + $0x34] sm:$0xf]
      %v2674 = vld [vmem:[%s2659 + $0x38] sm:$0xf]
      %v2675 = vld [vmem:[%s2659 + $0x3c] sm:$0xf]
      %v2676 = vunpack.c.l.b16 %v2550
      %v2677 = vunpack.c.l.b16 %v2553
      %v2678 = vunpack.c.l.b16 %v2557
      %v2679 = vunpack.c.l.b16 %v2560
      %v2680 = vunpack.c.l.b16 %v2564
      %v2681 = vunpack.c.l.b16 %v2567
      %v2682 = vunpack.c.l.b16 %v2571
      %v2683 = vunpack.c.l.b16 %v2574
      %v2684 = vunpack.c.l.b16 %v2578
      %v2685 = vunpack.c.l.b16 %v2581
      %v2686 = vunpack.c.l.b16 %v2585
      %v2687 = vunpack.c.l.b16 %v2588
      %v2688 = vunpack.c.l.b16 %v2592
      %v2689 = vunpack.c.l.b16 %v2595
      %v2690 = vunpack.c.l.b16 %v2599
      %v2691 = vunpack.c.l.b16 %v2602
      %v2692 = vunpack.c.l.b16 %v2606
      %v2693 = vunpack.c.l.b16 %v2609
      %v2694 = vunpack.c.l.b16 %v2613
      %v2695 = vunpack.c.l.b16 %v2616
      %v2696 = vunpack.c.l.b16 %v2620
      %v2697 = vunpack.c.l.b16 %v2623
      %v2698 = vunpack.c.l.b16 %v2627
      %v2699 = vunpack.c.l.b16 %v2630
      %v2700 = vunpack.c.l.b16 %v2634
      %v2701 = vunpack.c.l.b16 %v2637
      %v2702 = vunpack.c.l.b16 %v2641
      %v2703 = vunpack.c.l.b16 %v2644
      %v2704 = vunpack.c.l.b16 %v2648
      %v2705 = vunpack.c.l.b16 %v2651
      %v2706 = vunpack.c.l.b16 %v2655
      %v2707 = vunpack.c.l.b16 %v2658
      %v2708 = vpack.c.b16 %v2677, %v2676
      %v2709 = vpack.c.b16 %v2679, %v2678
      %v2710 = vpack.c.b16 %v2681, %v2680
      %v2711 = vpack.c.b16 %v2683, %v2682
      %v2712 = vpack.c.b16 %v2685, %v2684
      %v2713 = vpack.c.b16 %v2687, %v2686
      %v2714 = vpack.c.b16 %v2689, %v2688
      %v2715 = vpack.c.b16 %v2691, %v2690
      %v2716 = vpack.c.b16 %v2693, %v2692
      %v2717 = vpack.c.b16 %v2695, %v2694
      %v2718 = vpack.c.b16 %v2697, %v2696
      %v2719 = vpack.c.b16 %v2699, %v2698
      %v2720 = vpack.c.b16 %v2701, %v2700
      %v2721 = vpack.c.b16 %v2703, %v2702
      %v2722 = vpack.c.b16 %v2705, %v2704
      %v2723 = vpack.c.b16 %v2707, %v2706
      %v2756 = vunpack.c.l.b16 %v2660
      %v2757 = vunpack.c.l.b16 %v2661
      %v2758 = vunpack.c.l.b16 %v2662
      %v2759 = vunpack.c.l.b16 %v2663
      %v2760 = vunpack.c.l.b16 %v2664
      %v2761 = vunpack.c.l.b16 %v2665
      %v2762 = vunpack.c.l.b16 %v2666
      %v2763 = vunpack.c.l.b16 %v2667
      %v2764 = vunpack.c.l.b16 %v2668
      %v2765 = vunpack.c.l.b16 %v2669
      %v2766 = vunpack.c.l.b16 %v2670
      %v2767 = vunpack.c.l.b16 %v2671
      %v2768 = vunpack.c.l.b16 %v2672
      %v2769 = vunpack.c.l.b16 %v2673
      %v2770 = vunpack.c.l.b16 %v2674
      %v2771 = vunpack.c.l.b16 %v2675
      %v2772 = vpack.c.b16 %v2757, %v2756
      %v2773 = vpack.c.b16 %v2759, %v2758
      %v2774 = vpack.c.b16 %v2761, %v2760
      %v2775 = vpack.c.b16 %v2763, %v2762
      %v2776 = vpack.c.b16 %v2765, %v2764
      %v2777 = vpack.c.b16 %v2767, %v2766
      %v2778 = vpack.c.b16 %v2769, %v2768
      %v2779 = vpack.c.b16 %v2771, %v2770
      %2788 = vmatpush.bf16.msra.mxu0 %v2779
      %2789 = vmatpush.bf16.msra.mxu0 %v2778
      %2790 = vmatpush.bf16.msra.mxu0 %v2777
      %2791 = vmatpush.bf16.msra.mxu0 %v2776
      %2792 = vmatpush.bf16.msra.mxu0 %v2775
      %2793 = vmatpush.bf16.msra.mxu0 %v2774
      %2794 = vmatpush.bf16.msra.mxu0 %v2773
      %2795 = vmatpush.bf16.msra.mxu0 %v2772
      %2796 = vmatmul.bf16.gmra.mxu0 %v2708
      %v2797 = vpop.f32.mrf.mxu0
      %v2798 = vadd.f32 0.0, %v2797
      %v2799 = vpop.f32.mrf.mxu0
      %v2800 = vadd.f32 0.0, %v2799
      %2801 = vmatmul.bf16.gmra.mxu0 %v2709
      %v2802 = vpop.f32.mrf.mxu0
      %v2803 = vadd.f32 0.0, %v2802
      %v2804 = vpop.f32.mrf.mxu0
      %v2805 = vadd.f32 0.0, %v2804
      %2806 = vmatmul.bf16.gmra.mxu0 %v2710
      %v2807 = vpop.f32.mrf.mxu0
      %v2808 = vadd.f32 0.0, %v2807
      %v2809 = vpop.f32.mrf.mxu0
      %v2810 = vadd.f32 0.0, %v2809
      %2811 = vmatmul.bf16.gmra.mxu0 %v2711
      %v2812 = vpop.f32.mrf.mxu0
      %v2813 = vadd.f32 0.0, %v2812
      %v2814 = vpop.f32.mrf.mxu0
      %v2815 = vadd.f32 0.0, %v2814
      %2816 = vmatmul.bf16.gmra.mxu0 %v2712
      %v2817 = vpop.f32.mrf.mxu0
      %v2818 = vadd.f32 0.0, %v2817
      %v2819 = vpop.f32.mrf.mxu0
      %v2820 = vadd.f32 0.0, %v2819
      %2821 = vmatmul.bf16.gmra.mxu0 %v2713
      %v2822 = vpop.f32.mrf.mxu0
      %v2823 = vadd.f32 0.0, %v2822
      %v2824 = vpop.f32.mrf.mxu0
      %v2825 = vadd.f32 0.0, %v2824
      %2826 = vmatmul.bf16.gmra.mxu0 %v2714
      %v2827 = vpop.f32.mrf.mxu0
      %v2828 = vadd.f32 0.0, %v2827
      %v2829 = vpop.f32.mrf.mxu0
      %v2830 = vadd.f32 0.0, %v2829
      %2831 = vmatmul.bf16.gmra.mxu0 %v2715
      %v2832 = vpop.f32.mrf.mxu0
      %v2833 = vadd.f32 0.0, %v2832
      %v2834 = vpop.f32.mrf.mxu0
      %v2835 = vadd.f32 0.0, %v2834
      %2836 = vmatmul.bf16.gmra.mxu0 %v2716
      %v2837 = vpop.f32.mrf.mxu0
      %v2838 = vadd.f32 0.0, %v2837
      %v2839 = vpop.f32.mrf.mxu0
      %v2840 = vadd.f32 0.0, %v2839
      %2841 = vmatmul.bf16.gmra.mxu0 %v2717
      %v2842 = vpop.f32.mrf.mxu0
      %v2843 = vadd.f32 0.0, %v2842
      %v2844 = vpop.f32.mrf.mxu0
      %v2845 = vadd.f32 0.0, %v2844
      %2846 = vmatmul.bf16.gmra.mxu0 %v2718
      %v2847 = vpop.f32.mrf.mxu0
      %v2848 = vadd.f32 0.0, %v2847
      %v2849 = vpop.f32.mrf.mxu0
      %v2850 = vadd.f32 0.0, %v2849
      %2851 = vmatmul.bf16.gmra.mxu0 %v2719
      %v2852 = vpop.f32.mrf.mxu0
      %v2853 = vadd.f32 0.0, %v2852
      %v2854 = vpop.f32.mrf.mxu0
      %v2855 = vadd.f32 0.0, %v2854
      %2856 = vmatmul.bf16.gmra.mxu0 %v2720
      %v2857 = vpop.f32.mrf.mxu0
      %v2858 = vadd.f32 0.0, %v2857
      %v2859 = vpop.f32.mrf.mxu0
      %v2860 = vadd.f32 0.0, %v2859
      %2861 = vmatmul.bf16.gmra.mxu0 %v2721
      %v2862 = vpop.f32.mrf.mxu0
      %v2863 = vadd.f32 0.0, %v2862
      %v2864 = vpop.f32.mrf.mxu0
      %v2865 = vadd.f32 0.0, %v2864
      %2866 = vmatmul.bf16.gmra.mxu0 %v2722
      %v2867 = vpop.f32.mrf.mxu0
      %v2868 = vadd.f32 0.0, %v2867
      %v2869 = vpop.f32.mrf.mxu0
      %v2870 = vadd.f32 0.0, %v2869
      %2871 = vmatmul.bf16.gmra.mxu0 %v2723
      %v2872 = vpop.f32.mrf.mxu0
      %v2873 = vadd.f32 0.0, %v2872
      %v2874 = vpop.f32.mrf.mxu0
      %v2875 = vadd.f32 0.0, %v2874
      %2876 = vdwg.mxu0
      %v2877 = vadd.f32 %v2451, %v2798
      %v2878 = vadd.f32 %v2452, %v2800
      %v2879 = vadd.f32 %v2453, %v2803
      %v2880 = vadd.f32 %v2454, %v2805
      %v2881 = vadd.f32 %v2455, %v2808
      %v2882 = vadd.f32 %v2456, %v2810
      %v2883 = vadd.f32 %v2457, %v2813
      %v2884 = vadd.f32 %v2458, %v2815
      %v2885 = vadd.f32 %v2459, %v2818
      %v2886 = vadd.f32 %v2460, %v2820
      %v2887 = vadd.f32 %v2461, %v2823
      %v2888 = vadd.f32 %v2462, %v2825
      %v2889 = vadd.f32 %v2463, %v2828
      %v2890 = vadd.f32 %v2464, %v2830
      %v2891 = vadd.f32 %v2465, %v2833
      %v2892 = vadd.f32 %v2466, %v2835
      %v2893 = vadd.f32 %v2467, %v2838
      %v2894 = vadd.f32 %v2468, %v2840
      %v2895 = vadd.f32 %v2469, %v2843
      %v2896 = vadd.f32 %v2470, %v2845
      %v2897 = vadd.f32 %v2471, %v2848
      %v2898 = vadd.f32 %v2472, %v2850
      %v2899 = vadd.f32 %v2473, %v2853
      %v2900 = vadd.f32 %v2474, %v2855
      %v2901 = vadd.f32 %v2475, %v2858
      %v2902 = vadd.f32 %v2476, %v2860
      %v2903 = vadd.f32 %v2477, %v2863
      %v2904 = vadd.f32 %v2478, %v2865
      %v2905 = vadd.f32 %v2479, %v2868
      %v2906 = vadd.f32 %v2480, %v2870
      %v2907 = vadd.f32 %v2481, %v2873
      %v2908 = vadd.f32 %v2482, %v2875
      %s2909 = scalar_lea.vmem %s165, 24
      %v2910 = vld [vmem:[%s2909] sm:$0xf]
      %v2911 = vld [vmem:[%s2909 + $0x4] sm:$0xf]
      %v2912 = vld [vmem:[%s2909 + $0xc] sm:$0xf]
      %v2913 = vld [vmem:[%s2909 + $0x10] sm:$0xf]
      %v2914 = vld [vmem:[%s2909 + $0x18] sm:$0xf]
      %v2915 = vld [vmem:[%s2909 + $0x1c] sm:$0xf]
      %v2916 = vld [vmem:[%s2909 + $0x24] sm:$0xf]
      %v2917 = vld [vmem:[%s2909 + $0x28] sm:$0xf]
      %v2918 = vld [vmem:[%s2909 + $0x30] sm:$0xf]
      %v2919 = vld [vmem:[%s2909 + $0x34] sm:$0xf]
      %v2920 = vld [vmem:[%s2909 + $0x3c] sm:$0xf]
      %v2921 = vld [vmem:[%s2909 + $0x40] sm:$0xf]
      %v2922 = vld [vmem:[%s2909 + $0x48] sm:$0xf]
      %v2923 = vld [vmem:[%s2909 + $0x4c] sm:$0xf]
      %v2924 = vld [vmem:[%s2909 + $0x54] sm:$0xf]
      %v2925 = vld [vmem:[%s2909 + $0x58] sm:$0xf]
      %v2926 = vld [vmem:[%s2909 + $0x60] sm:$0xf]
      %v2927 = vld [vmem:[%s2909 + $0x64] sm:$0xf]
      %v2928 = vld [vmem:[%s2909 + $0x6c] sm:$0xf]
      %v2929 = vld [vmem:[%s2909 + $0x70] sm:$0xf]
      %v2930 = vld [vmem:[%s2909 + $0x78] sm:$0xf]
      %v2931 = vld [vmem:[%s2909 + $0x7c] sm:$0xf]
      %v2932 = vld [vmem:[%s2909 + $0x84] sm:$0xf]
      %v2933 = vld [vmem:[%s2909 + $0x88] sm:$0xf]
      %v2934 = vld [vmem:[%s2909 + $0x90] sm:$0xf]
      %v2935 = vld [vmem:[%s2909 + $0x94] sm:$0xf]
      %v2936 = vld [vmem:[%s2909 + $0x9c] sm:$0xf]
      %v2937 = vld [vmem:[%s2909 + $0xa0] sm:$0xf]
      %v2938 = vld [vmem:[%s2909 + $0xa8] sm:$0xf]
      %v2939 = vld [vmem:[%s2909 + $0xac] sm:$0xf]
      %v2940 = vld [vmem:[%s2909 + $0xb4] sm:$0xf]
      %v2941 = vld [vmem:[%s2909 + $0xb8] sm:$0xf]
      %s2942 = scalar_lea.vmem %s1, 384
      %v2943 = vld [vmem:[%s2942] sm:$0xf]
      %v2944 = vld [vmem:[%s2942 + $0x4] sm:$0xf]
      %v2945 = vld [vmem:[%s2942 + $0x8] sm:$0xf]
      %v2946 = vld [vmem:[%s2942 + $0xc] sm:$0xf]
      %v2947 = vld [vmem:[%s2942 + $0x10] sm:$0xf]
      %v2948 = vld [vmem:[%s2942 + $0x14] sm:$0xf]
      %v2949 = vld [vmem:[%s2942 + $0x18] sm:$0xf]
      %v2950 = vld [vmem:[%s2942 + $0x1c] sm:$0xf]
      %v2951 = vld [vmem:[%s2942 + $0x20] sm:$0xf]
      %v2952 = vld [vmem:[%s2942 + $0x24] sm:$0xf]
      %v2953 = vld [vmem:[%s2942 + $0x28] sm:$0xf]
      %v2954 = vld [vmem:[%s2942 + $0x2c] sm:$0xf]
      %v2955 = vld [vmem:[%s2942 + $0x30] sm:$0xf]
      %v2956 = vld [vmem:[%s2942 + $0x34] sm:$0xf]
      %v2957 = vld [vmem:[%s2942 + $0x38] sm:$0xf]
      %v2958 = vld [vmem:[%s2942 + $0x3c] sm:$0xf]
      %v2991 = vunpack.c.l.b16 %v2910
      %v2992 = vunpack.c.l.b16 %v2911
      %v2993 = vunpack.c.l.b16 %v2912
      %v2994 = vunpack.c.l.b16 %v2913
      %v2995 = vunpack.c.l.b16 %v2914
      %v2996 = vunpack.c.l.b16 %v2915
      %v2997 = vunpack.c.l.b16 %v2916
      %v2998 = vunpack.c.l.b16 %v2917
      %v2999 = vunpack.c.l.b16 %v2918
      %v3000 = vunpack.c.l.b16 %v2919
      %v3001 = vunpack.c.l.b16 %v2920
      %v3002 = vunpack.c.l.b16 %v2921
      %v3003 = vunpack.c.l.b16 %v2922
      %v3004 = vunpack.c.l.b16 %v2923
      %v3005 = vunpack.c.l.b16 %v2924
      %v3006 = vunpack.c.l.b16 %v2925
      %v3007 = vunpack.c.l.b16 %v2926
      %v3008 = vunpack.c.l.b16 %v2927
      %v3009 = vunpack.c.l.b16 %v2928
      %v3010 = vunpack.c.l.b16 %v2929
      %v3011 = vunpack.c.l.b16 %v2930
      %v3012 = vunpack.c.l.b16 %v2931
      %v3013 = vunpack.c.l.b16 %v2932
      %v3014 = vunpack.c.l.b16 %v2933
      %v3015 = vunpack.c.l.b16 %v2934
      %v3016 = vunpack.c.l.b16 %v2935
      %v3017 = vunpack.c.l.b16 %v2936
      %v3018 = vunpack.c.l.b16 %v2937
      %v3019 = vunpack.c.l.b16 %v2938
      %v3020 = vunpack.c.l.b16 %v2939
      %v3021 = vunpack.c.l.b16 %v2940
      %v3022 = vunpack.c.l.b16 %v2941
      %v3023 = vpack.c.b16 %v2992, %v2991
      %v3024 = vpack.c.b16 %v2994, %v2993
      %v3025 = vpack.c.b16 %v2996, %v2995
      %v3026 = vpack.c.b16 %v2998, %v2997
      %v3027 = vpack.c.b16 %v3000, %v2999
      %v3028 = vpack.c.b16 %v3002, %v3001
      %v3029 = vpack.c.b16 %v3004, %v3003
      %v3030 = vpack.c.b16 %v3006, %v3005
      %v3031 = vpack.c.b16 %v3008, %v3007
      %v3032 = vpack.c.b16 %v3010, %v3009
      %v3033 = vpack.c.b16 %v3012, %v3011
      %v3034 = vpack.c.b16 %v3014, %v3013
      %v3035 = vpack.c.b16 %v3016, %v3015
      %v3036 = vpack.c.b16 %v3018, %v3017
      %v3037 = vpack.c.b16 %v3020, %v3019
      %v3038 = vpack.c.b16 %v3022, %v3021
      %v3071 = vunpack.c.l.b16 %v2943
      %v3072 = vunpack.c.l.b16 %v2944
      %v3073 = vunpack.c.l.b16 %v2945
      %v3074 = vunpack.c.l.b16 %v2946
      %v3075 = vunpack.c.l.b16 %v2947
      %v3076 = vunpack.c.l.b16 %v2948
      %v3077 = vunpack.c.l.b16 %v2949
      %v3078 = vunpack.c.l.b16 %v2950
      %v3079 = vunpack.c.l.b16 %v2951
      %v3080 = vunpack.c.l.b16 %v2952
      %v3081 = vunpack.c.l.b16 %v2953
      %v3082 = vunpack.c.l.b16 %v2954
      %v3083 = vunpack.c.l.b16 %v2955
      %v3084 = vunpack.c.l.b16 %v2956
      %v3085 = vunpack.c.l.b16 %v2957
      %v3086 = vunpack.c.l.b16 %v2958
      %v3087 = vpack.c.b16 %v3072, %v3071
      %v3088 = vpack.c.b16 %v3074, %v3073
      %v3089 = vpack.c.b16 %v3076, %v3075
      %v3090 = vpack.c.b16 %v3078, %v3077
      %v3091 = vpack.c.b16 %v3080, %v3079
      %v3092 = vpack.c.b16 %v3082, %v3081
      %v3093 = vpack.c.b16 %v3084, %v3083
      %v3094 = vpack.c.b16 %v3086, %v3085
      %3103 = vmatpush.bf16.msra.mxu0 %v3094
      %3104 = vmatpush.bf16.msra.mxu0 %v3093
      %3105 = vmatpush.bf16.msra.mxu0 %v3092
      %3106 = vmatpush.bf16.msra.mxu0 %v3091
      %3107 = vmatpush.bf16.msra.mxu0 %v3090
      %3108 = vmatpush.bf16.msra.mxu0 %v3089
      %3109 = vmatpush.bf16.msra.mxu0 %v3088
      %3110 = vmatpush.bf16.msra.mxu0 %v3087
      %3111 = vmatmul.bf16.gmra.mxu0 %v3023
      %v3112 = vpop.f32.mrf.mxu0
      %v3113 = vadd.f32 0.0, %v3112
      %v3114 = vpop.f32.mrf.mxu0
      %v3115 = vadd.f32 0.0, %v3114
      %3116 = vmatmul.bf16.gmra.mxu0 %v3024
      %v3117 = vpop.f32.mrf.mxu0
      %v3118 = vadd.f32 0.0, %v3117
      %v3119 = vpop.f32.mrf.mxu0
      %v3120 = vadd.f32 0.0, %v3119
      %3121 = vmatmul.bf16.gmra.mxu0 %v3025
      %v3122 = vpop.f32.mrf.mxu0
      %v3123 = vadd.f32 0.0, %v3122
      %v3124 = vpop.f32.mrf.mxu0
      %v3125 = vadd.f32 0.0, %v3124
      %3126 = vmatmul.bf16.gmra.mxu0 %v3026
      %v3127 = vpop.f32.mrf.mxu0
      %v3128 = vadd.f32 0.0, %v3127
      %v3129 = vpop.f32.mrf.mxu0
      %v3130 = vadd.f32 0.0, %v3129
      %3131 = vmatmul.bf16.gmra.mxu0 %v3027
      %v3132 = vpop.f32.mrf.mxu0
      %v3133 = vadd.f32 0.0, %v3132
      %v3134 = vpop.f32.mrf.mxu0
      %v3135 = vadd.f32 0.0, %v3134
      %3136 = vmatmul.bf16.gmra.mxu0 %v3028
      %v3137 = vpop.f32.mrf.mxu0
      %v3138 = vadd.f32 0.0, %v3137
      %v3139 = vpop.f32.mrf.mxu0
      %v3140 = vadd.f32 0.0, %v3139
      %3141 = vmatmul.bf16.gmra.mxu0 %v3029
      %v3142 = vpop.f32.mrf.mxu0
      %v3143 = vadd.f32 0.0, %v3142
      %v3144 = vpop.f32.mrf.mxu0
      %v3145 = vadd.f32 0.0, %v3144
      %3146 = vmatmul.bf16.gmra.mxu0 %v3030
      %v3147 = vpop.f32.mrf.mxu0
      %v3148 = vadd.f32 0.0, %v3147
      %v3149 = vpop.f32.mrf.mxu0
      %v3150 = vadd.f32 0.0, %v3149
      %3151 = vmatmul.bf16.gmra.mxu0 %v3031
      %v3152 = vpop.f32.mrf.mxu0
      %v3153 = vadd.f32 0.0, %v3152
      %v3154 = vpop.f32.mrf.mxu0
      %v3155 = vadd.f32 0.0, %v3154
      %3156 = vmatmul.bf16.gmra.mxu0 %v3032
      %v3157 = vpop.f32.mrf.mxu0
      %v3158 = vadd.f32 0.0, %v3157
      %v3159 = vpop.f32.mrf.mxu0
      %v3160 = vadd.f32 0.0, %v3159
      %3161 = vmatmul.bf16.gmra.mxu0 %v3033
      %v3162 = vpop.f32.mrf.mxu0
      %v3163 = vadd.f32 0.0, %v3162
      %v3164 = vpop.f32.mrf.mxu0
      %v3165 = vadd.f32 0.0, %v3164
      %3166 = vmatmul.bf16.gmra.mxu0 %v3034
      %v3167 = vpop.f32.mrf.mxu0
      %v3168 = vadd.f32 0.0, %v3167
      %v3169 = vpop.f32.mrf.mxu0
      %v3170 = vadd.f32 0.0, %v3169
      %3171 = vmatmul.bf16.gmra.mxu0 %v3035
      %v3172 = vpop.f32.mrf.mxu0
      %v3173 = vadd.f32 0.0, %v3172
      %v3174 = vpop.f32.mrf.mxu0
      %v3175 = vadd.f32 0.0, %v3174
      %3176 = vmatmul.bf16.gmra.mxu0 %v3036
      %v3177 = vpop.f32.mrf.mxu0
      %v3178 = vadd.f32 0.0, %v3177
      %v3179 = vpop.f32.mrf.mxu0
      %v3180 = vadd.f32 0.0, %v3179
      %3181 = vmatmul.bf16.gmra.mxu0 %v3037
      %v3182 = vpop.f32.mrf.mxu0
      %v3183 = vadd.f32 0.0, %v3182
      %v3184 = vpop.f32.mrf.mxu0
      %v3185 = vadd.f32 0.0, %v3184
      %3186 = vmatmul.bf16.gmra.mxu0 %v3038
      %v3187 = vpop.f32.mrf.mxu0
      %v3188 = vadd.f32 0.0, %v3187
      %v3189 = vpop.f32.mrf.mxu0
      %v3190 = vadd.f32 0.0, %v3189
      %3191 = vdwg.mxu0
      %v3192 = vadd.f32 %v2877, %v3113
      %v3193 = vadd.f32 %v2878, %v3115
      %v3194 = vadd.f32 %v2879, %v3118
      %v3195 = vadd.f32 %v2880, %v3120
      %v3196 = vadd.f32 %v2881, %v3123
      %v3197 = vadd.f32 %v2882, %v3125
      %v3198 = vadd.f32 %v2883, %v3128
      %v3199 = vadd.f32 %v2884, %v3130
      %v3200 = vadd.f32 %v2885, %v3133
      %v3201 = vadd.f32 %v2886, %v3135
      %v3202 = vadd.f32 %v2887, %v3138
      %v3203 = vadd.f32 %v2888, %v3140
      %v3204 = vadd.f32 %v2889, %v3143
      %v3205 = vadd.f32 %v2890, %v3145
      %v3206 = vadd.f32 %v2891, %v3148
      %v3207 = vadd.f32 %v2892, %v3150
      %v3208 = vadd.f32 %v2893, %v3153
      %v3209 = vadd.f32 %v2894, %v3155
      %v3210 = vadd.f32 %v2895, %v3158
      %v3211 = vadd.f32 %v2896, %v3160
      %v3212 = vadd.f32 %v2897, %v3163
      %v3213 = vadd.f32 %v2898, %v3165
      %v3214 = vadd.f32 %v2899, %v3168
      %v3215 = vadd.f32 %v2900, %v3170
      %v3216 = vadd.f32 %v2901, %v3173
      %v3217 = vadd.f32 %v2902, %v3175
      %v3218 = vadd.f32 %v2903, %v3178
      %v3219 = vadd.f32 %v2904, %v3180
      %v3220 = vadd.f32 %v2905, %v3183
      %v3221 = vadd.f32 %v2906, %v3185
      %v3222 = vadd.f32 %v2907, %v3188
      %v3223 = vadd.f32 %v2908, %v3190
      %v3224 = vld [vmem:[%s2909] sm:$0xf]
      %v3225 = vld [vmem:[%s2909 + $0x4] sm:$0xf]
      %v3226 = vld [vmem:[%s2909 + $0x8] sm:$0x1]
      %v3227 = vld [vmem:[%s2909 + $0xc] sm:$0xf]
      %v3228 = vld [vmem:[%s2909 + $0x10] sm:$0xf]
      %v3229 = vld [vmem:[%s2909 + $0x14] sm:$0x1]
      %v3230 = vld [vmem:[%s2909 + $0x18] sm:$0xf]
      %v3231 = vld [vmem:[%s2909 + $0x1c] sm:$0xf]
      %v3232 = vld [vmem:[%s2909 + $0x20] sm:$0x1]
      %v3233 = vld [vmem:[%s2909 + $0x24] sm:$0xf]
      %v3234 = vld [vmem:[%s2909 + $0x28] sm:$0xf]
      %v3235 = vld [vmem:[%s2909 + $0x2c] sm:$0x1]
      %v3236 = vld [vmem:[%s2909 + $0x30] sm:$0xf]
      %v3237 = vld [vmem:[%s2909 + $0x34] sm:$0xf]
      %v3238 = vld [vmem:[%s2909 + $0x38] sm:$0x1]
      %v3239 = vld [vmem:[%s2909 + $0x3c] sm:$0xf]
      %v3240 = vld [vmem:[%s2909 + $0x40] sm:$0xf]
      %v3241 = vld [vmem:[%s2909 + $0x44] sm:$0x1]
      %v3242 = vld [vmem:[%s2909 + $0x48] sm:$0xf]
      %v3243 = vld [vmem:[%s2909 + $0x4c] sm:$0xf]
      %v3244 = vld [vmem:[%s2909 + $0x50] sm:$0x1]
      %v3245 = vld [vmem:[%s2909 + $0x54] sm:$0xf]
      %v3246 = vld [vmem:[%s2909 + $0x58] sm:$0xf]
      %v3247 = vld [vmem:[%s2909 + $0x5c] sm:$0x1]
      %v3248 = vld [vmem:[%s2909 + $0x60] sm:$0xf]
      %v3249 = vld [vmem:[%s2909 + $0x64] sm:$0xf]
      %v3250 = vld [vmem:[%s2909 + $0x68] sm:$0x1]
      %v3251 = vld [vmem:[%s2909 + $0x6c] sm:$0xf]
      %v3252 = vld [vmem:[%s2909 + $0x70] sm:$0xf]
      %v3253 = vld [vmem:[%s2909 + $0x74] sm:$0x1]
      %v3254 = vld [vmem:[%s2909 + $0x78] sm:$0xf]
      %v3255 = vld [vmem:[%s2909 + $0x7c] sm:$0xf]
      %v3256 = vld [vmem:[%s2909 + $0x80] sm:$0x1]
      %v3257 = vld [vmem:[%s2909 + $0x84] sm:$0xf]
      %v3258 = vld [vmem:[%s2909 + $0x88] sm:$0xf]
      %v3259 = vld [vmem:[%s2909 + $0x8c] sm:$0x1]
      %v3260 = vld [vmem:[%s2909 + $0x90] sm:$0xf]
      %v3261 = vld [vmem:[%s2909 + $0x94] sm:$0xf]
      %v3262 = vld [vmem:[%s2909 + $0x98] sm:$0x1]
      %v3263 = vld [vmem:[%s2909 + $0x9c] sm:$0xf]
      %v3264 = vld [vmem:[%s2909 + $0xa0] sm:$0xf]
      %v3265 = vld [vmem:[%s2909 + $0xa4] sm:$0x1]
      %v3266 = vld [vmem:[%s2909 + $0xa8] sm:$0xf]
      %v3267 = vld [vmem:[%s2909 + $0xac] sm:$0xf]
      %v3268 = vld [vmem:[%s2909 + $0xb0] sm:$0x1]
      %v3269 = vld [vmem:[%s2909 + $0xb4] sm:$0xf]
      %v3270 = vld [vmem:[%s2909 + $0xb8] sm:$0xf]
      %v3271 = vld [vmem:[%s2909 + $0xbc] sm:$0x1]
      %v3273 = vshrl.u32 %v3224, 16
      %v3275 = vrot.slane %v3273, 4
      %v3276 = vshll.u32 %v3224, 16
      %v3278 = vrot.slane %v3276, 5
      %v3279 = vor.u32 %v3275, %v3278
      %v3280 = vrot.slane %v3279, 4
      %v3282 = vshll.u32 %v3225, 16
      %v3284 = vrot.slane %v3282, 5
      %v3285 = vsel %vm237, %v3280, %v3284
      %v3286 = vshrl.u32 %v3225, 16
      %v3288 = vrot.slane %v3286, 4
      %v3289 = vor.u32 %v3288, %v3284
      %v3290 = vrot.slane %v3289, 4
      %v3292 = vshll.u32 %v3226, 16
      %v3294 = vrot.slane %v3292, 5
      %v3295 = vsel %vm237, %v3290, %v3294
      %v3297 = vshrl.u32 %v3227, 16
      %v3299 = vrot.slane %v3297, 4
      %v3300 = vshll.u32 %v3227, 16
      %v3302 = vrot.slane %v3300, 5
      %v3303 = vor.u32 %v3299, %v3302
      %v3304 = vrot.slane %v3303, 4
      %v3306 = vshll.u32 %v3228, 16
      %v3308 = vrot.slane %v3306, 5
      %v3309 = vsel %vm237, %v3304, %v3308
      %v3310 = vshrl.u32 %v3228, 16
      %v3312 = vrot.slane %v3310, 4
      %v3313 = vor.u32 %v3312, %v3308
      %v3314 = vrot.slane %v3313, 4
      %v3316 = vshll.u32 %v3229, 16
      %v3318 = vrot.slane %v3316, 5
      %v3319 = vsel %vm237, %v3314, %v3318
      %v3321 = vshrl.u32 %v3230, 16
      %v3323 = vrot.slane %v3321, 4
      %v3324 = vshll.u32 %v3230, 16
      %v3326 = vrot.slane %v3324, 5
      %v3327 = vor.u32 %v3323, %v3326
      %v3328 = vrot.slane %v3327, 4
      %v3330 = vshll.u32 %v3231, 16
      %v3332 = vrot.slane %v3330, 5
      %v3333 = vsel %vm237, %v3328, %v3332
      %v3334 = vshrl.u32 %v3231, 16
      %v3336 = vrot.slane %v3334, 4
      %v3337 = vor.u32 %v3336, %v3332
      %v3338 = vrot.slane %v3337, 4
      %v3340 = vshll.u32 %v3232, 16
      %v3342 = vrot.slane %v3340, 5
      %v3343 = vsel %vm237, %v3338, %v3342
      %v3345 = vshrl.u32 %v3233, 16
      %v3347 = vrot.slane %v3345, 4
      %v3348 = vshll.u32 %v3233, 16
      %v3350 = vrot.slane %v3348, 5
      %v3351 = vor.u32 %v3347, %v3350
      %v3352 = vrot.slane %v3351, 4
      %v3354 = vshll.u32 %v3234, 16
      %v3356 = vrot.slane %v3354, 5
      %v3357 = vsel %vm237, %v3352, %v3356
      %v3358 = vshrl.u32 %v3234, 16
      %v3360 = vrot.slane %v3358, 4
      %v3361 = vor.u32 %v3360, %v3356
      %v3362 = vrot.slane %v3361, 4
      %v3364 = vshll.u32 %v3235, 16
      %v3366 = vrot.slane %v3364, 5
      %v3367 = vsel %vm237, %v3362, %v3366
      %v3369 = vshrl.u32 %v3236, 16
      %v3371 = vrot.slane %v3369, 4
      %v3372 = vshll.u32 %v3236, 16
      %v3374 = vrot.slane %v3372, 5
      %v3375 = vor.u32 %v3371, %v3374
      %v3376 = vrot.slane %v3375, 4
      %v3378 = vshll.u32 %v3237, 16
      %v3380 = vrot.slane %v3378, 5
      %v3381 = vsel %vm237, %v3376, %v3380
      %v3382 = vshrl.u32 %v3237, 16
      %v3384 = vrot.slane %v3382, 4
      %v3385 = vor.u32 %v3384, %v3380
      %v3386 = vrot.slane %v3385, 4
      %v3388 = vshll.u32 %v3238, 16
      %v3390 = vrot.slane %v3388, 5
      %v3391 = vsel %vm237, %v3386, %v3390
      %v3393 = vshrl.u32 %v3239, 16
      %v3395 = vrot.slane %v3393, 4
      %v3396 = vshll.u32 %v3239, 16
      %v3398 = vrot.slane %v3396, 5
      %v3399 = vor.u32 %v3395, %v3398
      %v3400 = vrot.slane %v3399, 4
      %v3402 = vshll.u32 %v3240, 16
      %v3404 = vrot.slane %v3402, 5
      %v3405 = vsel %vm237, %v3400, %v3404
      %v3406 = vshrl.u32 %v3240, 16
      %v3408 = vrot.slane %v3406, 4
      %v3409 = vor.u32 %v3408, %v3404
      %v3410 = vrot.slane %v3409, 4
      %v3412 = vshll.u32 %v3241, 16
      %v3414 = vrot.slane %v3412, 5
      %v3415 = vsel %vm237, %v3410, %v3414
      %v3417 = vshrl.u32 %v3242, 16
      %v3419 = vrot.slane %v3417, 4
      %v3420 = vshll.u32 %v3242, 16
      %v3422 = vrot.slane %v3420, 5
      %v3423 = vor.u32 %v3419, %v3422
      %v3424 = vrot.slane %v3423, 4
      %v3426 = vshll.u32 %v3243, 16
      %v3428 = vrot.slane %v3426, 5
      %v3429 = vsel %vm237, %v3424, %v3428
      %v3430 = vshrl.u32 %v3243, 16
      %v3432 = vrot.slane %v3430, 4
      %v3433 = vor.u32 %v3432, %v3428
      %v3434 = vrot.slane %v3433, 4
      %v3436 = vshll.u32 %v3244, 16
      %v3438 = vrot.slane %v3436, 5
      %v3439 = vsel %vm237, %v3434, %v3438
      %v3441 = vshrl.u32 %v3245, 16
      %v3443 = vrot.slane %v3441, 4
      %v3444 = vshll.u32 %v3245, 16
      %v3446 = vrot.slane %v3444, 5
      %v3447 = vor.u32 %v3443, %v3446
      %v3448 = vrot.slane %v3447, 4
      %v3450 = vshll.u32 %v3246, 16
      %v3452 = vrot.slane %v3450, 5
      %v3453 = vsel %vm237, %v3448, %v3452
      %v3454 = vshrl.u32 %v3246, 16
      %v3456 = vrot.slane %v3454, 4
      %v3457 = vor.u32 %v3456, %v3452
      %v3458 = vrot.slane %v3457, 4
      %v3460 = vshll.u32 %v3247, 16
      %v3462 = vrot.slane %v3460, 5
      %v3463 = vsel %vm237, %v3458, %v3462
      %v3465 = vshrl.u32 %v3248, 16
      %v3467 = vrot.slane %v3465, 4
      %v3468 = vshll.u32 %v3248, 16
      %v3470 = vrot.slane %v3468, 5
      %v3471 = vor.u32 %v3467, %v3470
      %v3472 = vrot.slane %v3471, 4
      %v3474 = vshll.u32 %v3249, 16
      %v3476 = vrot.slane %v3474, 5
      %v3477 = vsel %vm237, %v3472, %v3476
      %v3478 = vshrl.u32 %v3249, 16
      %v3480 = vrot.slane %v3478, 4
      %v3481 = vor.u32 %v3480, %v3476
      %v3482 = vrot.slane %v3481, 4
      %v3484 = vshll.u32 %v3250, 16
      %v3486 = vrot.slane %v3484, 5
      %v3487 = vsel %vm237, %v3482, %v3486
      %v3489 = vshrl.u32 %v3251, 16
      %v3491 = vrot.slane %v3489, 4
      %v3492 = vshll.u32 %v3251, 16
      %v3494 = vrot.slane %v3492, 5
      %v3495 = vor.u32 %v3491, %v3494
      %v3496 = vrot.slane %v3495, 4
      %v3498 = vshll.u32 %v3252, 16
      %v3500 = vrot.slane %v3498, 5
      %v3501 = vsel %vm237, %v3496, %v3500
      %v3502 = vshrl.u32 %v3252, 16
      %v3504 = vrot.slane %v3502, 4
      %v3505 = vor.u32 %v3504, %v3500
      %v3506 = vrot.slane %v3505, 4
      %v3508 = vshll.u32 %v3253, 16
      %v3510 = vrot.slane %v3508, 5
      %v3511 = vsel %vm237, %v3506, %v3510
      %v3513 = vshrl.u32 %v3254, 16
      %v3515 = vrot.slane %v3513, 4
      %v3516 = vshll.u32 %v3254, 16
      %v3518 = vrot.slane %v3516, 5
      %v3519 = vor.u32 %v3515, %v3518
      %v3520 = vrot.slane %v3519, 4
      %v3522 = vshll.u32 %v3255, 16
      %v3524 = vrot.slane %v3522, 5
      %v3525 = vsel %vm237, %v3520, %v3524
      %v3526 = vshrl.u32 %v3255, 16
      %v3528 = vrot.slane %v3526, 4
      %v3529 = vor.u32 %v3528, %v3524
      %v3530 = vrot.slane %v3529, 4
      %v3532 = vshll.u32 %v3256, 16
      %v3534 = vrot.slane %v3532, 5
      %v3535 = vsel %vm237, %v3530, %v3534
      %v3537 = vshrl.u32 %v3257, 16
      %v3539 = vrot.slane %v3537, 4
      %v3540 = vshll.u32 %v3257, 16
      %v3542 = vrot.slane %v3540, 5
      %v3543 = vor.u32 %v3539, %v3542
      %v3544 = vrot.slane %v3543, 4
      %v3546 = vshll.u32 %v3258, 16
      %v3548 = vrot.slane %v3546, 5
      %v3549 = vsel %vm237, %v3544, %v3548
      %v3550 = vshrl.u32 %v3258, 16
      %v3552 = vrot.slane %v3550, 4
      %v3553 = vor.u32 %v3552, %v3548
      %v3554 = vrot.slane %v3553, 4
      %v3556 = vshll.u32 %v3259, 16
      %v3558 = vrot.slane %v3556, 5
      %v3559 = vsel %vm237, %v3554, %v3558
      %v3561 = vshrl.u32 %v3260, 16
      %v3563 = vrot.slane %v3561, 4
      %v3564 = vshll.u32 %v3260, 16
      %v3566 = vrot.slane %v3564, 5
      %v3567 = vor.u32 %v3563, %v3566
      %v3568 = vrot.slane %v3567, 4
      %v3570 = vshll.u32 %v3261, 16
      %v3572 = vrot.slane %v3570, 5
      %v3573 = vsel %vm237, %v3568, %v3572
      %v3574 = vshrl.u32 %v3261, 16
      %v3576 = vrot.slane %v3574, 4
      %v3577 = vor.u32 %v3576, %v3572
      %v3578 = vrot.slane %v3577, 4
      %v3580 = vshll.u32 %v3262, 16
      %v3582 = vrot.slane %v3580, 5
      %v3583 = vsel %vm237, %v3578, %v3582
      %v3585 = vshrl.u32 %v3263, 16
      %v3587 = vrot.slane %v3585, 4
      %v3588 = vshll.u32 %v3263, 16
      %v3590 = vrot.slane %v3588, 5
      %v3591 = vor.u32 %v3587, %v3590
      %v3592 = vrot.slane %v3591, 4
      %v3594 = vshll.u32 %v3264, 16
      %v3596 = vrot.slane %v3594, 5
      %v3597 = vsel %vm237, %v3592, %v3596
      %v3598 = vshrl.u32 %v3264, 16
      %v3600 = vrot.slane %v3598, 4
      %v3601 = vor.u32 %v3600, %v3596
      %v3602 = vrot.slane %v3601, 4
      %v3604 = vshll.u32 %v3265, 16
      %v3606 = vrot.slane %v3604, 5
      %v3607 = vsel %vm237, %v3602, %v3606
      %v3609 = vshrl.u32 %v3266, 16
      %v3611 = vrot.slane %v3609, 4
      %v3612 = vshll.u32 %v3266, 16
      %v3614 = vrot.slane %v3612, 5
      %v3615 = vor.u32 %v3611, %v3614
      %v3616 = vrot.slane %v3615, 4
      %v3618 = vshll.u32 %v3267, 16
      %v3620 = vrot.slane %v3618, 5
      %v3621 = vsel %vm237, %v3616, %v3620
      %v3622 = vshrl.u32 %v3267, 16
      %v3624 = vrot.slane %v3622, 4
      %v3625 = vor.u32 %v3624, %v3620
      %v3626 = vrot.slane %v3625, 4
      %v3628 = vshll.u32 %v3268, 16
      %v3630 = vrot.slane %v3628, 5
      %v3631 = vsel %vm237, %v3626, %v3630
      %v3633 = vshrl.u32 %v3269, 16
      %v3635 = vrot.slane %v3633, 4
      %v3636 = vshll.u32 %v3269, 16
      %v3638 = vrot.slane %v3636, 5
      %v3639 = vor.u32 %v3635, %v3638
      %v3640 = vrot.slane %v3639, 4
      %v3642 = vshll.u32 %v3270, 16
      %v3644 = vrot.slane %v3642, 5
      %v3645 = vsel %vm237, %v3640, %v3644
      %v3646 = vshrl.u32 %v3270, 16
      %v3648 = vrot.slane %v3646, 4
      %v3649 = vor.u32 %v3648, %v3644
      %v3650 = vrot.slane %v3649, 4
      %v3652 = vshll.u32 %v3271, 16
      %v3654 = vrot.slane %v3652, 5
      %v3655 = vsel %vm237, %v3650, %v3654
      %s3656 = scalar_lea.vmem %s1, 448
      %v3657 = vld [vmem:[%s3656] sm:$0xf]
      %v3658 = vld [vmem:[%s3656 + $0x4] sm:$0xf]
      %v3659 = vld [vmem:[%s3656 + $0x8] sm:$0xf]
      %v3660 = vld [vmem:[%s3656 + $0xc] sm:$0xf]
      %v3661 = vld [vmem:[%s3656 + $0x10] sm:$0xf]
      %v3662 = vld [vmem:[%s3656 + $0x14] sm:$0xf]
      %v3663 = vld [vmem:[%s3656 + $0x18] sm:$0xf]
      %v3664 = vld [vmem:[%s3656 + $0x1c] sm:$0xf]
      %v3665 = vld [vmem:[%s3656 + $0x20] sm:$0xf]
      %v3666 = vld [vmem:[%s3656 + $0x24] sm:$0xf]
      %v3667 = vld [vmem:[%s3656 + $0x28] sm:$0xf]
      %v3668 = vld [vmem:[%s3656 + $0x2c] sm:$0xf]
      %v3669 = vld [vmem:[%s3656 + $0x30] sm:$0xf]
      %v3670 = vld [vmem:[%s3656 + $0x34] sm:$0xf]
      %v3671 = vld [vmem:[%s3656 + $0x38] sm:$0xf]
      %v3672 = vld [vmem:[%s3656 + $0x3c] sm:$0xf]
      %v3673 = vunpack.c.l.b16 %v3285
      %v3674 = vunpack.c.l.b16 %v3295
      %v3675 = vunpack.c.l.b16 %v3309
      %v3676 = vunpack.c.l.b16 %v3319
      %v3677 = vunpack.c.l.b16 %v3333
      %v3678 = vunpack.c.l.b16 %v3343
      %v3679 = vunpack.c.l.b16 %v3357
      %v3680 = vunpack.c.l.b16 %v3367
      %v3681 = vunpack.c.l.b16 %v3381
      %v3682 = vunpack.c.l.b16 %v3391
      %v3683 = vunpack.c.l.b16 %v3405
      %v3684 = vunpack.c.l.b16 %v3415
      %v3685 = vunpack.c.l.b16 %v3429
      %v3686 = vunpack.c.l.b16 %v3439
      %v3687 = vunpack.c.l.b16 %v3453
      %v3688 = vunpack.c.l.b16 %v3463
      %v3689 = vunpack.c.l.b16 %v3477
      %v3690 = vunpack.c.l.b16 %v3487
      %v3691 = vunpack.c.l.b16 %v3501
      %v3692 = vunpack.c.l.b16 %v3511
      %v3693 = vunpack.c.l.b16 %v3525
      %v3694 = vunpack.c.l.b16 %v3535
      %v3695 = vunpack.c.l.b16 %v3549
      %v3696 = vunpack.c.l.b16 %v3559
      %v3697 = vunpack.c.l.b16 %v3573
      %v3698 = vunpack.c.l.b16 %v3583
      %v3699 = vunpack.c.l.b16 %v3597
      %v3700 = vunpack.c.l.b16 %v3607
      %v3701 = vunpack.c.l.b16 %v3621
      %v3702 = vunpack.c.l.b16 %v3631
      %v3703 = vunpack.c.l.b16 %v3645
      %v3704 = vunpack.c.l.b16 %v3655
      %v3705 = vpack.c.b16 %v3674, %v3673
      %v3706 = vpack.c.b16 %v3676, %v3675
      %v3707 = vpack.c.b16 %v3678, %v3677
      %v3708 = vpack.c.b16 %v3680, %v3679
      %v3709 = vpack.c.b16 %v3682, %v3681
      %v3710 = vpack.c.b16 %v3684, %v3683
      %v3711 = vpack.c.b16 %v3686, %v3685
      %v3712 = vpack.c.b16 %v3688, %v3687
      %v3713 = vpack.c.b16 %v3690, %v3689
      %v3714 = vpack.c.b16 %v3692, %v3691
      %v3715 = vpack.c.b16 %v3694, %v3693
      %v3716 = vpack.c.b16 %v3696, %v3695
      %v3717 = vpack.c.b16 %v3698, %v3697
      %v3718 = vpack.c.b16 %v3700, %v3699
      %v3719 = vpack.c.b16 %v3702, %v3701
      %v3720 = vpack.c.b16 %v3704, %v3703
      %v3753 = vunpack.c.l.b16 %v3657
      %v3754 = vunpack.c.l.b16 %v3658
      %v3755 = vunpack.c.l.b16 %v3659
      %v3756 = vunpack.c.l.b16 %v3660
      %v3757 = vunpack.c.l.b16 %v3661
      %v3758 = vunpack.c.l.b16 %v3662
      %v3759 = vunpack.c.l.b16 %v3663
      %v3760 = vunpack.c.l.b16 %v3664
      %v3761 = vunpack.c.l.b16 %v3665
      %v3762 = vunpack.c.l.b16 %v3666
      %v3763 = vunpack.c.l.b16 %v3667
      %v3764 = vunpack.c.l.b16 %v3668
      %v3765 = vunpack.c.l.b16 %v3669
      %v3766 = vunpack.c.l.b16 %v3670
      %v3767 = vunpack.c.l.b16 %v3671
      %v3768 = vunpack.c.l.b16 %v3672
      %v3769 = vpack.c.b16 %v3754, %v3753
      %v3770 = vpack.c.b16 %v3756, %v3755
      %v3771 = vpack.c.b16 %v3758, %v3757
      %v3772 = vpack.c.b16 %v3760, %v3759
      %v3773 = vpack.c.b16 %v3762, %v3761
      %v3774 = vpack.c.b16 %v3764, %v3763
      %v3775 = vpack.c.b16 %v3766, %v3765
      %v3776 = vpack.c.b16 %v3768, %v3767
      %3785 = vmatpush.bf16.msra.mxu0 %v3776
      %3786 = vmatpush.bf16.msra.mxu0 %v3775
      %3787 = vmatpush.bf16.msra.mxu0 %v3774
      %3788 = vmatpush.bf16.msra.mxu0 %v3773
      %3789 = vmatpush.bf16.msra.mxu0 %v3772
      %3790 = vmatpush.bf16.msra.mxu0 %v3771
      %3791 = vmatpush.bf16.msra.mxu0 %v3770
      %3792 = vmatpush.bf16.msra.mxu0 %v3769
      %3793 = vmatmul.bf16.gmra.mxu0 %v3705
      %v3794 = vpop.f32.mrf.mxu0
      %v3795 = vadd.f32 0.0, %v3794
      %v3796 = vpop.f32.mrf.mxu0
      %v3797 = vadd.f32 0.0, %v3796
      %3798 = vmatmul.bf16.gmra.mxu0 %v3706
      %v3799 = vpop.f32.mrf.mxu0
      %v3800 = vadd.f32 0.0, %v3799
      %v3801 = vpop.f32.mrf.mxu0
      %v3802 = vadd.f32 0.0, %v3801
      %3803 = vmatmul.bf16.gmra.mxu0 %v3707
      %v3804 = vpop.f32.mrf.mxu0
      %v3805 = vadd.f32 0.0, %v3804
      %v3806 = vpop.f32.mrf.mxu0
      %v3807 = vadd.f32 0.0, %v3806
      %3808 = vmatmul.bf16.gmra.mxu0 %v3708
      %v3809 = vpop.f32.mrf.mxu0
      %v3810 = vadd.f32 0.0, %v3809
      %v3811 = vpop.f32.mrf.mxu0
      %v3812 = vadd.f32 0.0, %v3811
      %3813 = vmatmul.bf16.gmra.mxu0 %v3709
      %v3814 = vpop.f32.mrf.mxu0
      %v3815 = vadd.f32 0.0, %v3814
      %v3816 = vpop.f32.mrf.mxu0
      %v3817 = vadd.f32 0.0, %v3816
      %3818 = vmatmul.bf16.gmra.mxu0 %v3710
      %v3819 = vpop.f32.mrf.mxu0
      %v3820 = vadd.f32 0.0, %v3819
      %v3821 = vpop.f32.mrf.mxu0
      %v3822 = vadd.f32 0.0, %v3821
      %3823 = vmatmul.bf16.gmra.mxu0 %v3711
      %v3824 = vpop.f32.mrf.mxu0
      %v3825 = vadd.f32 0.0, %v3824
      %v3826 = vpop.f32.mrf.mxu0
      %v3827 = vadd.f32 0.0, %v3826
      %3828 = vmatmul.bf16.gmra.mxu0 %v3712
      %v3829 = vpop.f32.mrf.mxu0
      %v3830 = vadd.f32 0.0, %v3829
      %v3831 = vpop.f32.mrf.mxu0
      %v3832 = vadd.f32 0.0, %v3831
      %3833 = vmatmul.bf16.gmra.mxu0 %v3713
      %v3834 = vpop.f32.mrf.mxu0
      %v3835 = vadd.f32 0.0, %v3834
      %v3836 = vpop.f32.mrf.mxu0
      %v3837 = vadd.f32 0.0, %v3836
      %3838 = vmatmul.bf16.gmra.mxu0 %v3714
      %v3839 = vpop.f32.mrf.mxu0
      %v3840 = vadd.f32 0.0, %v3839
      %v3841 = vpop.f32.mrf.mxu0
      %v3842 = vadd.f32 0.0, %v3841
      %3843 = vmatmul.bf16.gmra.mxu0 %v3715
      %v3844 = vpop.f32.mrf.mxu0
      %v3845 = vadd.f32 0.0, %v3844
      %v3846 = vpop.f32.mrf.mxu0
      %v3847 = vadd.f32 0.0, %v3846
      %3848 = vmatmul.bf16.gmra.mxu0 %v3716
      %v3849 = vpop.f32.mrf.mxu0
      %v3850 = vadd.f32 0.0, %v3849
      %v3851 = vpop.f32.mrf.mxu0
      %v3852 = vadd.f32 0.0, %v3851
      %3853 = vmatmul.bf16.gmra.mxu0 %v3717
      %v3854 = vpop.f32.mrf.mxu0
      %v3855 = vadd.f32 0.0, %v3854
      %v3856 = vpop.f32.mrf.mxu0
      %v3857 = vadd.f32 0.0, %v3856
      %3858 = vmatmul.bf16.gmra.mxu0 %v3718
      %v3859 = vpop.f32.mrf.mxu0
      %v3860 = vadd.f32 0.0, %v3859
      %v3861 = vpop.f32.mrf.mxu0
      %v3862 = vadd.f32 0.0, %v3861
      %3863 = vmatmul.bf16.gmra.mxu0 %v3719
      %v3864 = vpop.f32.mrf.mxu0
      %v3865 = vadd.f32 0.0, %v3864
      %v3866 = vpop.f32.mrf.mxu0
      %v3867 = vadd.f32 0.0, %v3866
      %3868 = vmatmul.bf16.gmra.mxu0 %v3720
      %v3869 = vpop.f32.mrf.mxu0
      %v3870 = vadd.f32 0.0, %v3869
      %v3871 = vpop.f32.mrf.mxu0
      %v3872 = vadd.f32 0.0, %v3871
      %3873 = vdwg.mxu0
      %v3874 = vadd.f32 %v3192, %v3795
      %v3875 = vadd.f32 %v3193, %v3797
      %v3876 = vadd.f32 %v3194, %v3800
      %v3877 = vadd.f32 %v3195, %v3802
      %v3878 = vadd.f32 %v3196, %v3805
      %v3879 = vadd.f32 %v3197, %v3807
      %v3880 = vadd.f32 %v3198, %v3810
      %v3881 = vadd.f32 %v3199, %v3812
      %v3882 = vadd.f32 %v3200, %v3815
      %v3883 = vadd.f32 %v3201, %v3817
      %v3884 = vadd.f32 %v3202, %v3820
      %v3885 = vadd.f32 %v3203, %v3822
      %v3886 = vadd.f32 %v3204, %v3825
      %v3887 = vadd.f32 %v3205, %v3827
      %v3888 = vadd.f32 %v3206, %v3830
      %v3889 = vadd.f32 %v3207, %v3832
      %v3890 = vadd.f32 %v3208, %v3835
      %v3891 = vadd.f32 %v3209, %v3837
      %v3892 = vadd.f32 %v3210, %v3840
      %v3893 = vadd.f32 %v3211, %v3842
      %v3894 = vadd.f32 %v3212, %v3845
      %v3895 = vadd.f32 %v3213, %v3847
      %v3896 = vadd.f32 %v3214, %v3850
      %v3897 = vadd.f32 %v3215, %v3852
      %v3898 = vadd.f32 %v3216, %v3855
      %v3899 = vadd.f32 %v3217, %v3857
      %v3900 = vadd.f32 %v3218, %v3860
      %v3901 = vadd.f32 %v3219, %v3862
      %v3902 = vadd.f32 %v3220, %v3865
      %v3903 = vadd.f32 %v3221, %v3867
      %v3904 = vadd.f32 %v3222, %v3870
      %v3905 = vadd.f32 %v3223, %v3872
      %v3906 = vld [vmem:[%s2909] sm:$0xe]
      %v3907 = vld [vmem:[%s2909 + $0xc] sm:$0xe]
      %v3908 = vld [vmem:[%s2909 + $0x18] sm:$0xe]
      %v3909 = vld [vmem:[%s2909 + $0x24] sm:$0xe]
      %v3910 = vld [vmem:[%s2909 + $0x30] sm:$0xe]
      %v3911 = vld [vmem:[%s2909 + $0x3c] sm:$0xe]
      %v3912 = vld [vmem:[%s2909 + $0x48] sm:$0xe]
      %v3913 = vld [vmem:[%s2909 + $0x54] sm:$0xe]
      %v3914 = vld [vmem:[%s2909 + $0x60] sm:$0xe]
      %v3915 = vld [vmem:[%s2909 + $0x6c] sm:$0xe]
      %v3916 = vld [vmem:[%s2909 + $0x78] sm:$0xe]
      %v3917 = vld [vmem:[%s2909 + $0x84] sm:$0xe]
      %v3918 = vld [vmem:[%s2909 + $0x90] sm:$0xe]
      %v3919 = vld [vmem:[%s2909 + $0x9c] sm:$0xe]
      %v3920 = vld [vmem:[%s2909 + $0xa8] sm:$0xe]
      %v3921 = vld [vmem:[%s2909 + $0xb4] sm:$0xe]
      %v3970 = vrot.slane %v3906, 5
      %v3971 = vrot.slane %v3970, 4
      %v3972 = vrot.slane %v3225, 5
      %v3973 = vsel %vm1123, %v3971, %v3972
      %v3974 = vrot.slane %v3972, 4
      %v3975 = vrot.slane %v3226, 5
      %v3976 = vsel %vm1123, %v3974, %v3975
      %v3977 = vrot.slane %v3907, 5
      %v3978 = vrot.slane %v3977, 4
      %v3979 = vrot.slane %v3228, 5
      %v3980 = vsel %vm1123, %v3978, %v3979
      %v3981 = vrot.slane %v3979, 4
      %v3982 = vrot.slane %v3229, 5
      %v3983 = vsel %vm1123, %v3981, %v3982
      %v3984 = vrot.slane %v3908, 5
      %v3985 = vrot.slane %v3984, 4
      %v3986 = vrot.slane %v3231, 5
      %v3987 = vsel %vm1123, %v3985, %v3986
      %v3988 = vrot.slane %v3986, 4
      %v3989 = vrot.slane %v3232, 5
      %v3990 = vsel %vm1123, %v3988, %v3989
      %v3991 = vrot.slane %v3909, 5
      %v3992 = vrot.slane %v3991, 4
      %v3993 = vrot.slane %v3234, 5
      %v3994 = vsel %vm1123, %v3992, %v3993
      %v3995 = vrot.slane %v3993, 4
      %v3996 = vrot.slane %v3235, 5
      %v3997 = vsel %vm1123, %v3995, %v3996
      %v3998 = vrot.slane %v3910, 5
      %v3999 = vrot.slane %v3998, 4
      %v4000 = vrot.slane %v3237, 5
      %v4001 = vsel %vm1123, %v3999, %v4000
      %v4002 = vrot.slane %v4000, 4
      %v4003 = vrot.slane %v3238, 5
      %v4004 = vsel %vm1123, %v4002, %v4003
      %v4005 = vrot.slane %v3911, 5
      %v4006 = vrot.slane %v4005, 4
      %v4007 = vrot.slane %v3240, 5
      %v4008 = vsel %vm1123, %v4006, %v4007
      %v4009 = vrot.slane %v4007, 4
      %v4010 = vrot.slane %v3241, 5
      %v4011 = vsel %vm1123, %v4009, %v4010
      %v4012 = vrot.slane %v3912, 5
      %v4013 = vrot.slane %v4012, 4
      %v4014 = vrot.slane %v3243, 5
      %v4015 = vsel %vm1123, %v4013, %v4014
      %v4016 = vrot.slane %v4014, 4
      %v4017 = vrot.slane %v3244, 5
      %v4018 = vsel %vm1123, %v4016, %v4017
      %v4019 = vrot.slane %v3913, 5
      %v4020 = vrot.slane %v4019, 4
      %v4021 = vrot.slane %v3246, 5
      %v4022 = vsel %vm1123, %v4020, %v4021
      %v4023 = vrot.slane %v4021, 4
      %v4024 = vrot.slane %v3247, 5
      %v4025 = vsel %vm1123, %v4023, %v4024
      %v4026 = vrot.slane %v3914, 5
      %v4027 = vrot.slane %v4026, 4
      %v4028 = vrot.slane %v3249, 5
      %v4029 = vsel %vm1123, %v4027, %v4028
      %v4030 = vrot.slane %v4028, 4
      %v4031 = vrot.slane %v3250, 5
      %v4032 = vsel %vm1123, %v4030, %v4031
      %v4033 = vrot.slane %v3915, 5
      %v4034 = vrot.slane %v4033, 4
      %v4035 = vrot.slane %v3252, 5
      %v4036 = vsel %vm1123, %v4034, %v4035
      %v4037 = vrot.slane %v4035, 4
      %v4038 = vrot.slane %v3253, 5
      %v4039 = vsel %vm1123, %v4037, %v4038
      %v4040 = vrot.slane %v3916, 5
      %v4041 = vrot.slane %v4040, 4
      %v4042 = vrot.slane %v3255, 5
      %v4043 = vsel %vm1123, %v4041, %v4042
      %v4044 = vrot.slane %v4042, 4
      %v4045 = vrot.slane %v3256, 5
      %v4046 = vsel %vm1123, %v4044, %v4045
      %v4047 = vrot.slane %v3917, 5
      %v4048 = vrot.slane %v4047, 4
      %v4049 = vrot.slane %v3258, 5
      %v4050 = vsel %vm1123, %v4048, %v4049
      %v4051 = vrot.slane %v4049, 4
      %v4052 = vrot.slane %v3259, 5
      %v4053 = vsel %vm1123, %v4051, %v4052
      %v4054 = vrot.slane %v3918, 5
      %v4055 = vrot.slane %v4054, 4
      %v4056 = vrot.slane %v3261, 5
      %v4057 = vsel %vm1123, %v4055, %v4056
      %v4058 = vrot.slane %v4056, 4
      %v4059 = vrot.slane %v3262, 5
      %v4060 = vsel %vm1123, %v4058, %v4059
      %v4061 = vrot.slane %v3919, 5
      %v4062 = vrot.slane %v4061, 4
      %v4063 = vrot.slane %v3264, 5
      %v4064 = vsel %vm1123, %v4062, %v4063
      %v4065 = vrot.slane %v4063, 4
      %v4066 = vrot.slane %v3265, 5
      %v4067 = vsel %vm1123, %v4065, %v4066
      %v4068 = vrot.slane %v3920, 5
      %v4069 = vrot.slane %v4068, 4
      %v4070 = vrot.slane %v3267, 5
      %v4071 = vsel %vm1123, %v4069, %v4070
      %v4072 = vrot.slane %v4070, 4
      %v4073 = vrot.slane %v3268, 5
      %v4074 = vsel %vm1123, %v4072, %v4073
      %v4075 = vrot.slane %v3921, 5
      %v4076 = vrot.slane %v4075, 4
      %v4077 = vrot.slane %v3270, 5
      %v4078 = vsel %vm1123, %v4076, %v4077
      %v4079 = vrot.slane %v4077, 4
      %v4080 = vrot.slane %v3271, 5
      %v4081 = vsel %vm1123, %v4079, %v4080
      %s4082 = scalar_lea.vmem %s1, 512
      %v4083 = vld [vmem:[%s4082] sm:$0xf]
      %v4084 = vld [vmem:[%s4082 + $0x4] sm:$0xf]
      %v4085 = vld [vmem:[%s4082 + $0x8] sm:$0xf]
      %v4086 = vld [vmem:[%s4082 + $0xc] sm:$0xf]
      %v4087 = vld [vmem:[%s4082 + $0x10] sm:$0xf]
      %v4088 = vld [vmem:[%s4082 + $0x14] sm:$0xf]
      %v4089 = vld [vmem:[%s4082 + $0x18] sm:$0xf]
      %v4090 = vld [vmem:[%s4082 + $0x1c] sm:$0xf]
      %v4091 = vld [vmem:[%s4082 + $0x20] sm:$0xf]
      %v4092 = vld [vmem:[%s4082 + $0x24] sm:$0xf]
      %v4093 = vld [vmem:[%s4082 + $0x28] sm:$0xf]
      %v4094 = vld [vmem:[%s4082 + $0x2c] sm:$0xf]
      %v4095 = vld [vmem:[%s4082 + $0x30] sm:$0xf]
      %v4096 = vld [vmem:[%s4082 + $0x34] sm:$0xf]
      %v4097 = vld [vmem:[%s4082 + $0x38] sm:$0xf]
      %v4098 = vld [vmem:[%s4082 + $0x3c] sm:$0xf]
      %v4099 = vunpack.c.l.b16 %v3973
      %v4100 = vunpack.c.l.b16 %v3976
      %v4101 = vunpack.c.l.b16 %v3980
      %v4102 = vunpack.c.l.b16 %v3983
      %v4103 = vunpack.c.l.b16 %v3987
      %v4104 = vunpack.c.l.b16 %v3990
      %v4105 = vunpack.c.l.b16 %v3994
      %v4106 = vunpack.c.l.b16 %v3997
      %v4107 = vunpack.c.l.b16 %v4001
      %v4108 = vunpack.c.l.b16 %v4004
      %v4109 = vunpack.c.l.b16 %v4008
      %v4110 = vunpack.c.l.b16 %v4011
      %v4111 = vunpack.c.l.b16 %v4015
      %v4112 = vunpack.c.l.b16 %v4018
      %v4113 = vunpack.c.l.b16 %v4022
      %v4114 = vunpack.c.l.b16 %v4025
      %v4115 = vunpack.c.l.b16 %v4029
      %v4116 = vunpack.c.l.b16 %v4032
      %v4117 = vunpack.c.l.b16 %v4036
      %v4118 = vunpack.c.l.b16 %v4039
      %v4119 = vunpack.c.l.b16 %v4043
      %v4120 = vunpack.c.l.b16 %v4046
      %v4121 = vunpack.c.l.b16 %v4050
      %v4122 = vunpack.c.l.b16 %v4053
      %v4123 = vunpack.c.l.b16 %v4057
      %v4124 = vunpack.c.l.b16 %v4060
      %v4125 = vunpack.c.l.b16 %v4064
      %v4126 = vunpack.c.l.b16 %v4067
      %v4127 = vunpack.c.l.b16 %v4071
      %v4128 = vunpack.c.l.b16 %v4074
      %v4129 = vunpack.c.l.b16 %v4078
      %v4130 = vunpack.c.l.b16 %v4081
      %v4131 = vpack.c.b16 %v4100, %v4099
      %v4132 = vpack.c.b16 %v4102, %v4101
      %v4133 = vpack.c.b16 %v4104, %v4103
      %v4134 = vpack.c.b16 %v4106, %v4105
      %v4135 = vpack.c.b16 %v4108, %v4107
      %v4136 = vpack.c.b16 %v4110, %v4109
      %v4137 = vpack.c.b16 %v4112, %v4111
      %v4138 = vpack.c.b16 %v4114, %v4113
      %v4139 = vpack.c.b16 %v4116, %v4115
      %v4140 = vpack.c.b16 %v4118, %v4117
      %v4141 = vpack.c.b16 %v4120, %v4119
      %v4142 = vpack.c.b16 %v4122, %v4121
      %v4143 = vpack.c.b16 %v4124, %v4123
      %v4144 = vpack.c.b16 %v4126, %v4125
      %v4145 = vpack.c.b16 %v4128, %v4127
      %v4146 = vpack.c.b16 %v4130, %v4129
      %v4179 = vunpack.c.l.b16 %v4083
      %v4180 = vunpack.c.l.b16 %v4084
      %v4181 = vunpack.c.l.b16 %v4085
      %v4182 = vunpack.c.l.b16 %v4086
      %v4183 = vunpack.c.l.b16 %v4087
      %v4184 = vunpack.c.l.b16 %v4088
      %v4185 = vunpack.c.l.b16 %v4089
      %v4186 = vunpack.c.l.b16 %v4090
      %v4187 = vunpack.c.l.b16 %v4091
      %v4188 = vunpack.c.l.b16 %v4092
      %v4189 = vunpack.c.l.b16 %v4093
      %v4190 = vunpack.c.l.b16 %v4094
      %v4191 = vunpack.c.l.b16 %v4095
      %v4192 = vunpack.c.l.b16 %v4096
      %v4193 = vunpack.c.l.b16 %v4097
      %v4194 = vunpack.c.l.b16 %v4098
      %v4195 = vpack.c.b16 %v4180, %v4179
      %v4196 = vpack.c.b16 %v4182, %v4181
      %v4197 = vpack.c.b16 %v4184, %v4183
      %v4198 = vpack.c.b16 %v4186, %v4185
      %v4199 = vpack.c.b16 %v4188, %v4187
      %v4200 = vpack.c.b16 %v4190, %v4189
      %v4201 = vpack.c.b16 %v4192, %v4191
      %v4202 = vpack.c.b16 %v4194, %v4193
      %4211 = vmatpush.bf16.msra.mxu0 %v4202
      %4212 = vmatpush.bf16.msra.mxu0 %v4201
      %4213 = vmatpush.bf16.msra.mxu0 %v4200
      %4214 = vmatpush.bf16.msra.mxu0 %v4199
      %4215 = vmatpush.bf16.msra.mxu0 %v4198
      %4216 = vmatpush.bf16.msra.mxu0 %v4197
      %4217 = vmatpush.bf16.msra.mxu0 %v4196
      %4218 = vmatpush.bf16.msra.mxu0 %v4195
      %4219 = vmatmul.bf16.gmra.mxu0 %v4131
      %v4220 = vpop.f32.mrf.mxu0
      %v4221 = vadd.f32 0.0, %v4220
      %v4222 = vpop.f32.mrf.mxu0
      %v4223 = vadd.f32 0.0, %v4222
      %4224 = vmatmul.bf16.gmra.mxu0 %v4132
      %v4225 = vpop.f32.mrf.mxu0
      %v4226 = vadd.f32 0.0, %v4225
      %v4227 = vpop.f32.mrf.mxu0
      %v4228 = vadd.f32 0.0, %v4227
      %4229 = vmatmul.bf16.gmra.mxu0 %v4133
      %v4230 = vpop.f32.mrf.mxu0
      %v4231 = vadd.f32 0.0, %v4230
      %v4232 = vpop.f32.mrf.mxu0
      %v4233 = vadd.f32 0.0, %v4232
      %4234 = vmatmul.bf16.gmra.mxu0 %v4134
      %v4235 = vpop.f32.mrf.mxu0
      %v4236 = vadd.f32 0.0, %v4235
      %v4237 = vpop.f32.mrf.mxu0
      %v4238 = vadd.f32 0.0, %v4237
      %4239 = vmatmul.bf16.gmra.mxu0 %v4135
      %v4240 = vpop.f32.mrf.mxu0
      %v4241 = vadd.f32 0.0, %v4240
      %v4242 = vpop.f32.mrf.mxu0
      %v4243 = vadd.f32 0.0, %v4242
      %4244 = vmatmul.bf16.gmra.mxu0 %v4136
      %v4245 = vpop.f32.mrf.mxu0
      %v4246 = vadd.f32 0.0, %v4245
      %v4247 = vpop.f32.mrf.mxu0
      %v4248 = vadd.f32 0.0, %v4247
      %4249 = vmatmul.bf16.gmra.mxu0 %v4137
      %v4250 = vpop.f32.mrf.mxu0
      %v4251 = vadd.f32 0.0, %v4250
      %v4252 = vpop.f32.mrf.mxu0
      %v4253 = vadd.f32 0.0, %v4252
      %4254 = vmatmul.bf16.gmra.mxu0 %v4138
      %v4255 = vpop.f32.mrf.mxu0
      %v4256 = vadd.f32 0.0, %v4255
      %v4257 = vpop.f32.mrf.mxu0
      %v4258 = vadd.f32 0.0, %v4257
      %4259 = vmatmul.bf16.gmra.mxu0 %v4139
      %v4260 = vpop.f32.mrf.mxu0
      %v4261 = vadd.f32 0.0, %v4260
      %v4262 = vpop.f32.mrf.mxu0
      %v4263 = vadd.f32 0.0, %v4262
      %4264 = vmatmul.bf16.gmra.mxu0 %v4140
      %v4265 = vpop.f32.mrf.mxu0
      %v4266 = vadd.f32 0.0, %v4265
      %v4267 = vpop.f32.mrf.mxu0
      %v4268 = vadd.f32 0.0, %v4267
      %4269 = vmatmul.bf16.gmra.mxu0 %v4141
      %v4270 = vpop.f32.mrf.mxu0
      %v4271 = vadd.f32 0.0, %v4270
      %v4272 = vpop.f32.mrf.mxu0
      %v4273 = vadd.f32 0.0, %v4272
      %4274 = vmatmul.bf16.gmra.mxu0 %v4142
      %v4275 = vpop.f32.mrf.mxu0
      %v4276 = vadd.f32 0.0, %v4275
      %v4277 = vpop.f32.mrf.mxu0
      %v4278 = vadd.f32 0.0, %v4277
      %4279 = vmatmul.bf16.gmra.mxu0 %v4143
      %v4280 = vpop.f32.mrf.mxu0
      %v4281 = vadd.f32 0.0, %v4280
      %v4282 = vpop.f32.mrf.mxu0
      %v4283 = vadd.f32 0.0, %v4282
      %4284 = vmatmul.bf16.gmra.mxu0 %v4144
      %v4285 = vpop.f32.mrf.mxu0
      %v4286 = vadd.f32 0.0, %v4285
      %v4287 = vpop.f32.mrf.mxu0
      %v4288 = vadd.f32 0.0, %v4287
      %4289 = vmatmul.bf16.gmra.mxu0 %v4145
      %v4290 = vpop.f32.mrf.mxu0
      %v4291 = vadd.f32 0.0, %v4290
      %v4292 = vpop.f32.mrf.mxu0
      %v4293 = vadd.f32 0.0, %v4292
      %4294 = vmatmul.bf16.gmra.mxu0 %v4146
      %v4295 = vpop.f32.mrf.mxu0
      %v4296 = vadd.f32 0.0, %v4295
      %v4297 = vpop.f32.mrf.mxu0
      %v4298 = vadd.f32 0.0, %v4297
      %4299 = vdwg.mxu0
      %v4300 = vadd.f32 %v3874, %v4221
      %v4301 = vadd.f32 %v3875, %v4223
      %v4302 = vadd.f32 %v3876, %v4226
      %v4303 = vadd.f32 %v3877, %v4228
      %v4304 = vadd.f32 %v3878, %v4231
      %v4305 = vadd.f32 %v3879, %v4233
      %v4306 = vadd.f32 %v3880, %v4236
      %v4307 = vadd.f32 %v3881, %v4238
      %v4308 = vadd.f32 %v3882, %v4241
      %v4309 = vadd.f32 %v3883, %v4243
      %v4310 = vadd.f32 %v3884, %v4246
      %v4311 = vadd.f32 %v3885, %v4248
      %v4312 = vadd.f32 %v3886, %v4251
      %v4313 = vadd.f32 %v3887, %v4253
      %v4314 = vadd.f32 %v3888, %v4256
      %v4315 = vadd.f32 %v3889, %v4258
      %v4316 = vadd.f32 %v3890, %v4261
      %v4317 = vadd.f32 %v3891, %v4263
      %v4318 = vadd.f32 %v3892, %v4266
      %v4319 = vadd.f32 %v3893, %v4268
      %v4320 = vadd.f32 %v3894, %v4271
      %v4321 = vadd.f32 %v3895, %v4273
      %v4322 = vadd.f32 %v3896, %v4276
      %v4323 = vadd.f32 %v3897, %v4278
      %v4324 = vadd.f32 %v3898, %v4281
      %v4325 = vadd.f32 %v3899, %v4283
      %v4326 = vadd.f32 %v3900, %v4286
      %v4327 = vadd.f32 %v3901, %v4288
      %v4328 = vadd.f32 %v3902, %v4291
      %v4329 = vadd.f32 %v3903, %v4293
      %v4330 = vadd.f32 %v3904, %v4296
      %v4331 = vadd.f32 %v3905, %v4298
      %v4332 = vld [vmem:[%s2] sm:$0x1]
      %v4334 = vperm.slane %v4332, 0
      %v4336 = vadd.f32 %v4300, %v4334
      %v4337 = vadd.f32 %v4301, %v4334
      %v4338 = vadd.f32 %v4302, %v4334
      %v4339 = vadd.f32 %v4303, %v4334
      %v4340 = vadd.f32 %v4304, %v4334
      %v4341 = vadd.f32 %v4305, %v4334
      %v4342 = vadd.f32 %v4306, %v4334
      %v4343 = vadd.f32 %v4307, %v4334
      %v4344 = vadd.f32 %v4308, %v4334
      %v4345 = vadd.f32 %v4309, %v4334
      %v4346 = vadd.f32 %v4310, %v4334
      %v4347 = vadd.f32 %v4311, %v4334
      %v4348 = vadd.f32 %v4312, %v4334
      %v4349 = vadd.f32 %v4313, %v4334
      %v4350 = vadd.f32 %v4314, %v4334
      %v4351 = vadd.f32 %v4315, %v4334
      %v4352 = vadd.f32 %v4316, %v4334
      %v4353 = vadd.f32 %v4317, %v4334
      %v4354 = vadd.f32 %v4318, %v4334
      %v4355 = vadd.f32 %v4319, %v4334
      %v4356 = vadd.f32 %v4320, %v4334
      %v4357 = vadd.f32 %v4321, %v4334
      %v4358 = vadd.f32 %v4322, %v4334
      %v4359 = vadd.f32 %v4323, %v4334
      %v4360 = vadd.f32 %v4324, %v4334
      %v4361 = vadd.f32 %v4325, %v4334
      %v4362 = vadd.f32 %v4326, %v4334
      %v4363 = vadd.f32 %v4327, %v4334
      %v4364 = vadd.f32 %v4328, %v4334
      %v4365 = vadd.f32 %v4329, %v4334
      %v4366 = vadd.f32 %v4330, %v4334
      %v4367 = vadd.f32 %v4331, %v4334
      %v4368 = vmax.f32 %v4336, 0.0
      %v4369 = vmax.f32 %v4337, 0.0
      %v4370 = vmax.f32 %v4338, 0.0
      %v4371 = vmax.f32 %v4339, 0.0
      %v4372 = vmax.f32 %v4340, 0.0
      %v4373 = vmax.f32 %v4341, 0.0
      %v4374 = vmax.f32 %v4342, 0.0
      %v4375 = vmax.f32 %v4343, 0.0
      %v4376 = vmax.f32 %v4344, 0.0
      %v4377 = vmax.f32 %v4345, 0.0
      %v4378 = vmax.f32 %v4346, 0.0
      %v4379 = vmax.f32 %v4347, 0.0
      %v4380 = vmax.f32 %v4348, 0.0
      %v4381 = vmax.f32 %v4349, 0.0
      %v4382 = vmax.f32 %v4350, 0.0
      %v4383 = vmax.f32 %v4351, 0.0
      %v4384 = vmax.f32 %v4352, 0.0
      %v4385 = vmax.f32 %v4353, 0.0
      %v4386 = vmax.f32 %v4354, 0.0
      %v4387 = vmax.f32 %v4355, 0.0
      %v4388 = vmax.f32 %v4356, 0.0
      %v4389 = vmax.f32 %v4357, 0.0
      %v4390 = vmax.f32 %v4358, 0.0
      %v4391 = vmax.f32 %v4359, 0.0
      %v4392 = vmax.f32 %v4360, 0.0
      %v4393 = vmax.f32 %v4361, 0.0
      %v4394 = vmax.f32 %v4362, 0.0
      %v4395 = vmax.f32 %v4363, 0.0
      %v4396 = vmax.f32 %v4364, 0.0
      %v4397 = vmax.f32 %v4365, 0.0
      %v4398 = vmax.f32 %v4366, 0.0
      %v4399 = vmax.f32 %v4367, 0.0
      %4400 = vst [vmem:[%s170] sm:$0xff] %v4368
      %4401 = vst [vmem:[%s170 + $0x8] sm:$0xff] %v4369
      %4402 = vst [vmem:[%s170 + $0x10] sm:$0xff] %v4370
      %4403 = vst [vmem:[%s170 + $0x18] sm:$0xff] %v4371
      %4404 = vst [vmem:[%s170 + $0x20] sm:$0xff] %v4372
      %4405 = vst [vmem:[%s170 + $0x28] sm:$0xff] %v4373
      %4406 = vst [vmem:[%s170 + $0x30] sm:$0xff] %v4374
      %4407 = vst [vmem:[%s170 + $0x38] sm:$0xff] %v4375
      %4408 = vst [vmem:[%s170 + $0x40] sm:$0xff] %v4376
      %4409 = vst [vmem:[%s170 + $0x48] sm:$0xff] %v4377
      %4410 = vst [vmem:[%s170 + $0x50] sm:$0xff] %v4378
      %4411 = vst [vmem:[%s170 + $0x58] sm:$0xff] %v4379
      %4412 = vst [vmem:[%s170 + $0x60] sm:$0xff] %v4380
      %4413 = vst [vmem:[%s170 + $0x68] sm:$0xff] %v4381
      %4414 = vst [vmem:[%s170 + $0x70] sm:$0xff] %v4382
      %4415 = vst [vmem:[%s170 + $0x78] sm:$0xff] %v4383
      %4416 = vst [vmem:[%s170 + $0x80] sm:$0xff] %v4384
      %4417 = vst [vmem:[%s170 + $0x88] sm:$0xff] %v4385
      %4418 = vst [vmem:[%s170 + $0x90] sm:$0xff] %v4386
      %4419 = vst [vmem:[%s170 + $0x98] sm:$0xff] %v4387
      %4420 = vst [vmem:[%s170 + $0xa0] sm:$0xff] %v4388
      %4421 = vst [vmem:[%s170 + $0xa8] sm:$0xff] %v4389
      %4422 = vst [vmem:[%s170 + $0xb0] sm:$0xff] %v4390
      %4423 = vst [vmem:[%s170 + $0xb8] sm:$0xff] %v4391
      %4424 = vst [vmem:[%s170 + $0xc0] sm:$0xff] %v4392
      %4425 = vst [vmem:[%s170 + $0xc8] sm:$0xff] %v4393
      %4426 = vst [vmem:[%s170 + $0xd0] sm:$0xff] %v4394
      %4427 = vst [vmem:[%s170 + $0xd8] sm:$0xff] %v4395
      %4428 = vst [vmem:[%s170 + $0xe0] sm:$0xff] %v4396
      %4429 = vst [vmem:[%s170 + $0xe8] sm:$0xff] %v4397
      %4430 = vst [vmem:[%s170 + $0xf0] sm:$0xff] %v4398
      %4431 = vst [vmem:[%s170 + $0xf8] sm:$0xff] %v4399
      %p4432 = scmp.lt.s32.totalorder %s14, 1
      %s4433 = scalar_select %p4432, %s14, 1
      %s4434 = smul.addr %s4433, 32
      %s4435 = smul.addr %s4434, 8
      %s4436 = scalar_lea.vmem %s3, %s4435
      // Predicated region
      $region33: #{deconv_top_down.3} parent=31 // pred_check
        %p4437 = pneg %p100
      $region34: #{deconv_top_down.3} parent=31 // pred_check_branch
        %4439 = sbr.rel (%p4437) target = $region36
      $region35: #{deconv_top_down.3} parent=31 // pred_region
        _
      $region36: #{deconv_top_down.3} parent=31 // pred_fallthru
        _
    $region32: #{deconv_top_down.3} parent=5 // pred_fallthru
      _
    %p4440 = scmp.le.s32.totalorder 2, %s9
    // Predicated region
    $region37: #{deconv_top_down.3} parent=5 // pred_check
      %p4441 = pneg %p4440
    $region38: #{deconv_top_down.3} parent=5 // pred_check_branch
      %4443 = sbr.rel (%p4441) target = $region40
    $region39: #{deconv_top_down.3} parent=5 // pred_region
      %s4444 = ssub.s32 %s9, 2
      // Predicated region
      $region41: #{deconv_top_down.3} parent=39 // pred_check
        %p4445 = pneg %p106
      $region42: #{deconv_top_down.3} parent=39 // pred_check_branch
        %4447 = sbr.rel (%p4445) target = $region44
      $region43: #{deconv_top_down.3} parent=39 // pred_region
        %p4448 = scmp.lt.s32.totalorder %s15, 1
        %s4449 = scalar_select %p4448, %s15, 1
        %s4450 = smul.addr %s4449, 32
        %s4451 = smul.addr %s4450, 8
        %s4452 = scalar_lea.vmem %s3, %s4451
      $region44: #{deconv_top_down.3} parent=39 // pred_fallthru
        _
    $region40: #{deconv_top_down.3} parent=5 // pred_fallthru
      _
  $region6: #{deconv_top_down.3} parent=0 // loop_footer
    %s13 = sadd.s32 1, %s9
  $region7: #{deconv_top_down.3} parent=0 // loop_footer_branch
    %8 = sbr.rel target = $region3
  $region8: #{deconv_top_down.3} parent=0 // loop_exit
    _

</llo_original>
